<compile_context>
chip_gen: v7x
topology: tpu7x:2x2x1
jax: 0.10.0
libtpu: 0.0.40
codegen_flags: <defaults>
</compile_context>

<pallas_src>
import functools

import jax
import jax.numpy as jnp
from jax import lax
from jax.experimental import pallas as pl
from jax.experimental.pallas import tpu as pltpu


def _round_up(v, m):
    return ((v + m - 1) // m) * m


def _pick_tile(m, cap=512):
    """Rows per grid step: multiple of 8, <= cap, and >=2 steps when possible so
    v7x's two TensorCores both get work (harmless on v5e/v6e)."""
    if m <= 8:
        return 8
    steps = max(2, -(-m // cap))
    return _round_up(-(-m // steps), 8)


# ----------------------------------------------------------------------------
# Kernel: fused Conv2d (as GEMM over im2col patches) + ReLU + MaxPool2d(2,2)
# ----------------------------------------------------------------------------
def _conv_pool_kernel(p00_ref, p01_ref, p10_ref, p11_ref, w_ref, b_ref, o_ref):
    w = w_ref[...]
    b = b_ref[...]

    def tap(p_ref):
        y = jnp.dot(p_ref[...], w, preferred_element_type=jnp.float32) + b
        return jnp.maximum(y, 0.0)                      # ReLU

    # maxpool(relu(conv)) == elementwise max of the 4 pooled-window taps
    o = jnp.maximum(jnp.maximum(tap(p00_ref), tap(p01_ref)),
                    jnp.maximum(tap(p10_ref), tap(p11_ref)))
    o_ref[...] = o.astype(o_ref.dtype)


def pallas_conv_pool(x, w, b, k, stride, k_pad):
    """ReLU(Conv2d(k, stride)) + MaxPool2d(2,2), fused into one pallas_call.

    x: (B,H,W,Cin) bf16 NHWC.  w: (k_pad, Cout) bf16.  b: (Cout,) f32.
    Returns (B, oh//2, ow//2, Cout) bf16.
    """
    B, H, W, Cin = x.shape
    Cout = w.shape[1]
    oh = (H - k) // stride + 1
    ow = (W - k) // stride + 1
    ohp, owp = oh // 2, ow // 2

    # TODO(synk): patch extraction stays as XLA-side layout plumbing; building
    # patches from the raw NHWC image inside the kernel would need strided
    # in-kernel gathers.
    def patches(dh, dw):
        cols = []
        for p in range(k):
            h0 = stride * dh + p
            hs = x[:, h0:h0 + 2 * stride * (ohp - 1) + 1:2 * stride, :, :]
            for q in range(k):
                w0 = stride * dw + q
                cols.append(
                    hs[:, :, w0:w0 + 2 * stride * (owp - 1) + 1:2 * stride, :])
        pat = jnp.concatenate(cols, axis=-1).reshape(B * ohp * owp, k * k * Cin)
        if k_pad > k * k * Cin:
            pat = jnp.pad(pat, ((0, 0), (0, k_pad - k * k * Cin)))
        return pat

    taps = [patches(0, 0), patches(0, 1), patches(1, 0), patches(1, 1)]
    M = B * ohp * owp
    tm = _pick_tile(M)
    Mp = _round_up(M, tm)
    if Mp != M:
        taps = [jnp.pad(t, ((0, Mp - M), (0, 0))) for t in taps]

    out = pl.pallas_call(
        _conv_pool_kernel,
        out_shape=jax.ShapeDtypeStruct((Mp, Cout), jnp.bfloat16),
        grid=(Mp // tm,),
        in_specs=[pl.BlockSpec((tm, k_pad), lambda i: (i, 0)) for _ in range(4)]
        + [pl.BlockSpec((k_pad, Cout), lambda i: (0, 0)),
           pl.BlockSpec((1, Cout), lambda i: (0, 0))],
        out_specs=pl.BlockSpec((tm, Cout), lambda i: (i, 0)),
        compiler_params=pltpu.CompilerParams(dimension_semantics=("parallel",)),
    )(*taps, w, b.reshape(1, Cout))
    return out[:M].reshape(B, ohp, owp, Cout)


# ----------------------------------------------------------------------------
# Kernel: plain GEMM + bias (+ReLU), only used by the generic conv3 fallback
# ----------------------------------------------------------------------------
def _gemm_bias_relu_kernel(x_ref, w_ref, b_ref, o_ref, *, relu):
    y = jnp.dot(x_ref[...], w_ref[...], preferred_element_type=jnp.float32)
    y = y + b_ref[...]
    if relu:
        y = jnp.maximum(y, 0.0)
    o_ref[...] = y.astype(o_ref.dtype)


def pallas_matmul_bias(x, w, b, *, relu=False, out_dtype=jnp.float32):
    M, K = x.shape
    N = w.shape[1]
    tm = _pick_tile(M)
    Mp = _round_up(M, tm)
    if Mp != M:
        x = jnp.pad(x, ((0, Mp - M), (0, 0)))
    out = pl.pallas_call(
        functools.partial(_gemm_bias_relu_kernel, relu=relu),
        out_shape=jax.ShapeDtypeStruct((Mp, N), out_dtype),
        grid=(Mp // tm,),
        in_specs=[pl.BlockSpec((tm, K), lambda i: (i, 0)),
                  pl.BlockSpec((K, N), lambda i: (0, 0)),
                  pl.BlockSpec((1, N), lambda i: (0, 0))],
        out_specs=pl.BlockSpec((tm, N), lambda i: (i, 0)),
        compiler_params=pltpu.CompilerParams(dimension_semantics=("parallel",)),
    )(x, w, b.reshape(1, N))
    return out[:M]


# ----------------------------------------------------------------------------
# Kernel: conv3 + fc + noisy dueling head + masked softmax + clamp + E[support]
# ----------------------------------------------------------------------------
def _head_kernel(x_ref, c3w_ref, c3b_ref, fcw_ref, fcb_ref, hw_ref, hb_ref,
                 ow_ref, ob_ref, sumb_ref, supw_ref, q_ref, *, out_dim, atoms):
    A = 128                              # padded lane width per action block
    na = out_dim * A

    # conv3 (3x3 window covering the whole map -> im2col == reshape) + ReLU
    c3 = jnp.dot(x_ref[...], c3w_ref[...], preferred_element_type=jnp.float32)
    c3 = jnp.maximum(c3 + c3b_ref[...], 0.0)
    # fc + ReLU
    feat = jnp.dot(c3.astype(jnp.bfloat16), fcw_ref[...],
                   preferred_element_type=jnp.float32)
    feat = jnp.maximum(feat + fcb_ref[...], 0.0)
    # fused [advantage_hidden | value_hidden] + ReLU  (one 128 -> 256 GEMM)
    hid = jnp.dot(feat.astype(jnp.bfloat16), hw_ref[...],
                  preferred_element_type=jnp.float32)
    hid = jnp.maximum(hid + hb_ref[...], 0.0)
    # fused block-diagonal [advantage | value] output GEMM; each action's atom
    # block is padded to 128 lanes so every slice below is vreg aligned.
    out = jnp.dot(hid.astype(jnp.bfloat16), ow_ref[...],
                  preferred_element_type=jnp.float32) + ob_ref[...]
    adv = out[:, :na]                    # (tb, out_dim*128)
    val = out[:, na:]                    # (tb, 128)

    # advantage mean over actions (aligned 128-lane slices)
    adv_sum = adv[:, :A]
    for a in range(1, out_dim):
        adv_sum = adv_sum + adv[:, a * A:(a + 1) * A]
    corr = val - adv_sum * (1.0 / out_dim)               # value - adv.mean
    q_atoms = adv + jnp.concatenate([corr] * out_dim, axis=1)   # (tb, na)

    # one masked softmax over all actions at once; a per-row global max is a
    # valid (per-block constant) shift for the per-action softmaxes.
    lane = lax.broadcasted_iota(jnp.int32, (1, na), 1)
    mask = (lane % A) < atoms
    m = jnp.max(jnp.where(mask, q_atoms, -1e30), axis=-1, keepdims=True)
    e = jnp.where(mask, jnp.exp(q_atoms - m), 0.0)
    # per-action denominators, broadcast back over the block, via one MXU matmul
    denom = jnp.dot(e, sumb_ref[...], preferred_element_type=jnp.float32)
    denom = jnp.maximum(denom, 1e-30)    # guard against exp underflow
    dist = jnp.maximum(e * pl.reciprocal(denom, approx=True), 0.001)
    # expectation over the support: block-diagonal (na, out_dim) MXU matmul
    # (padded lanes carry support 0, so their clamped 0.001 contributes nothing)
    q_ref[...] = jnp.dot(dist, supw_ref[...],
                         preferred_element_type=jnp.float32).astype(q_ref.dtype)


def pallas_head(x, c3w, c3b, fcw, fcb, hw, hb, ow_, ob_, sumb, supw,
                out_dim, atoms):
    B, K = x.shape
    tb = _pick_tile(B, cap=256)
    Bp = _round_up(B, tb)
    if Bp != B:
        x = jnp.pad(x, ((0, Bp - B), (0, 0)))

    full = lambda a: pl.BlockSpec(a.shape, lambda i: (0, 0))
    q = pl.pallas_call(
        functools.partial(_head_kernel, out_dim=out_dim, atoms=atoms),
        out_shape=jax.ShapeDtypeStruct((Bp, out_dim), jnp.float32),
        grid=(Bp // tb,),
        in_specs=[
            pl.BlockSpec((tb, K), lambda i: (i, 0)),
            full(c3w), full(c3b), full(fcw), full(fcb), full(hw), full(hb),
            full(ow_), full(ob_), full(sumb), full(supw),
        ],
        out_specs=pl.BlockSpec((tb, out_dim), lambda i: (i, 0)),
        compiler_params=pltpu.CompilerParams(dimension_semantics=("parallel",)),
    )(x, c3w, c3b, fcw, fcb, hw, hb, ow_, ob_, sumb, supw)
    return q[:B]


# ----------------------------------------------------------------------------
# Glue: generic im2col (only for the conv3-not-1x1 fallback path)
# ----------------------------------------------------------------------------
def _im2col(x, kh, kw, stride, k_pad):
    B, H, W, C = x.shape
    oh = (H - kh) // stride + 1
    ow = (W - kw) // stride + 1
    cols = []
    for p in range(kh):
        for q in range(kw):
            cols.append(x[:, p:p + stride * oh:stride, q:q + stride * ow:stride, :])
    pat = jnp.concatenate(cols, axis=-1).reshape(B * oh * ow, kh * kw * C)
    if k_pad > kh * kw * C:
        pat = jnp.pad(pat, ((0, 0), (0, k_pad - kh * kw * C)))
    return pat, oh, ow


# ----------------------------------------------------------------------------
# Parameter init (deterministic, PyTorch-like shapes/scales)
# ----------------------------------------------------------------------------
def _conv_params(key, out_c, in_c, kh, kw, k_pad):
    kw_, kb_ = jax.random.split(key)
    bound = 1.0 / (in_c * kh * kw) ** 0.5
    w_pt = jax.random.uniform(kw_, (out_c, in_c, kh, kw), jnp.float32, -bound, bound)
    b = jax.random.uniform(kb_, (out_c,), jnp.float32, -bound, bound)
    # (O, C, KH, KW) -> (KH, KW, C, O) -> (KH*KW*C, O)  matches im2col ordering
    w = jnp.transpose(w_pt, (2, 3, 1, 0)).reshape(kh * kw * in_c, out_c)
    if k_pad > kh * kw * in_c:
        w = jnp.pad(w, ((0, k_pad - kh * kw * in_c), (0, 0)))
    return w.astype(jnp.bfloat16), b


def _linear_params(key, in_f, out_f):
    kw_, kb_ = jax.random.split(key)
    bound = 1.0 / in_f ** 0.5
    w = jax.random.uniform(kw_, (in_f, out_f), jnp.float32, -bound, bound)
    b = jax.random.uniform(kb_, (out_f,), jnp.float32, -bound, bound)
    return w, b


def _noisy_linear_params(key, in_f, out_f):
    """Effective (w, b) of a NoisyLinear for one fixed factorized-noise draw."""
    kmu, kbmu, kein, keout = jax.random.split(key, 4)
    mu_range = 1.0 / in_f ** 0.5
    w_mu = jax.random.uniform(kmu, (in_f, out_f), jnp.float32, -mu_range, mu_range)
    b_mu = jax.random.uniform(kbmu, (out_f,), jnp.float32, -mu_range, mu_range)
    sigma = 0.5 / in_f ** 0.5
    f = lambda e: jnp.sign(e) * jnp.sqrt(jnp.abs(e))
    eps_in = f(jax.random.normal(kein, (in_f,), jnp.float32))
    eps_out = f(jax.random.normal(keout, (out_f,), jnp.float32))
    w = w_mu + sigma * jnp.outer(eps_in, eps_out)
    b = b_mu + sigma * eps_out
    return w, b


# ----------------------------------------------------------------------------
# Network
# ----------------------------------------------------------------------------
class NetworkPallas:
    def __init__(self, in_dim, out_dim, atom_size, support, key):
        self.out_dim = out_dim
        self.atom_size = atom_size
        C, H, W = in_dim

        # static shape inference of the conv tower (mirrors Network.convs probe)
        h1, w1 = (H - 5) // 2 + 1, (W - 5) // 2 + 1
        h1p, w1p = h1 // 2, w1 // 2
        h2, w2 = (h1p - 4) // 2 + 1, (w1p - 4) // 2 + 1
        h2p, w2p = h2 // 2, w2 // 2
        self._h3, self._w3 = h2p - 3 + 1, w2p - 3 + 1
        self._to_linear = 32 * self._h3 * self._w3
        self._fuse_conv3 = (self._h3 == 1 and self._w3 == 1)

        # GEMM reduction axes padded to multiples of 128 (lane-aligned loads)
        self.k1 = _round_up(C * 25, 128)
        self.k2 = _round_up(16 * 16, 128)
        self.k3 = _round_up(32 * 9, 128)

        keys = jax.random.split(key, 8)
        self.w1, self.b1 = _conv_params(keys[0], 16, C, 5, 5, self.k1)
        self.w2, self.b2 = _conv_params(keys[1], 32, 16, 4, 4, self.k2)
        self.w3, self.b3 = _conv_params(keys[2], 32, 32, 3, 3, self.k3)

        fc_w, fc_b = _linear_params(keys[3], self._to_linear, 128)
        advh_w, advh_b = _noisy_linear_params(keys[4], 128, 128)
        adv_w, adv_b = _noisy_linear_params(keys[5], 128, out_dim * atom_size)
        valh_w, valh_b = _noisy_linear_params(keys[6], 128, 128)
        val_w, val_b = _noisy_linear_params(keys[7], 128, atom_size)

        A = 128
        na = out_dim * A
        # fused hidden layer: [advantage_hidden | value_hidden]  (128 -> 256)
        h_w = jnp.concatenate([advh_w, valh_w], axis=1)
        h_b = jnp.concatenate([advh_b, valh_b])
        # fused block-diagonal output layer; each action padded to 128 lanes
        o_w = jnp.zeros((256, na + A), jnp.float32)
        o_b = jnp.zeros((na + A,), jnp.float32)
        for a in range(out_dim):
            o_w = o_w.at[:128, a * A:a * A + atom_size].set(
                adv_w[:, a * atom_size:(a + 1) * atom_size])
            o_b = o_b.at[a * A:a * A + atom_size].set(
                adv_b[a * atom_size:(a + 1) * atom_size])
        o_w = o_w.at[128:, na:na + atom_size].set(val_w)
        o_b = o_b.at[na:na + atom_size].set(val_b)

        # block-diagonal epilogue matrices: per-action denominator broadcast and
        # expectation over the support, both executed on the MXU in-kernel
        sumb = jnp.zeros((na, na), jnp.float32)
        supw = jnp.zeros((na, out_dim), jnp.float32)
        sup = support.astype(jnp.float32)
        for a in range(out_dim):
            sumb = sumb.at[a * A:(a + 1) * A, a * A:(a + 1) * A].set(1.0)
            supw = supw.at[a * A:a * A + atom_size, a].set(sup)
        self.sumb, self.supw = sumb, supw

        self.fc_w = fc_w.astype(jnp.bfloat16)
        self.fc_b = fc_b.reshape(1, -1)
        self.h_w = h_w.astype(jnp.bfloat16)
        self.h_b = h_b.reshape(1, -1)
        self.o_w = o_w.astype(jnp.bfloat16)
        self.o_b = o_b.reshape(1, -1)

        if self._fuse_conv3:
            # conv3's 1x1 output lets us fuse it as the head's first GEMM stage
            self.c3w_head = self.w3
            self.c3b_head = self.b3.reshape(1, -1)
            self._head_k = self.k3
        else:
            # TODO(synk): conv3 output spatial > 1x1 -> conv3 runs as its own
            # GEMM and the head's first stage is an identity (its ReLU is a
            # no-op on the already-nonnegative flattened feature).
            kpad = _round_up(self._to_linear, 128)
            eye = jnp.zeros((kpad, self._to_linear), jnp.float32)
            eye = eye.at[:self._to_linear, :].set(jnp.eye(self._to_linear))
            self.c3w_head = eye.astype(jnp.bfloat16)
            self.c3b_head = jnp.zeros((1, self._to_linear), jnp.float32)
            self._head_k = kpad

    def convs(self, x_nchw):
        x = jnp.transpose(x_nchw, (0, 2, 3, 1)).astype(jnp.bfloat16)  # NCHW->NHWC
        x = pallas_conv_pool(x, self.w1, self.b1, 5, 2, self.k1)      # conv1+pool
        x = pallas_conv_pool(x, self.w2, self.b2, 4, 2, self.k2)      # conv2+pool
        return x                                                      # (B,h2p,w2p,32)

    def forward(self, x_nchw):
        B = x_nchw.shape[0]
        x = self.convs(x_nchw)
        if self._fuse_conv3:
            head_in = x.reshape(B, -1)                                # (B, 288)
            head_in = jnp.pad(head_in, ((0, 0), (0, self._head_k - head_in.shape[1])))
        else:
            p, oh3, ow3 = _im2col(x, 3, 3, 1, self.k3)
            y = pallas_matmul_bias(p, self.w3, self.b3, relu=True,
                                   out_dtype=jnp.bfloat16).reshape(B, oh3, ow3, 32)
            head_in = jnp.transpose(y, (0, 3, 1, 2)).reshape(B, self._to_linear)
            head_in = jnp.pad(head_in, ((0, 0), (0, self._head_k - self._to_linear)))
        return pallas_head(head_in.astype(jnp.bfloat16),
                           self.c3w_head, self.c3b_head,
                           self.fc_w, self.fc_b, self.h_w, self.h_b,
                           self.o_w, self.o_b, self.sumb, self.supw,
                           self.out_dim, self.atom_size)


# ----------------------------------------------------------------------------
if __name__ == "__main__":
    key = jax.random.PRNGKey(0)
    k_params, k_input = jax.random.split(key)

    in_dim = (4, 64, 64)   # smallest spatial size at which the conv tower is valid
    out_dim = 6
    atom_size = 51
    support = jnp.linspace(-10.0, 10.0, atom_size, dtype=jnp.float32)

    net = NetworkPallas(in_dim, out_dim, atom_size, support, k_params)

    batch = 2
    x = jax.random.normal(k_input, (batch,) + in_dim, dtype=jnp.float32)

    fwd = jax.jit(net.forward)
    q = jax.block_until_ready(fwd(x))

    assert q.shape == (batch, out_dim), q.shape
    assert bool(jnp.all(jnp.isfinite(q)))
    print("KERNEL_OK")
</pallas_src>

<mosaic_0001>
module attributes {stable_mosaic.version = 11 : i64} {
  func.func @_conv_pool_kernel(%arg0: i32, %arg1: memref<232x128xbf16, #tpu.memory_space<vmem>>, %arg2: memref<232x128xbf16, #tpu.memory_space<vmem>>, %arg3: memref<232x128xbf16, #tpu.memory_space<vmem>>, %arg4: memref<232x128xbf16, #tpu.memory_space<vmem>>, %arg5: memref<128x16xbf16, #tpu.memory_space<vmem>>, %arg6: memref<1x16xf32, #tpu.memory_space<vmem>>, %arg7: memref<232x16xbf16, #tpu.memory_space<vmem>>) attributes {dimension_semantics = [#tpu.dimension_semantics<parallel>], iteration_bounds = array<i64: 2>, scalar_prefetch = 0 : i64, scratch_operands = 0 : i64, tpu.core_type = #tpu.core_type<tc>, window_params = [{transform_indices = @transform_0, window_bounds = array<i64: 232, 128>}, {transform_indices = @transform_1, window_bounds = array<i64: 232, 128>}, {transform_indices = @transform_2, window_bounds = array<i64: 232, 128>}, {transform_indices = @transform_3, window_bounds = array<i64: 232, 128>}, {pipeline_mode = #tpu.pipeline_mode<synchronous>, transform_indices = @transform_4, window_bounds = array<i64: 128, 16>}, {pipeline_mode = #tpu.pipeline_mode<synchronous>, transform_indices = @transform_5, window_bounds = array<i64: 1, 16>}, {transform_indices = @transform_6, window_bounds = array<i64: 232, 16>}]} {
    %c0 = arith.constant 0 : index
    %c0_0 = arith.constant 0 : index
    %0 = vector.load %arg5[%c0, %c0_0] : memref<128x16xbf16, #tpu.memory_space<vmem>>, vector<128x16xbf16>
    %c0_1 = arith.constant 0 : index
    %c0_2 = arith.constant 0 : index
    %1 = vector.load %arg6[%c0_1, %c0_2] : memref<1x16xf32, #tpu.memory_space<vmem>>, vector<1x16xf32>
    %c0_3 = arith.constant 0 : index
    %c0_4 = arith.constant 0 : index
    %2 = vector.load %arg1[%c0_3, %c0_4] : memref<232x128xbf16, #tpu.memory_space<vmem>>, vector<232x128xbf16>
    %cst = arith.constant dense<0.000000e+00> : vector<232x16xf32>
    %3 = tpu.matmul %2, %0, %cst {dimension_numbers = #tpu.dot_dimension_numbers<[1], [0], [0], [1], [0, 0, 1, 1], [], []>} : vector<232x128xbf16>, vector<128x16xbf16>, vector<232x16xf32> -> vector<232x16xf32>
    %4 = vector.broadcast %1 : vector<1x16xf32> to vector<232x16xf32>
    %5 = arith.addf %3, %4 : vector<232x16xf32>
    %cst_5 = arith.constant 0.000000e+00 : f32
    %6 = vector.broadcast %cst_5 : f32 to vector<232x16xf32>
    %7 = arith.maximumf %5, %6 : vector<232x16xf32>
    %c0_6 = arith.constant 0 : index
    %c0_7 = arith.constant 0 : index
    %8 = vector.load %arg2[%c0_6, %c0_7] : memref<232x128xbf16, #tpu.memory_space<vmem>>, vector<232x128xbf16>
    %cst_8 = arith.constant dense<0.000000e+00> : vector<232x16xf32>
    %9 = tpu.matmul %8, %0, %cst_8 {dimension_numbers = #tpu.dot_dimension_numbers<[1], [0], [0], [1], [0, 0, 1, 1], [], []>} : vector<232x128xbf16>, vector<128x16xbf16>, vector<232x16xf32> -> vector<232x16xf32>
    %10 = vector.broadcast %1 : vector<1x16xf32> to vector<232x16xf32>
    %11 = arith.addf %9, %10 : vector<232x16xf32>
    %cst_9 = arith.constant 0.000000e+00 : f32
    %12 = vector.broadcast %cst_9 : f32 to vector<232x16xf32>
    %13 = arith.maximumf %11, %12 : vector<232x16xf32>
    %14 = arith.maximumf %7, %13 : vector<232x16xf32>
    %c0_10 = arith.constant 0 : index
    %c0_11 = arith.constant 0 : index
    %15 = vector.load %arg3[%c0_10, %c0_11] : memref<232x128xbf16, #tpu.memory_space<vmem>>, vector<232x128xbf16>
    %cst_12 = arith.constant dense<0.000000e+00> : vector<232x16xf32>
    %16 = tpu.matmul %15, %0, %cst_12 {dimension_numbers = #tpu.dot_dimension_numbers<[1], [0], [0], [1], [0, 0, 1, 1], [], []>} : vector<232x128xbf16>, vector<128x16xbf16>, vector<232x16xf32> -> vector<232x16xf32>
    %17 = vector.broadcast %1 : vector<1x16xf32> to vector<232x16xf32>
    %18 = arith.addf %16, %17 : vector<232x16xf32>
    %cst_13 = arith.constant 0.000000e+00 : f32
    %19 = vector.broadcast %cst_13 : f32 to vector<232x16xf32>
    %20 = arith.maximumf %18, %19 : vector<232x16xf32>
    %c0_14 = arith.constant 0 : index
    %c0_15 = arith.constant 0 : index
    %21 = vector.load %arg4[%c0_14, %c0_15] : memref<232x128xbf16, #tpu.memory_space<vmem>>, vector<232x128xbf16>
    %cst_16 = arith.constant dense<0.000000e+00> : vector<232x16xf32>
    %22 = tpu.matmul %21, %0, %cst_16 {dimension_numbers = #tpu.dot_dimension_numbers<[1], [0], [0], [1], [0, 0, 1, 1], [], []>} : vector<232x128xbf16>, vector<128x16xbf16>, vector<232x16xf32> -> vector<232x16xf32>
    %23 = vector.broadcast %1 : vector<1x16xf32> to vector<232x16xf32>
    %24 = arith.addf %22, %23 : vector<232x16xf32>
    %cst_17 = arith.constant 0.000000e+00 : f32
    %25 = vector.broadcast %cst_17 : f32 to vector<232x16xf32>
    %26 = arith.maximumf %24, %25 : vector<232x16xf32>
    %27 = arith.maximumf %20, %26 : vector<232x16xf32>
    %28 = arith.maximumf %14, %27 : vector<232x16xf32>
    %29 = arith.truncf %28 : vector<232x16xf32> to vector<232x16xbf16>
    %c0_18 = arith.constant 0 : index
    %c0_19 = arith.constant 0 : index
    %30 = vector.load %arg7[%c0_18, %c0_19] : memref<232x16xbf16, #tpu.memory_space<vmem>>, vector<232x16xbf16>
    tpu.vector_store %arg7[%c0_18, %c0_19], %29 {strides = array<i32>} : memref<232x16xbf16, #tpu.memory_space<vmem>>, vector<232x16xbf16>,
    return
  }
  func.func @transform_0(%arg0: i32) -> (i32, i32) {
    %c0_i32 = arith.constant 0 : i32
    %c0_i32_0 = arith.constant 0 : i32
    return %arg0, %c0_i32 : i32, i32
  }
  func.func @transform_1(%arg0: i32) -> (i32, i32) {
    %c0_i32 = arith.constant 0 : i32
    %c0_i32_0 = arith.constant 0 : i32
    return %arg0, %c0_i32 : i32, i32
  }
  func.func @transform_2(%arg0: i32) -> (i32, i32) {
    %c0_i32 = arith.constant 0 : i32
    %c0_i32_0 = arith.constant 0 : i32
    return %arg0, %c0_i32 : i32, i32
  }
  func.func @transform_3(%arg0: i32) -> (i32, i32) {
    %c0_i32 = arith.constant 0 : i32
    %c0_i32_0 = arith.constant 0 : i32
    return %arg0, %c0_i32 : i32, i32
  }
  func.func @transform_4(%arg0: i32) -> (i32, i32) {
    %c0_i32 = arith.constant 0 : i32
    %c0_i32_0 = arith.constant 0 : i32
    %c0_i32_1 = arith.constant 0 : i32
    return %c0_i32, %c0_i32_0 : i32, i32
  }
  func.func @transform_5(%arg0: i32) -> (i32, i32) {
    %c0_i32 = arith.constant 0 : i32
    %c0_i32_0 = arith.constant 0 : i32
    %c0_i32_1 = arith.constant 0 : i32
    return %c0_i32, %c0_i32_0 : i32, i32
  }
  func.func @transform_6(%arg0: i32) -> (i32, i32) {
    %c0_i32 = arith.constant 0 : i32
    %c0_i32_0 = arith.constant 0 : i32
    return %arg0, %c0_i32 : i32, i32
  }
}

module attributes {stable_mosaic.version = 11 : i64} {
  func.func @_conv_pool_kernel(%arg0: i32, %arg1: memref<16x256xbf16, #tpu.memory_space<vmem>>, %arg2: memref<16x256xbf16, #tpu.memory_space<vmem>>, %arg3: memref<16x256xbf16, #tpu.memory_space<vmem>>, %arg4: memref<16x256xbf16, #tpu.memory_space<vmem>>, %arg5: memref<256x32xbf16, #tpu.memory_space<vmem>>, %arg6: memref<1x32xf32, #tpu.memory_space<vmem>>, %arg7: memref<16x32xbf16, #tpu.memory_space<vmem>>) attributes {dimension_semantics = [#tpu.dimension_semantics<parallel>], iteration_bounds = array<i64: 2>, scalar_prefetch = 0 : i64, scratch_operands = 0 : i64, tpu.core_type = #tpu.core_type<tc>, window_params = [{transform_indices = @transform_0, window_bounds = array<i64: 16, 256>}, {transform_indices = @transform_1, window_bounds = array<i64: 16, 256>}, {transform_indices = @transform_2, window_bounds = array<i64: 16, 256>}, {transform_indices = @transform_3, window_bounds = array<i64: 16, 256>}, {pipeline_mode = #tpu.pipeline_mode<synchronous>, transform_indices = @transform_4, window_bounds = array<i64: 256, 32>}, {pipeline_mode = #tpu.pipeline_mode<synchronous>, transform_indices = @transform_5, window_bounds = array<i64: 1, 32>}, {transform_indices = @transform_6, window_bounds = array<i64: 16, 32>}]} {
    %c0 = arith.constant 0 : index
    %c0_0 = arith.constant 0 : index
    %0 = vector.load %arg5[%c0, %c0_0] : memref<256x32xbf16, #tpu.memory_space<vmem>>, vector<256x32xbf16>
    %c0_1 = arith.constant 0 : index
    %c0_2 = arith.constant 0 : index
    %1 = vector.load %arg6[%c0_1, %c0_2] : memref<1x32xf32, #tpu.memory_space<vmem>>, vector<1x32xf32>
    %c0_3 = arith.constant 0 : index
    %c0_4 = arith.constant 0 : index
    %2 = vector.load %arg1[%c0_3, %c0_4] : memref<16x256xbf16, #tpu.memory_space<vmem>>, vector<16x256xbf16>
    %cst = arith.constant dense<0.000000e+00> : vector<16x32xf32>
    %3 = tpu.matmul %2, %0, %cst {dimension_numbers = #tpu.dot_dimension_numbers<[1], [0], [0], [1], [0, 0, 1, 1], [], []>} : vector<16x256xbf16>, vector<256x32xbf16>, vector<16x32xf32> -> vector<16x32xf32>
    %4 = vector.broadcast %1 : vector<1x32xf32> to vector<16x32xf32>
    %5 = arith.addf %3, %4 : vector<16x32xf32>
    %cst_5 = arith.constant 0.000000e+00 : f32
    %6 = vector.broadcast %cst_5 : f32 to vector<16x32xf32>
    %7 = arith.maximumf %5, %6 : vector<16x32xf32>
    %c0_6 = arith.constant 0 : index
    %c0_7 = arith.constant 0 : index
    %8 = vector.load %arg2[%c0_6, %c0_7] : memref<16x256xbf16, #tpu.memory_space<vmem>>, vector<16x256xbf16>
    %cst_8 = arith.constant dense<0.000000e+00> : vector<16x32xf32>
    %9 = tpu.matmul %8, %0, %cst_8 {dimension_numbers = #tpu.dot_dimension_numbers<[1], [0], [0], [1], [0, 0, 1, 1], [], []>} : vector<16x256xbf16>, vector<256x32xbf16>, vector<16x32xf32> -> vector<16x32xf32>
    %10 = vector.broadcast %1 : vector<1x32xf32> to vector<16x32xf32>
    %11 = arith.addf %9, %10 : vector<16x32xf32>
    %cst_9 = arith.constant 0.000000e+00 : f32
    %12 = vector.broadcast %cst_9 : f32 to vector<16x32xf32>
    %13 = arith.maximumf %11, %12 : vector<16x32xf32>
    %14 = arith.maximumf %7, %13 : vector<16x32xf32>
    %c0_10 = arith.constant 0 : index
    %c0_11 = arith.constant 0 : index
    %15 = vector.load %arg3[%c0_10, %c0_11] : memref<16x256xbf16, #tpu.memory_space<vmem>>, vector<16x256xbf16>
    %cst_12 = arith.constant dense<0.000000e+00> : vector<16x32xf32>
    %16 = tpu.matmul %15, %0, %cst_12 {dimension_numbers = #tpu.dot_dimension_numbers<[1], [0], [0], [1], [0, 0, 1, 1], [], []>} : vector<16x256xbf16>, vector<256x32xbf16>, vector<16x32xf32> -> vector<16x32xf32>
    %17 = vector.broadcast %1 : vector<1x32xf32> to vector<16x32xf32>
    %18 = arith.addf %16, %17 : vector<16x32xf32>
    %cst_13 = arith.constant 0.000000e+00 : f32
    %19 = vector.broadcast %cst_13 : f32 to vector<16x32xf32>
    %20 = arith.maximumf %18, %19 : vector<16x32xf32>
    %c0_14 = arith.constant 0 : index
    %c0_15 = arith.constant 0 : index
    %21 = vector.load %arg4[%c0_14, %c0_15] : memref<16x256xbf16, #tpu.memory_space<vmem>>, vector<16x256xbf16>
    %cst_16 = arith.constant dense<0.000000e+00> : vector<16x32xf32>
    %22 = tpu.matmul %21, %0, %cst_16 {dimension_numbers = #tpu.dot_dimension_numbers<[1], [0], [0], [1], [0, 0, 1, 1], [], []>} : vector<16x256xbf16>, vector<256x32xbf16>, vector<16x32xf32> -> vector<16x32xf32>
    %23 = vector.broadcast %1 : vector<1x32xf32> to vector<16x32xf32>
    %24 = arith.addf %22, %23 : vector<16x32xf32>
    %cst_17 = arith.constant 0.000000e+00 : f32
    %25 = vector.broadcast %cst_17 : f32 to vector<16x32xf32>
    %26 = arith.maximumf %24, %25 : vector<16x32xf32>
    %27 = arith.maximumf %20, %26 : vector<16x32xf32>
    %28 = arith.maximumf %14, %27 : vector<16x32xf32>
    %29 = arith.truncf %28 : vector<16x32xf32> to vector<16x32xbf16>
    %c0_18 = arith.constant 0 : index
    %c0_19 = arith.constant 0 : index
    %30 = vector.load %arg7[%c0_18, %c0_19] : memref<16x32xbf16, #tpu.memory_space<vmem>>, vector<16x32xbf16>
    tpu.vector_store %arg7[%c0_18, %c0_19], %29 {strides = array<i32>} : memref<16x32xbf16, #tpu.memory_space<vmem>>, vector<16x32xbf16>,
    return
  }
  func.func @transform_0(%arg0: i32) -> (i32, i32) {
    %c0_i32 = arith.constant 0 : i32
    %c0_i32_0 = arith.constant 0 : i32
    return %arg0, %c0_i32 : i32, i32
  }
  func.func @transform_1(%arg0: i32) -> (i32, i32) {
    %c0_i32 = arith.constant 0 : i32
    %c0_i32_0 = arith.constant 0 : i32
    return %arg0, %c0_i32 : i32, i32
  }
  func.func @transform_2(%arg0: i32) -> (i32, i32) {
    %c0_i32 = arith.constant 0 : i32
    %c0_i32_0 = arith.constant 0 : i32
    return %arg0, %c0_i32 : i32, i32
  }
  func.func @transform_3(%arg0: i32) -> (i32, i32) {
    %c0_i32 = arith.constant 0 : i32
    %c0_i32_0 = arith.constant 0 : i32
    return %arg0, %c0_i32 : i32, i32
  }
  func.func @transform_4(%arg0: i32) -> (i32, i32) {
    %c0_i32 = arith.constant 0 : i32
    %c0_i32_0 = arith.constant 0 : i32
    %c0_i32_1 = arith.constant 0 : i32
    return %c0_i32, %c0_i32_0 : i32, i32
  }
  func.func @transform_5(%arg0: i32) -> (i32, i32) {
    %c0_i32 = arith.constant 0 : i32
    %c0_i32_0 = arith.constant 0 : i32
    %c0_i32_1 = arith.constant 0 : i32
    return %c0_i32, %c0_i32_0 : i32, i32
  }
  func.func @transform_6(%arg0: i32) -> (i32, i32) {
    %c0_i32 = arith.constant 0 : i32
    %c0_i32_0 = arith.constant 0 : i32
    return %arg0, %c0_i32 : i32, i32
  }
}

module attributes {stable_mosaic.version = 11 : i64} {
  func.func @_head_kernel(%arg0: i32, %arg1: memref<8x384xbf16, #tpu.memory_space<vmem>>, %arg2: memref<384x32xbf16, #tpu.memory_space<vmem>>, %arg3: memref<1x32xf32, #tpu.memory_space<vmem>>, %arg4: memref<32x128xbf16, #tpu.memory_space<vmem>>, %arg5: memref<1x128xf32, #tpu.memory_space<vmem>>, %arg6: memref<128x256xbf16, #tpu.memory_space<vmem>>, %arg7: memref<1x256xf32, #tpu.memory_space<vmem>>, %arg8: memref<256x896xbf16, #tpu.memory_space<vmem>>, %arg9: memref<1x896xf32, #tpu.memory_space<vmem>>, %arg10: memref<768x768xf32, #tpu.memory_space<vmem>>, %arg11: memref<768x6xf32, #tpu.memory_space<vmem>>, %arg12: memref<8x6xf32, #tpu.memory_space<vmem>>) attributes {dimension_semantics = [#tpu.dimension_semantics<parallel>], iteration_bounds = array<i64: 1>, scalar_prefetch = 0 : i64, scratch_operands = 0 : i64, tpu.core_type = #tpu.core_type<tc>, window_params = [{transform_indices = @transform_0, window_bounds = array<i64: 8, 384>}, {pipeline_mode = #tpu.pipeline_mode<synchronous>, transform_indices = @transform_1, window_bounds = array<i64: 384, 32>}, {pipeline_mode = #tpu.pipeline_mode<synchronous>, transform_indices = @transform_2, window_bounds = array<i64: 1, 32>}, {pipeline_mode = #tpu.pipeline_mode<synchronous>, transform_indices = @transform_3, window_bounds = array<i64: 32, 128>}, {pipeline_mode = #tpu.pipeline_mode<synchronous>, transform_indices = @transform_4, window_bounds = array<i64: 1, 128>}, {pipeline_mode = #tpu.pipeline_mode<synchronous>, transform_indices = @transform_5, window_bounds = array<i64: 128, 256>}, {pipeline_mode = #tpu.pipeline_mode<synchronous>, transform_indices = @transform_6, window_bounds = array<i64: 1, 256>}, {pipeline_mode = #tpu.pipeline_mode<synchronous>, transform_indices = @transform_7, window_bounds = array<i64: 256, 896>}, {pipeline_mode = #tpu.pipeline_mode<synchronous>, transform_indices = @transform_8, window_bounds = array<i64: 1, 896>}, {pipeline_mode = #tpu.pipeline_mode<synchronous>, transform_indices = @transform_9, window_bounds = array<i64: 768, 768>}, {pipeline_mode = #tpu.pipeline_mode<synchronous>, transform_indices = @transform_10, window_bounds = array<i64: 768, 6>}, {transform_indices = @transform_11, window_bounds = array<i64: 8, 6>}]} {
    %c0 = arith.constant 0 : index
    %c0_0 = arith.constant 0 : index
    %0 = vector.load %arg1[%c0, %c0_0] : memref<8x384xbf16, #tpu.memory_space<vmem>>, vector<8x384xbf16>
    %c0_1 = arith.constant 0 : index
    %c0_2 = arith.constant 0 : index
    %1 = vector.load %arg2[%c0_1, %c0_2] : memref<384x32xbf16, #tpu.memory_space<vmem>>, vector<384x32xbf16>
    %cst = arith.constant dense<0.000000e+00> : vector<8x32xf32>
    %2 = tpu.matmul %0, %1, %cst {dimension_numbers = #tpu.dot_dimension_numbers<[1], [0], [0], [1], [0, 0, 1, 1], [], []>} : vector<8x384xbf16>, vector<384x32xbf16>, vector<8x32xf32> -> vector<8x32xf32>
    %c0_3 = arith.constant 0 : index
    %c0_4 = arith.constant 0 : index
    %3 = vector.load %arg3[%c0_3, %c0_4] : memref<1x32xf32, #tpu.memory_space<vmem>>, vector<1x32xf32>
    %4 = vector.broadcast %3 : vector<1x32xf32> to vector<8x32xf32>
    %5 = arith.addf %2, %4 : vector<8x32xf32>
    %cst_5 = arith.constant 0.000000e+00 : f32
    %6 = vector.broadcast %cst_5 : f32 to vector<8x32xf32>
    %7 = arith.maximumf %5, %6 : vector<8x32xf32>
    %8 = arith.truncf %7 : vector<8x32xf32> to vector<8x32xbf16>
    %c0_6 = arith.constant 0 : index
    %c0_7 = arith.constant 0 : index
    %9 = vector.load %arg4[%c0_6, %c0_7] : memref<32x128xbf16, #tpu.memory_space<vmem>>, vector<32x128xbf16>
    %cst_8 = arith.constant dense<0.000000e+00> : vector<8x128xf32>
    %10 = tpu.matmul %8, %9, %cst_8 {dimension_numbers = #tpu.dot_dimension_numbers<[1], [0], [0], [1], [0, 0, 1, 1], [], []>} : vector<8x32xbf16>, vector<32x128xbf16>, vector<8x128xf32> -> vector<8x128xf32>
    %c0_9 = arith.constant 0 : index
    %c0_10 = arith.constant 0 : index
    %11 = vector.load %arg5[%c0_9, %c0_10] : memref<1x128xf32, #tpu.memory_space<vmem>>, vector<1x128xf32>
    %12 = vector.broadcast %11 : vector<1x128xf32> to vector<8x128xf32>
    %13 = arith.addf %10, %12 : vector<8x128xf32>
    %cst_11 = arith.constant 0.000000e+00 : f32
    %14 = vector.broadcast %cst_11 : f32 to vector<8x128xf32>
    %15 = arith.maximumf %13, %14 : vector<8x128xf32>
    %16 = arith.truncf %15 : vector<8x128xf32> to vector<8x128xbf16>
    %c0_12 = arith.constant 0 : index
    %c0_13 = arith.constant 0 : index
    %17 = vector.load %arg6[%c0_12, %c0_13] : memref<128x256xbf16, #tpu.memory_space<vmem>>, vector<128x256xbf16>
    %cst_14 = arith.constant dense<0.000000e+00> : vector<8x256xf32>
    %18 = tpu.matmul %16, %17, %cst_14 {dimension_numbers = #tpu.dot_dimension_numbers<[1], [0], [0], [1], [0, 0, 1, 1], [], []>} : vector<8x128xbf16>, vector<128x256xbf16>, vector<8x256xf32> -> vector<8x256xf32>
    %c0_15 = arith.constant 0 : index
    %c0_16 = arith.constant 0 : index
    %19 = vector.load %arg7[%c0_15, %c0_16] : memref<1x256xf32, #tpu.memory_space<vmem>>, vector<1x256xf32>
    %20 = vector.broadcast %19 : vector<1x256xf32> to vector<8x256xf32>
    %21 = arith.addf %18, %20 : vector<8x256xf32>
    %cst_17 = arith.constant 0.000000e+00 : f32
    %22 = vector.broadcast %cst_17 : f32 to vector<8x256xf32>
    %23 = arith.maximumf %21, %22 : vector<8x256xf32>
    %24 = arith.truncf %23 : vector<8x256xf32> to vector<8x256xbf16>
    %c0_18 = arith.constant 0 : index
    %c0_19 = arith.constant 0 : index
    %25 = vector.load %arg8[%c0_18, %c0_19] : memref<256x896xbf16, #tpu.memory_space<vmem>>, vector<256x896xbf16>
    %cst_20 = arith.constant dense<0.000000e+00> : vector<8x896xf32>
    %26 = tpu.matmul %24, %25, %cst_20 {dimension_numbers = #tpu.dot_dimension_numbers<[1], [0], [0], [1], [0, 0, 1, 1], [], []>} : vector<8x256xbf16>, vector<256x896xbf16>, vector<8x896xf32> -> vector<8x896xf32>
    %c0_21 = arith.constant 0 : index
    %c0_22 = arith.constant 0 : index
    %27 = vector.load %arg9[%c0_21, %c0_22] : memref<1x896xf32, #tpu.memory_space<vmem>>, vector<1x896xf32>
    %28 = vector.broadcast %27 : vector<1x896xf32> to vector<8x896xf32>
    %29 = arith.addf %26, %28 : vector<8x896xf32>
    %30 = vector.extract_strided_slice %29 {offsets = [0, 0], sizes = [8, 768], strides = [1, 1]} : vector<8x896xf32> to vector<8x768xf32>
    %31 = vector.extract_strided_slice %29 {offsets = [0, 768], sizes = [8, 128], strides = [1, 1]} : vector<8x896xf32> to vector<8x128xf32>
    %32 = vector.extract_strided_slice %30 {offsets = [0, 0], sizes = [8, 128], strides = [1, 1]} : vector<8x768xf32> to vector<8x128xf32>
    %33 = vector.extract_strided_slice %30 {offsets = [0, 128], sizes = [8, 128], strides = [1, 1]} : vector<8x768xf32> to vector<8x128xf32>
    %34 = arith.addf %32, %33 : vector<8x128xf32>
    %35 = vector.extract_strided_slice %30 {offsets = [0, 256], sizes = [8, 128], strides = [1, 1]} : vector<8x768xf32> to vector<8x128xf32>
    %36 = arith.addf %34, %35 : vector<8x128xf32>
    %37 = vector.extract_strided_slice %30 {offsets = [0, 384], sizes = [8, 128], strides = [1, 1]} : vector<8x768xf32> to vector<8x128xf32>
    %38 = arith.addf %36, %37 : vector<8x128xf32>
    %39 = vector.extract_strided_slice %30 {offsets = [0, 512], sizes = [8, 128], strides = [1, 1]} : vector<8x768xf32> to vector<8x128xf32>
    %40 = arith.addf %38, %39 : vector<8x128xf32>
    %41 = vector.extract_strided_slice %30 {offsets = [0, 640], sizes = [8, 128], strides = [1, 1]} : vector<8x768xf32> to vector<8x128xf32>
    %42 = arith.addf %40, %41 : vector<8x128xf32>
    %cst_23 = arith.constant 0.166666672 : f32
    %43 = vector.broadcast %cst_23 : f32 to vector<8x128xf32>
    %44 = arith.mulf %42, %43 : vector<8x128xf32>
    %45 = arith.subf %31, %44 : vector<8x128xf32>
    %46 = tpu.concatenate %45, %45, %45, %45, %45, %45 in 1 : vector<8x128xf32>, vector<8x128xf32>, vector<8x128xf32>, vector<8x128xf32>, vector<8x128xf32>, vector<8x128xf32> -> vector<8x768xf32>
    %47 = arith.addf %30, %46 : vector<8x768xf32>
    %48 = tpu.iota {dimensions = array<i32: 1>} : vector<1x768xi32>
    %c128_i32 = arith.constant 128 : i32
    %c0_i32 = arith.constant 0 : i32
    %49 = arith.cmpi eq, %c128_i32, %c0_i32 : i32
    %c1_i32 = arith.constant 1 : i32
    %50 = arith.select %49, %c1_i32, %c128_i32 : i32
    %51 = vector.broadcast %50 : i32 to vector<1x768xi32>
    %52 = arith.remsi %48, %51 : vector<1x768xi32>
    %c0_i32_24 = arith.constant 0 : i32
    %53 = vector.broadcast %c0_i32_24 : i32 to vector<1x768xi32>
    %54 = arith.cmpi ne, %52, %53 : vector<1x768xi32>
    %c0_i32_25 = arith.constant 0 : i32
    %55 = vector.broadcast %c0_i32_25 : i32 to vector<1x768xi32>
    %56 = arith.cmpi slt, %52, %55 : vector<1x768xi32>
    %c0_i32_26 = arith.constant 0 : i32
    %57 = arith.cmpi slt, %50, %c0_i32_26 : i32
    %58 = vector.broadcast %57 : i1 to vector<1x768xi1>
    %59 = vector.broadcast %58 : vector<1x768xi1> to vector<1x768xi1>
    %60 = arith.xori %56, %59 : vector<1x768xi1>
    %61 = arith.andi %60, %54 : vector<1x768xi1>
    %62 = vector.broadcast %50 : i32 to vector<1x768xi32>
    %63 = arith.addi %52, %62 : vector<1x768xi32>
    %64 = arith.select %61, %63, %52 : vector<1x768xi1>, vector<1x768xi32>
    %c51_i32 = arith.constant 51 : i32
    %65 = vector.broadcast %c51_i32 : i32 to vector<1x768xi32>
    %66 = arith.cmpi slt, %64, %65 : vector<1x768xi32>
    %cst_27 = arith.constant -1.000000e+30 : f32
    %67 = vector.shape_cast %66 : vector<1x768xi1> to vector<1x768xi1>
    %68 = vector.broadcast %67 : vector<1x768xi1> to vector<8x768xi1>
    %69 = vector.broadcast %cst_27 : f32 to vector<8x768xf32>
    %70 = arith.select %68, %47, %69 : vector<8x768xi1>, vector<8x768xf32>
    %cst_28 = arith.constant dense<0xFF800000> : vector<8xf32>
    %71 = vector.multi_reduction <maximumf>, %70, %cst_28 [1] : vector<8x768xf32> to vector<8xf32>
    %72 = vector.shape_cast %71 : vector<8xf32> to vector<8x1xf32>
    %73 = vector.broadcast %72 : vector<8x1xf32> to vector<8x768xf32>
    %74 = arith.subf %47, %73 : vector<8x768xf32>
    %75 = math.exp %74 : vector<8x768xf32>
    %cst_29 = arith.constant 0.000000e+00 : f32
    %76 = vector.shape_cast %66 : vector<1x768xi1> to vector<1x768xi1>
    %77 = vector.broadcast %76 : vector<1x768xi1> to vector<8x768xi1>
    %78 = vector.broadcast %cst_29 : f32 to vector<8x768xf32>
    %79 = arith.select %77, %75, %78 : vector<8x768xi1>, vector<8x768xf32>
    %c0_30 = arith.constant 0 : index
    %c0_31 = arith.constant 0 : index
    %80 = vector.load %arg10[%c0_30, %c0_31] : memref<768x768xf32, #tpu.memory_space<vmem>>, vector<768x768xf32>
    %cst_32 = arith.constant dense<0.000000e+00> : vector<8x768xf32>
    %81 = tpu.matmul %79, %80, %cst_32 {dimension_numbers = #tpu.dot_dimension_numbers<[1], [0], [0], [1], [0, 0, 1, 1], [], []>} : vector<8x768xf32>, vector<768x768xf32>, vector<8x768xf32> -> vector<8x768xf32>
    %cst_33 = arith.constant 1.000000e-30 : f32
    %82 = vector.broadcast %cst_33 : f32 to vector<8x768xf32>
    %83 = arith.maximumf %81, %82 : vector<8x768xf32>
    %84 = tpu.reciprocal %83 {approx = true} : vector<8x768xf32> -> vector<8x768xf32>
    %85 = arith.mulf %79, %84 : vector<8x768xf32>
    %cst_34 = arith.constant 1.000000e-03 : f32
    %86 = vector.broadcast %cst_34 : f32 to vector<8x768xf32>
    %87 = arith.maximumf %85, %86 : vector<8x768xf32>
    %c0_35 = arith.constant 0 : index
    %c0_36 = arith.constant 0 : index
    %88 = vector.load %arg11[%c0_35, %c0_36] : memref<768x6xf32, #tpu.memory_space<vmem>>, vector<768x6xf32>
    %cst_37 = arith.constant dense<0.000000e+00> : vector<8x6xf32>
    %89 = tpu.matmul %87, %88, %cst_37 {dimension_numbers = #tpu.dot_dimension_numbers<[1], [0], [0], [1], [0, 0, 1, 1], [], []>} : vector<8x768xf32>, vector<768x6xf32>, vector<8x6xf32> -> vector<8x6xf32>
    %c0_38 = arith.constant 0 : index
    %c0_39 = arith.constant 0 : index
    %90 = vector.load %arg12[%c0_38, %c0_39] : memref<8x6xf32, #tpu.memory_space<vmem>>, vector<8x6xf32>
    tpu.vector_store %arg12[%c0_38, %c0_39], %89 {strides = array<i32>} : memref<8x6xf32, #tpu.memory_space<vmem>>, vector<8x6xf32>,
    return
  }
  func.func @transform_0(%arg0: i32) -> (i32, i32) {
    %c0_i32 = arith.constant 0 : i32
    %c0_i32_0 = arith.constant 0 : i32
    return %arg0, %c0_i32 : i32, i32
  }
  func.func @transform_1(%arg0: i32) -> (i32, i32) {
    %c0_i32 = arith.constant 0 : i32
    %c0_i32_0 = arith.constant 0 : i32
    %c0_i32_1 = arith.constant 0 : i32
    return %c0_i32, %c0_i32_0 : i32, i32
  }
  func.func @transform_2(%arg0: i32) -> (i32, i32) {
    %c0_i32 = arith.constant 0 : i32
    %c0_i32_0 = arith.constant 0 : i32
    %c0_i32_1 = arith.constant 0 : i32
    return %c0_i32, %c0_i32_0 : i32, i32
  }
  func.func @transform_3(%arg0: i32) -> (i32, i32) {
    %c0_i32 = arith.constant 0 : i32
    %c0_i32_0 = arith.constant 0 : i32
    %c0_i32_1 = arith.constant 0 : i32
    return %c0_i32, %c0_i32_0 : i32, i32
  }
  func.func @transform_4(%arg0: i32) -> (i32, i32) {
    %c0_i32 = arith.constant 0 : i32
    %c0_i32_0 = arith.constant 0 : i32
    %c0_i32_1 = arith.constant 0 : i32
    return %c0_i32, %c0_i32_0 : i32, i32
  }
  func.func @transform_5(%arg0: i32) -> (i32, i32) {
    %c0_i32 = arith.constant 0 : i32
    %c0_i32_0 = arith.constant 0 : i32
    %c0_i32_1 = arith.constant 0 : i32
    return %c0_i32, %c0_i32_0 : i32, i32
  }
  func.func @transform_6(%arg0: i32) -> (i32, i32) {
    %c0_i32 = arith.constant 0 : i32
    %c0_i32_0 = arith.constant 0 : i32
    %c0_i32_1 = arith.constant 0 : i32
    return %c0_i32, %c0_i32_0 : i32, i32
  }
  func.func @transform_7(%arg0: i32) -> (i32, i32) {
    %c0_i32 = arith.constant 0 : i32
    %c0_i32_0 = arith.constant 0 : i32
    %c0_i32_1 = arith.constant 0 : i32
    return %c0_i32, %c0_i32_0 : i32, i32
  }
  func.func @transform_8(%arg0: i32) -> (i32, i32) {
    %c0_i32 = arith.constant 0 : i32
    %c0_i32_0 = arith.constant 0 : i32
    %c0_i32_1 = arith.constant 0 : i32
    return %c0_i32, %c0_i32_0 : i32, i32
  }
  func.func @transform_9(%arg0: i32) -> (i32, i32) {
    %c0_i32 = arith.constant 0 : i32
    %c0_i32_0 = arith.constant 0 : i32
    %c0_i32_1 = arith.constant 0 : i32
    return %c0_i32, %c0_i32_0 : i32, i32
  }
  func.func @transform_10(%arg0: i32) -> (i32, i32) {
    %c0_i32 = arith.constant 0 : i32
    %c0_i32_0 = arith.constant 0 : i32
    %c0_i32_1 = arith.constant 0 : i32
    return %c0_i32, %c0_i32_0 : i32, i32
  }
  func.func @transform_11(%arg0: i32) -> (i32, i32) {
    %c0_i32 = arith.constant 0 : i32
    %c0_i32_0 = arith.constant 0 : i32
    return %arg0, %c0_i32 : i32, i32
  }
}

</mosaic_0001>

<llo_original>
// kernel: forward.3
$region0: #{forward.3}
  #allocation0 [shape = 'u32[]', space=smem, size = 0x4, offset = 0x4, fixed_abs, tag = 'smem constant byte address 0x4 - core index']
  #allocation1 [shape = 'u32[144,128]{1,0:T(1,128)}', space=vmem, size = 0x12000, scoped, tag = 'internal scratch']
  %s0 = inlined_call_operand.vmem [shape: bf16[464,128], index: 0, kind: input, shape index: {}]
  %s1 = inlined_call_operand.vmem [shape: bf16[464,128], index: 1, kind: input, shape index: {}]
  %s2 = inlined_call_operand.vmem [shape: bf16[464,128], index: 2, kind: input, shape index: {}]
  %s3 = inlined_call_operand.vmem [shape: bf16[464,128], index: 3, kind: input, shape index: {}]
  %s4 = inlined_call_operand.vmem [shape: bf16[128,16], index: 4, kind: input, shape index: {}]
  %s5 = inlined_call_operand.vmem [shape: f32[1,16], index: 5, kind: input, shape index: {}]
  %s6 = inlined_call_operand.vmem [shape: bf16[464,16], index: 6, kind: output, shape index: {}]
  %s7 = sld [smem:[#allocation0]]
  $region57: #{forward.3} parent=0
    _
  %s9 = ssub.s32 1, %s7
  %s10 = scalar_select 0, %s9, %s7
  loop: start=0, step=1, limit=4
  $region2: #{forward.3} parent=0 // loop_pre_header
    _
  $region3: #{forward.3} parent=0 // loop_header
    %s12 = sphi 0, %s16
    %p13 = scmp.ge.s32.totalorder %s12, 4
    %s22 = sphi 0, %s24
    %s25 = sphi 0, %s22
    %s26 = sphi 0, %s25
    %s42 = sphi 0, %s26
    %s48 = sphi 0, %s50
    %s51 = sphi 0, %s48
    %s52 = sphi 0, %s51
    %s68 = sphi 0, %s52
    %s74 = sphi 0, %s76
    %s77 = sphi 0, %s74
    %s78 = sphi 0, %s77
    %s94 = sphi 0, %s78
    %s100 = sphi 0, %s102
    %s103 = sphi 0, %s100
    %s104 = sphi 0, %s103
    %s120 = sphi 0, %s104
    %s124 = sphi 0, %s124
    %s126 = sphi 0, %s124
    %s127 = sphi 0, %s126
    %s141 = sphi 0, %s127
    %s145 = sphi 0, %s145
    %s147 = sphi 0, %s145
    %s148 = sphi 0, %s147
    %s162 = sphi 0, %s148
    %s168 = sphi 0, %s170
    %s171 = sphi 0, %s168
    %s172 = sphi 0, %s171
    %s188 = sphi 0, %s172
  $region4: #{forward.3} parent=0 // loop_header_branch
    %15 = sbr.rel (%p13) target = $region8
  $region5: #{forward.3} parent=0 // loop_body
    %s17 = ssub.s32 %s12, 1
    %s18 = ssub.s32 %s12, 2
    %s19 = sadd.s32 %s12, 1
    %s20 = ssub.s32 %s12, %s19
    %p21 = scmp.eq.s32.totalorder %s20, 0
    %s23 = sadd.s32 %s22, 1
    %s24 = scalar_select %p21, %s22, %s23
    %p27 = pneg %p21
    %p28 = scmp.eq.s32.totalorder %s12, 1
    %p29 = por %p27, %p28
    %p30 = scmp.ne.s32.totalorder %s22, %s25
    %p31 = scmp.eq.s32.totalorder %s12, 0
    %p32 = por %p30, %p31
    %p33 = scmp.ne.s32.totalorder %s22, %s25
    %p34 = scmp.eq.s32.totalorder %s17, 1
    %p35 = por %p33, %p34
    %p36 = scmp.ne.s32.totalorder %s25, %s26
    %p37 = scmp.eq.s32.totalorder %s17, 0
    %p38 = por %p36, %p37
    %p39 = scmp.ne.s32.totalorder %s25, %s26
    %p40 = scmp.eq.s32.totalorder %s18, 1
    %p41 = por %p39, %p40
    %p43 = scmp.ne.s32.totalorder %s26, %s42
    %p44 = scmp.eq.s32.totalorder %s18, 0
    %p45 = por %p43, %p44
    %s46 = ssub.s32 %s12, %s19
    %p47 = scmp.eq.s32.totalorder %s46, 0
    %s49 = sadd.s32 %s48, 1
    %s50 = scalar_select %p47, %s48, %s49
    %p53 = pneg %p47
    %p54 = scmp.eq.s32.totalorder %s12, 1
    %p55 = por %p53, %p54
    %p56 = scmp.ne.s32.totalorder %s48, %s51
    %p57 = scmp.eq.s32.totalorder %s12, 0
    %p58 = por %p56, %p57
    %p59 = scmp.ne.s32.totalorder %s48, %s51
    %p60 = scmp.eq.s32.totalorder %s17, 1
    %p61 = por %p59, %p60
    %p62 = scmp.ne.s32.totalorder %s51, %s52
    %p63 = scmp.eq.s32.totalorder %s17, 0
    %p64 = por %p62, %p63
    %p65 = scmp.ne.s32.totalorder %s51, %s52
    %p66 = scmp.eq.s32.totalorder %s18, 1
    %p67 = por %p65, %p66
    %p69 = scmp.ne.s32.totalorder %s52, %s68
    %p70 = scmp.eq.s32.totalorder %s18, 0
    %p71 = por %p69, %p70
    %s72 = ssub.s32 %s12, %s19
    %p73 = scmp.eq.s32.totalorder %s72, 0
    %s75 = sadd.s32 %s74, 1
    %s76 = scalar_select %p73, %s74, %s75
    %p79 = pneg %p73
    %p80 = scmp.eq.s32.totalorder %s12, 1
    %p81 = por %p79, %p80
    %p82 = scmp.ne.s32.totalorder %s74, %s77
    %p83 = scmp.eq.s32.totalorder %s12, 0
    %p84 = por %p82, %p83
    %p85 = scmp.ne.s32.totalorder %s74, %s77
    %p86 = scmp.eq.s32.totalorder %s17, 1
    %p87 = por %p85, %p86
    %p88 = scmp.ne.s32.totalorder %s77, %s78
    %p89 = scmp.eq.s32.totalorder %s17, 0
    %p90 = por %p88, %p89
    %p91 = scmp.ne.s32.totalorder %s77, %s78
    %p92 = scmp.eq.s32.totalorder %s18, 1
    %p93 = por %p91, %p92
    %p95 = scmp.ne.s32.totalorder %s78, %s94
    %p96 = scmp.eq.s32.totalorder %s18, 0
    %p97 = por %p95, %p96
    %s98 = ssub.s32 %s12, %s19
    %p99 = scmp.eq.s32.totalorder %s98, 0
    %s101 = sadd.s32 %s100, 1
    %s102 = scalar_select %p99, %s100, %s101
    %p105 = pneg %p99
    %p106 = scmp.eq.s32.totalorder %s12, 1
    %p107 = por %p105, %p106
    %p108 = scmp.ne.s32.totalorder %s100, %s103
    %p109 = scmp.eq.s32.totalorder %s12, 0
    %p110 = por %p108, %p109
    %p111 = scmp.ne.s32.totalorder %s100, %s103
    %p112 = scmp.eq.s32.totalorder %s17, 1
    %p113 = por %p111, %p112
    %p114 = scmp.ne.s32.totalorder %s103, %s104
    %p115 = scmp.eq.s32.totalorder %s17, 0
    %p116 = por %p114, %p115
    %p117 = scmp.ne.s32.totalorder %s103, %s104
    %p118 = scmp.eq.s32.totalorder %s18, 1
    %p119 = por %p117, %p118
    %p121 = scmp.ne.s32.totalorder %s104, %s120
    %p122 = scmp.eq.s32.totalorder %s18, 0
    %p123 = por %p121, %p122
    %s125 = sadd.s32 %s124, 1
    %p128 = scmp.eq.s32.totalorder %s12, 1
    %p129 = scmp.ne.s32.totalorder %s124, %s126
    %p130 = scmp.eq.s32.totalorder %s12, 0
    %p131 = por %p129, %p130
    %p132 = scmp.ne.s32.totalorder %s124, %s126
    %p133 = scmp.eq.s32.totalorder %s17, 1
    %p134 = por %p132, %p133
    %p135 = scmp.ne.s32.totalorder %s126, %s127
    %p136 = scmp.eq.s32.totalorder %s17, 0
    %p137 = por %p135, %p136
    %p138 = scmp.ne.s32.totalorder %s126, %s127
    %p139 = scmp.eq.s32.totalorder %s18, 1
    %p140 = por %p138, %p139
    %p142 = scmp.ne.s32.totalorder %s127, %s141
    %p143 = scmp.eq.s32.totalorder %s18, 0
    %p144 = por %p142, %p143
    %s146 = sadd.s32 %s145, 1
    %p149 = scmp.eq.s32.totalorder %s12, 1
    %p150 = scmp.ne.s32.totalorder %s145, %s147
    %p151 = scmp.eq.s32.totalorder %s12, 0
    %p152 = por %p150, %p151
    %p153 = scmp.ne.s32.totalorder %s145, %s147
    %p154 = scmp.eq.s32.totalorder %s17, 1
    %p155 = por %p153, %p154
    %p156 = scmp.ne.s32.totalorder %s147, %s148
    %p157 = scmp.eq.s32.totalorder %s17, 0
    %p158 = por %p156, %p157
    %p159 = scmp.ne.s32.totalorder %s147, %s148
    %p160 = scmp.eq.s32.totalorder %s18, 1
    %p161 = por %p159, %p160
    %p163 = scmp.ne.s32.totalorder %s148, %s162
    %p164 = scmp.eq.s32.totalorder %s18, 0
    %p165 = por %p163, %p164
    %s166 = ssub.s32 %s12, %s19
    %p167 = scmp.eq.s32.totalorder %s166, 0
    %s169 = sadd.s32 %s168, 1
    %s170 = scalar_select %p167, %s168, %s169
    %p173 = pneg %p167
    %p174 = scmp.eq.s32.totalorder %s12, 1
    %p175 = por %p173, %p174
    %p176 = scmp.ne.s32.totalorder %s168, %s171
    %p177 = scmp.eq.s32.totalorder %s12, 0
    %p178 = por %p176, %p177
    %p179 = scmp.ne.s32.totalorder %s168, %s171
    %p180 = scmp.eq.s32.totalorder %s17, 1
    %p181 = por %p179, %p180
    %p182 = scmp.ne.s32.totalorder %s171, %s172
    %p183 = scmp.eq.s32.totalorder %s17, 0
    %p184 = por %p182, %p183
    %p185 = scmp.ne.s32.totalorder %s171, %s172
    %p186 = scmp.eq.s32.totalorder %s18, 1
    %p187 = por %p185, %p186
    %p189 = scmp.ne.s32.totalorder %s172, %s188
    %p190 = scmp.eq.s32.totalorder %s18, 0
    %p191 = por %p189, %p190
    %p192 = scmp.le.s32.totalorder 1, %s12
    %p193 = scmp.lt.s32.totalorder %s12, 3
    %p194 = pnand %p192, %p193
    %p195 = pneg %p194
    // Predicated region
    $region9: #{forward.3} parent=5 // pred_check
      _
    $region10: #{forward.3} parent=5 // pred_check_branch
      %197 = sbr.rel (%p194) target = $region12
    $region11: #{forward.3} parent=5 // pred_region
      %s198 = ssub.s32 %s12, 1
      // Predicated region
      $region13: #{forward.3} parent=11 // pred_check
        %p199 = pneg %p137
      $region14: #{forward.3} parent=11 // pred_check_branch
        %201 = sbr.rel (%p199) target = $region16
      $region15: #{forward.3} parent=11 // pred_region
        _
      $region16: #{forward.3} parent=11 // pred_fallthru
        _
      // Predicated region
      $region17: #{forward.3} parent=11 // pred_check
        %p202 = pneg %p158
      $region18: #{forward.3} parent=11 // pred_check_branch
        %204 = sbr.rel (%p202) target = $region20
      $region19: #{forward.3} parent=11 // pred_region
        _
      $region20: #{forward.3} parent=11 // pred_fallthru
        _
    $region12: #{forward.3} parent=5 // pred_fallthru
      _
    %p205 = scmp.lt.s32.totalorder %s12, 2
    // Predicated region
    $region21: #{forward.3} parent=5 // pred_check
      %p206 = pneg %p205
    $region22: #{forward.3} parent=5 // pred_check_branch
      %208 = sbr.rel (%p206) target = $region24
    $region23: #{forward.3} parent=5 // pred_region
      // Predicated region
      $region25: #{forward.3} parent=23 // pred_check
        %p209 = pneg %p32
      $region26: #{forward.3} parent=23 // pred_check_branch
        %211 = sbr.rel (%p209) target = $region28
      $region27: #{forward.3} parent=23 // pred_region
        %s212 = smul.u32 29, %s12
        %p213 = scmp.lt.s32.totalorder %s212, 57
        %s214 = scalar_select %p213, %s212, 57
        %s215 = smul.addr %s214, 4
        %s216 = scalar_lea.vmem %s0, %s215
        %s217 = smul.u32 29, %s12
      $region28: #{forward.3} parent=23 // pred_fallthru
        _
      // Predicated region
      $region29: #{forward.3} parent=23 // pred_check
        %p218 = pneg %p58
      $region30: #{forward.3} parent=23 // pred_check_branch
        %220 = sbr.rel (%p218) target = $region32
      $region31: #{forward.3} parent=23 // pred_region
        %s221 = smul.u32 29, %s12
        %p222 = scmp.lt.s32.totalorder %s221, 57
        %s223 = scalar_select %p222, %s221, 57
        %s224 = smul.addr %s223, 4
        %s225 = scalar_lea.vmem %s1, %s224
        %s226 = smul.u32 29, %s12
      $region32: #{forward.3} parent=23 // pred_fallthru
        _
      // Predicated region
      $region33: #{forward.3} parent=23 // pred_check
        %p227 = pneg %p84
      $region34: #{forward.3} parent=23 // pred_check_branch
        %229 = sbr.rel (%p227) target = $region36
      $region35: #{forward.3} parent=23 // pred_region
        %s230 = smul.u32 29, %s12
        %p231 = scmp.lt.s32.totalorder %s230, 57
        %s232 = scalar_select %p231, %s230, 57
        %s233 = smul.addr %s232, 4
        %s234 = scalar_lea.vmem %s2, %s233
        %s235 = smul.u32 29, %s12
      $region36: #{forward.3} parent=23 // pred_fallthru
        _
      // Predicated region
      $region37: #{forward.3} parent=23 // pred_check
        %p236 = pneg %p110
      $region38: #{forward.3} parent=23 // pred_check_branch
        %238 = sbr.rel (%p236) target = $region40
      $region39: #{forward.3} parent=23 // pred_region
        %s239 = smul.u32 29, %s12
        %p240 = scmp.lt.s32.totalorder %s239, 57
        %s241 = scalar_select %p240, %s239, 57
        %s242 = smul.addr %s241, 4
        %s243 = scalar_lea.vmem %s3, %s242
        %s244 = smul.u32 29, %s12
      $region40: #{forward.3} parent=23 // pred_fallthru
        _
    $region24: #{forward.3} parent=5 // pred_fallthru
      _
    %p245 = scmp.le.s32.totalorder 1, %s12
    %p246 = scmp.lt.s32.totalorder %s12, 3
    %p247 = pnand %p245, %p246
    %p248 = pneg %p247
    // Predicated region
    $region41: #{forward.3} parent=5 // pred_check
      _
    $region42: #{forward.3} parent=5 // pred_check_branch
      %250 = sbr.rel (%p247) target = $region44
    $region43: #{forward.3} parent=5 // pred_region
      %s251 = ssub.s32 %s12, 1
      %s252 = smul.u32 29, %s17
      %p253 = scmp.lt.s32.totalorder %s252, 57
      %s254 = scalar_select %p253, %s252, 57
      %s255 = smul.addr %s254, 4
      %s256 = scalar_lea.vmem %s0, %s255
      %p257 = pneg %p38
      %p258 = pneg %p35
      %s259 = smul.u32 29, %s17
      %p260 = scmp.lt.s32.totalorder %s259, 57
      %s261 = scalar_select %p260, %s259, 57
      %s262 = smul.addr %s261, 4
      %s263 = scalar_lea.vmem %s1, %s262
      %p264 = pneg %p64
      %p265 = pneg %p61
      %s266 = smul.u32 29, %s17
      %p267 = scmp.lt.s32.totalorder %s266, 57
      %s268 = scalar_select %p267, %s266, 57
      %s269 = smul.addr %s268, 4
      %s270 = scalar_lea.vmem %s2, %s269
      %p271 = pneg %p90
      %p272 = pneg %p87
      %s273 = smul.u32 29, %s17
      %p274 = scmp.lt.s32.totalorder %s273, 57
      %s275 = scalar_select %p274, %s273, 57
      %s276 = smul.addr %s275, 4
      %s277 = scalar_lea.vmem %s3, %s276
      %p278 = pneg %p116
      %p279 = pneg %p113
      %p280 = pneg %p137
      %p281 = pneg %p134
      %p282 = pneg %p158
      %p283 = pneg %p155
      %p284 = pneg %p184
      %p285 = pneg %p181
      %s286 = smul.u32 29, %s17
      %p287 = scmp.lt.s32.totalorder %s286, 57
      %s288 = scalar_select %p287, %s286, 57
      %s289 = smul.addr %s288, 4
      %s290 = scalar_lea.vmem %s6, %s289
      %s291 = smul.u32 29, %s17
      %p292 = scmp.lt.s32.totalorder %s291, 57
      %s293 = scalar_select %p292, %s291, 57
      %s294 = smul.addr %s293, 4
      %s295 = scalar_lea.vmem %s0, %s294
      %s296 = smul.u32 29, %s17
      %s297 = smul.u32 29, %s17
      %p298 = scmp.lt.s32.totalorder %s297, 57
      %s299 = scalar_select %p298, %s297, 57
      %s300 = smul.addr %s299, 4
      %s301 = scalar_lea.vmem %s1, %s300
      %s302 = smul.u32 29, %s17
      %s303 = smul.u32 29, %s17
      %p304 = scmp.lt.s32.totalorder %s303, 57
      %s305 = scalar_select %p304, %s303, 57
      %s306 = smul.addr %s305, 4
      %s307 = scalar_lea.vmem %s2, %s306
      %s308 = smul.u32 29, %s17
      %s309 = smul.u32 29, %s17
      %p310 = scmp.lt.s32.totalorder %s309, 57
      %s311 = scalar_select %p310, %s309, 57
      %s312 = smul.addr %s311, 4
      %s313 = scalar_lea.vmem %s3, %s312
      %s314 = smul.u32 29, %s17
      %s315 = smul.u32 29, %s17
      %p316 = scmp.lt.s32.totalorder %s315, 57
      %s317 = scalar_select %p316, %s315, 57
      %s318 = smul.addr %s317, 4
      %s319 = scalar_lea.vmem %s6, %s318
      %s320 = smul.u32 29, %s17
      %v322 = vld [vmem:[%s4] sm:$0xf]
      %v323 = vld [vmem:[%s4 + $0x4] sm:$0xf]
      %v324 = vld [vmem:[%s4 + $0x8] sm:$0xf]
      %v325 = vld [vmem:[%s4 + $0xc] sm:$0xf]
      %v326 = vld [vmem:[%s4 + $0x10] sm:$0xf]
      %v327 = vld [vmem:[%s4 + $0x14] sm:$0xf]
      %v328 = vld [vmem:[%s4 + $0x18] sm:$0xf]
      %v329 = vld [vmem:[%s4 + $0x1c] sm:$0xf]
      %v330 = vld [vmem:[%s4 + $0x20] sm:$0xf]
      %v331 = vld [vmem:[%s4 + $0x24] sm:$0xf]
      %v332 = vld [vmem:[%s4 + $0x28] sm:$0xf]
      %v333 = vld [vmem:[%s4 + $0x2c] sm:$0xf]
      %v334 = vld [vmem:[%s4 + $0x30] sm:$0xf]
      %v335 = vld [vmem:[%s4 + $0x34] sm:$0xf]
      %v336 = vld [vmem:[%s4 + $0x38] sm:$0xf]
      %v337 = vld [vmem:[%s4 + $0x3c] sm:$0xf]
      %v338 = vld [vmem:[%s5] sm:$0x1]
      %v339 = vld [vmem:[%s295] sm:$0xf]
      %v340 = vld [vmem:[%s295 + $0x4] sm:$0xf]
      %v341 = vld [vmem:[%s295 + $0x8] sm:$0xf]
      %v342 = vld [vmem:[%s295 + $0xc] sm:$0xf]
      %v343 = vld [vmem:[%s295 + $0x10] sm:$0xf]
      %v344 = vld [vmem:[%s295 + $0x14] sm:$0xf]
      %v345 = vld [vmem:[%s295 + $0x18] sm:$0xf]
      %v346 = vld [vmem:[%s295 + $0x1c] sm:$0xf]
      %v347 = vld [vmem:[%s295 + $0x20] sm:$0xf]
      %v348 = vld [vmem:[%s295 + $0x24] sm:$0xf]
      %v349 = vld [vmem:[%s295 + $0x28] sm:$0xf]
      %v350 = vld [vmem:[%s295 + $0x2c] sm:$0xf]
      %v351 = vld [vmem:[%s295 + $0x30] sm:$0xf]
      %v352 = vld [vmem:[%s295 + $0x34] sm:$0xf]
      %v353 = vld [vmem:[%s295 + $0x38] sm:$0xf]
      %v354 = vld [vmem:[%s295 + $0x3c] sm:$0xf]
      %v355 = vld [vmem:[%s295 + $0x40] sm:$0xf]
      %v356 = vld [vmem:[%s295 + $0x44] sm:$0xf]
      %v357 = vld [vmem:[%s295 + $0x48] sm:$0xf]
      %v358 = vld [vmem:[%s295 + $0x4c] sm:$0xf]
      %v359 = vld [vmem:[%s295 + $0x50] sm:$0xf]
      %v360 = vld [vmem:[%s295 + $0x54] sm:$0xf]
      %v361 = vld [vmem:[%s295 + $0x58] sm:$0xf]
      %v362 = vld [vmem:[%s295 + $0x5c] sm:$0xf]
      %v363 = vld [vmem:[%s295 + $0x60] sm:$0xf]
      %v364 = vld [vmem:[%s295 + $0x64] sm:$0xf]
      %v365 = vld [vmem:[%s295 + $0x68] sm:$0xf]
      %v366 = vld [vmem:[%s295 + $0x6c] sm:$0xf]
      %v367 = vld [vmem:[%s295 + $0x70] sm:$0xf]
      %v369 = vlaneseq
      %v370 = vshrl.u32 %v369, 7
      %v371 = vsub.s32 0, %v370
      %v372 = vrot.slane %v338, %v371
      %v403 = vunpack.c.l.b16 %v339
      %v404 = vunpack.c.l.b16 %v340
      %v405 = vunpack.c.l.b16 %v341
      %v406 = vunpack.c.l.b16 %v342
      %v407 = vunpack.c.l.b16 %v343
      %v408 = vunpack.c.l.b16 %v344
      %v409 = vunpack.c.l.b16 %v345
      %v410 = vunpack.c.l.b16 %v346
      %v411 = vunpack.c.l.b16 %v347
      %v412 = vunpack.c.l.b16 %v348
      %v413 = vunpack.c.l.b16 %v349
      %v414 = vunpack.c.l.b16 %v350
      %v415 = vunpack.c.l.b16 %v351
      %v416 = vunpack.c.l.b16 %v352
      %v417 = vunpack.c.l.b16 %v353
      %v418 = vunpack.c.l.b16 %v354
      %v419 = vunpack.c.l.b16 %v355
      %v420 = vunpack.c.l.b16 %v356
      %v421 = vunpack.c.l.b16 %v357
      %v422 = vunpack.c.l.b16 %v358
      %v423 = vunpack.c.l.b16 %v359
      %v424 = vunpack.c.l.b16 %v360
      %v425 = vunpack.c.l.b16 %v361
      %v426 = vunpack.c.l.b16 %v362
      %v427 = vunpack.c.l.b16 %v363
      %v428 = vunpack.c.l.b16 %v364
      %v429 = vunpack.c.l.b16 %v365
      %v430 = vunpack.c.l.b16 %v366
      %v431 = vunpack.c.l.b16 %v367
      %v432 = vpack.c.b16 %v404, %v403
      %v433 = vpack.c.b16 %v406, %v405
      %v434 = vpack.c.b16 %v408, %v407
      %v435 = vpack.c.b16 %v410, %v409
      %v436 = vpack.c.b16 %v412, %v411
      %v437 = vpack.c.b16 %v414, %v413
      %v438 = vpack.c.b16 %v416, %v415
      %v439 = vpack.c.b16 %v418, %v417
      %v440 = vpack.c.b16 %v420, %v419
      %v441 = vpack.c.b16 %v422, %v421
      %v442 = vpack.c.b16 %v424, %v423
      %v443 = vpack.c.b16 %v426, %v425
      %v444 = vpack.c.b16 %v428, %v427
      %v445 = vpack.c.b16 %v430, %v429
      %v446 = vpack.c.b16 %v431, %v431
      %v478 = vunpack.c.l.b16 %v322
      %v479 = vunpack.c.l.b16 %v323
      %v480 = vunpack.c.l.b16 %v324
      %v481 = vunpack.c.l.b16 %v325
      %v482 = vunpack.c.l.b16 %v326
      %v483 = vunpack.c.l.b16 %v327
      %v484 = vunpack.c.l.b16 %v328
      %v485 = vunpack.c.l.b16 %v329
      %v486 = vunpack.c.l.b16 %v330
      %v487 = vunpack.c.l.b16 %v331
      %v488 = vunpack.c.l.b16 %v332
      %v489 = vunpack.c.l.b16 %v333
      %v490 = vunpack.c.l.b16 %v334
      %v491 = vunpack.c.l.b16 %v335
      %v492 = vunpack.c.l.b16 %v336
      %v493 = vunpack.c.l.b16 %v337
      %v494 = vpack.c.b16 %v479, %v478
      %v495 = vpack.c.b16 %v481, %v480
      %v496 = vpack.c.b16 %v483, %v482
      %v497 = vpack.c.b16 %v485, %v484
      %v498 = vpack.c.b16 %v487, %v486
      %v499 = vpack.c.b16 %v489, %v488
      %v500 = vpack.c.b16 %v491, %v490
      %v501 = vpack.c.b16 %v493, %v492
      %510 = vmatprep.subr.bf16.mxu0 0
      %511 = vmatpush1.bf16.msra.mxu0 %v494
      %512 = vmatprep.subr.bf16.mxu0 0
      %513 = vmatpush1.bf16.msra.mxu0 %v495
      %514 = vmatprep.subr.bf16.mxu0 0
      %515 = vmatpush1.bf16.msra.mxu0 %v496
      %516 = vmatprep.subr.bf16.mxu0 0
      %517 = vmatpush1.bf16.msra.mxu0 %v497
      %518 = vmatprep.subr.bf16.mxu0 0
      %519 = vmatpush1.bf16.msra.mxu0 %v498
      %520 = vmatprep.subr.bf16.mxu0 0
      %521 = vmatpush1.bf16.msra.mxu0 %v499
      %522 = vmatprep.subr.bf16.mxu0 0
      %523 = vmatpush1.bf16.msra.mxu0 %v500
      %524 = vmatprep.subr.bf16.mxu0 0
      %525 = vmatpush1.bf16.msra.mxu0 %v501
      %526 = vmatprep.subr.bf16.mxu0 0
      %527 = vmatpush1.bf16.msra.mxu0 0
      %528 = vmatprep.subr.bf16.mxu0 0
      %529 = vmatpush1.bf16.msra.mxu0 0
      %530 = vmatprep.subr.bf16.mxu0 0
      %531 = vmatpush1.bf16.msra.mxu0 0
      %532 = vmatprep.subr.bf16.mxu0 0
      %533 = vmatpush1.bf16.msra.mxu0 0
      %534 = vmatprep.subr.bf16.mxu0 0
      %535 = vmatpush1.bf16.msra.mxu0 0
      %536 = vmatprep.subr.bf16.mxu0 0
      %537 = vmatpush1.bf16.msra.mxu0 0
      %538 = vmatprep.subr.bf16.mxu0 0
      %539 = vmatpush1.bf16.msra.mxu0 0
      %540 = vmatprep.subr.bf16.mxu0 0
      %541 = vmatpush1.bf16.msra.mxu0 0
      %542 = vmatprep.mubr.bf16.mxu0 0
      %543 = vmatmul.mubr.bf16.gmra.mrb[0].mxu0 %v432
      %v544 = vpop.f32.mrb[0].mxu0
      %v545 = vadd.f32 %v372, %v544
      %v546 = vpop.f32.mrb[0].mxu0
      %v547 = vpop.f32.mrb[0].mxu0
      %v548 = vadd.f32 %v372, %v547
      %v549 = vpop.f32.mrb[0].mxu0
      %550 = vmatprep.mubr.bf16.mxu0 0
      %551 = vmatmul.mubr.bf16.gmra.mrb[0].mxu0 %v433
      %v552 = vpop.f32.mrb[0].mxu0
      %v553 = vadd.f32 %v372, %v552
      %v554 = vpop.f32.mrb[0].mxu0
      %v555 = vpop.f32.mrb[0].mxu0
      %v556 = vadd.f32 %v372, %v555
      %v557 = vpop.f32.mrb[0].mxu0
      %558 = vmatprep.mubr.bf16.mxu0 0
      %559 = vmatmul.mubr.bf16.gmra.mrb[0].mxu0 %v434
      %v560 = vpop.f32.mrb[0].mxu0
      %v561 = vadd.f32 %v372, %v560
      %v562 = vpop.f32.mrb[0].mxu0
      %v563 = vpop.f32.mrb[0].mxu0
      %v564 = vadd.f32 %v372, %v563
      %v565 = vpop.f32.mrb[0].mxu0
      %566 = vmatprep.mubr.bf16.mxu0 0
      %567 = vmatmul.mubr.bf16.gmra.mrb[0].mxu0 %v435
      %v568 = vpop.f32.mrb[0].mxu0
      %v569 = vadd.f32 %v372, %v568
      %v570 = vpop.f32.mrb[0].mxu0
      %v571 = vpop.f32.mrb[0].mxu0
      %v572 = vadd.f32 %v372, %v571
      %v573 = vpop.f32.mrb[0].mxu0
      %574 = vmatprep.mubr.bf16.mxu0 0
      %575 = vmatmul.mubr.bf16.gmra.mrb[0].mxu0 %v436
      %v576 = vpop.f32.mrb[0].mxu0
      %v577 = vadd.f32 %v372, %v576
      %v578 = vpop.f32.mrb[0].mxu0
      %v579 = vpop.f32.mrb[0].mxu0
      %v580 = vadd.f32 %v372, %v579
      %v581 = vpop.f32.mrb[0].mxu0
      %582 = vmatprep.mubr.bf16.mxu0 0
      %583 = vmatmul.mubr.bf16.gmra.mrb[0].mxu0 %v437
      %v584 = vpop.f32.mrb[0].mxu0
      %v585 = vadd.f32 %v372, %v584
      %v586 = vpop.f32.mrb[0].mxu0
      %v587 = vpop.f32.mrb[0].mxu0
      %v588 = vadd.f32 %v372, %v587
      %v589 = vpop.f32.mrb[0].mxu0
      %590 = vmatprep.mubr.bf16.mxu0 0
      %591 = vmatmul.mubr.bf16.gmra.mrb[0].mxu0 %v438
      %v592 = vpop.f32.mrb[0].mxu0
      %v593 = vadd.f32 %v372, %v592
      %v594 = vpop.f32.mrb[0].mxu0
      %v595 = vpop.f32.mrb[0].mxu0
      %v596 = vadd.f32 %v372, %v595
      %v597 = vpop.f32.mrb[0].mxu0
      %598 = vmatprep.mubr.bf16.mxu0 0
      %599 = vmatmul.mubr.bf16.gmra.mrb[0].mxu0 %v439
      %v600 = vpop.f32.mrb[0].mxu0
      %v601 = vadd.f32 %v372, %v600
      %v602 = vpop.f32.mrb[0].mxu0
      %v603 = vpop.f32.mrb[0].mxu0
      %v604 = vadd.f32 %v372, %v603
      %v605 = vpop.f32.mrb[0].mxu0
      %606 = vmatprep.mubr.bf16.mxu0 0
      %607 = vmatmul.mubr.bf16.gmra.mrb[0].mxu0 %v440
      %v608 = vpop.f32.mrb[0].mxu0
      %v609 = vadd.f32 %v372, %v608
      %v610 = vpop.f32.mrb[0].mxu0
      %v611 = vpop.f32.mrb[0].mxu0
      %v612 = vadd.f32 %v372, %v611
      %v613 = vpop.f32.mrb[0].mxu0
      %614 = vmatprep.mubr.bf16.mxu0 0
      %615 = vmatmul.mubr.bf16.gmra.mrb[0].mxu0 %v441
      %v616 = vpop.f32.mrb[0].mxu0
      %v617 = vadd.f32 %v372, %v616
      %v618 = vpop.f32.mrb[0].mxu0
      %v619 = vpop.f32.mrb[0].mxu0
      %v620 = vadd.f32 %v372, %v619
      %v621 = vpop.f32.mrb[0].mxu0
      %622 = vmatprep.mubr.bf16.mxu0 0
      %623 = vmatmul.mubr.bf16.gmra.mrb[0].mxu0 %v442
      %v624 = vpop.f32.mrb[0].mxu0
      %v625 = vadd.f32 %v372, %v624
      %v626 = vpop.f32.mrb[0].mxu0
      %v627 = vpop.f32.mrb[0].mxu0
      %v628 = vadd.f32 %v372, %v627
      %v629 = vpop.f32.mrb[0].mxu0
      %630 = vmatprep.mubr.bf16.mxu0 0
      %631 = vmatmul.mubr.bf16.gmra.mrb[0].mxu0 %v443
      %v632 = vpop.f32.mrb[0].mxu0
      %v633 = vadd.f32 %v372, %v632
      %v634 = vpop.f32.mrb[0].mxu0
      %v635 = vpop.f32.mrb[0].mxu0
      %v636 = vadd.f32 %v372, %v635
      %v637 = vpop.f32.mrb[0].mxu0
      %638 = vmatprep.mubr.bf16.mxu0 0
      %639 = vmatmul.mubr.bf16.gmra.mrb[0].mxu0 %v444
      %v640 = vpop.f32.mrb[0].mxu0
      %v641 = vadd.f32 %v372, %v640
      %v642 = vpop.f32.mrb[0].mxu0
      %v643 = vpop.f32.mrb[0].mxu0
      %v644 = vadd.f32 %v372, %v643
      %v645 = vpop.f32.mrb[0].mxu0
      %646 = vmatprep.mubr.bf16.mxu0 0
      %647 = vmatmul.mubr.bf16.gmra.mrb[0].mxu0 %v445
      %v648 = vpop.f32.mrb[0].mxu0
      %v649 = vadd.f32 %v372, %v648
      %v650 = vpop.f32.mrb[0].mxu0
      %v651 = vpop.f32.mrb[0].mxu0
      %v652 = vadd.f32 %v372, %v651
      %v653 = vpop.f32.mrb[0].mxu0
      %654 = vmatprep.mubr.bf16.mxu0 0
      %655 = vmatmul.mubr.bf16.gmra.mrb[0].mxu0 %v446
      %v656 = vpop.f32.mrb[0].mxu0
      %v657 = vadd.f32 %v372, %v656
      %v658 = vpop.f32.mrb[0].mxu0
      %v659 = vpop.f32.mrb[0].mxu0
      %v660 = vpop.f32.mrb[0].mxu0
      %661 = vdwg.mxu0
      %v662 = vmax.f32 %v545, 0.0
      %v663 = vmax.f32 %v548, 0.0
      %v664 = vmax.f32 %v553, 0.0
      %v665 = vmax.f32 %v556, 0.0
      %v666 = vmax.f32 %v561, 0.0
      %v667 = vmax.f32 %v564, 0.0
      %v668 = vmax.f32 %v569, 0.0
      %v669 = vmax.f32 %v572, 0.0
      %v670 = vmax.f32 %v577, 0.0
      %v671 = vmax.f32 %v580, 0.0
      %v672 = vmax.f32 %v585, 0.0
      %v673 = vmax.f32 %v588, 0.0
      %v674 = vmax.f32 %v593, 0.0
      %v675 = vmax.f32 %v596, 0.0
      %v676 = vmax.f32 %v601, 0.0
      %v677 = vmax.f32 %v604, 0.0
      %v678 = vmax.f32 %v609, 0.0
      %v679 = vmax.f32 %v612, 0.0
      %v680 = vmax.f32 %v617, 0.0
      %v681 = vmax.f32 %v620, 0.0
      %v682 = vmax.f32 %v625, 0.0
      %v683 = vmax.f32 %v628, 0.0
      %v684 = vmax.f32 %v633, 0.0
      %v685 = vmax.f32 %v636, 0.0
      %v686 = vmax.f32 %v641, 0.0
      %v687 = vmax.f32 %v644, 0.0
      %v688 = vmax.f32 %v649, 0.0
      %v689 = vmax.f32 %v652, 0.0
      %v690 = vmax.f32 %v657, 0.0
      %v691 = vld [vmem:[%s301] sm:$0xf]
      %v692 = vld [vmem:[%s301 + $0x4] sm:$0xf]
      %v693 = vld [vmem:[%s301 + $0x8] sm:$0xf]
      %v694 = vld [vmem:[%s301 + $0xc] sm:$0xf]
      %v695 = vld [vmem:[%s301 + $0x10] sm:$0xf]
      %v696 = vld [vmem:[%s301 + $0x14] sm:$0xf]
      %v697 = vld [vmem:[%s301 + $0x18] sm:$0xf]
      %v698 = vld [vmem:[%s301 + $0x1c] sm:$0xf]
      %v699 = vld [vmem:[%s301 + $0x20] sm:$0xf]
      %v700 = vld [vmem:[%s301 + $0x24] sm:$0xf]
      %v701 = vld [vmem:[%s301 + $0x28] sm:$0xf]
      %v702 = vld [vmem:[%s301 + $0x2c] sm:$0xf]
      %v703 = vld [vmem:[%s301 + $0x30] sm:$0xf]
      %v704 = vld [vmem:[%s301 + $0x34] sm:$0xf]
      %v705 = vld [vmem:[%s301 + $0x38] sm:$0xf]
      %v706 = vld [vmem:[%s301 + $0x3c] sm:$0xf]
      %v707 = vld [vmem:[%s301 + $0x40] sm:$0xf]
      %v708 = vld [vmem:[%s301 + $0x44] sm:$0xf]
      %v709 = vld [vmem:[%s301 + $0x48] sm:$0xf]
      %v710 = vld [vmem:[%s301 + $0x4c] sm:$0xf]
      %v711 = vld [vmem:[%s301 + $0x50] sm:$0xf]
      %v712 = vld [vmem:[%s301 + $0x54] sm:$0xf]
      %v713 = vld [vmem:[%s301 + $0x58] sm:$0xf]
      %v714 = vld [vmem:[%s301 + $0x5c] sm:$0xf]
      %v715 = vld [vmem:[%s301 + $0x60] sm:$0xf]
      %v716 = vld [vmem:[%s301 + $0x64] sm:$0xf]
      %v717 = vld [vmem:[%s301 + $0x68] sm:$0xf]
      %v718 = vld [vmem:[%s301 + $0x6c] sm:$0xf]
      %v719 = vld [vmem:[%s301 + $0x70] sm:$0xf]
      %v749 = vunpack.c.l.b16 %v691
      %v750 = vunpack.c.l.b16 %v692
      %v751 = vunpack.c.l.b16 %v693
      %v752 = vunpack.c.l.b16 %v694
      %v753 = vunpack.c.l.b16 %v695
      %v754 = vunpack.c.l.b16 %v696
      %v755 = vunpack.c.l.b16 %v697
      %v756 = vunpack.c.l.b16 %v698
      %v757 = vunpack.c.l.b16 %v699
      %v758 = vunpack.c.l.b16 %v700
      %v759 = vunpack.c.l.b16 %v701
      %v760 = vunpack.c.l.b16 %v702
      %v761 = vunpack.c.l.b16 %v703
      %v762 = vunpack.c.l.b16 %v704
      %v763 = vunpack.c.l.b16 %v705
      %v764 = vunpack.c.l.b16 %v706
      %v765 = vunpack.c.l.b16 %v707
      %v766 = vunpack.c.l.b16 %v708
      %v767 = vunpack.c.l.b16 %v709
      %v768 = vunpack.c.l.b16 %v710
      %v769 = vunpack.c.l.b16 %v711
      %v770 = vunpack.c.l.b16 %v712
      %v771 = vunpack.c.l.b16 %v713
      %v772 = vunpack.c.l.b16 %v714
      %v773 = vunpack.c.l.b16 %v715
      %v774 = vunpack.c.l.b16 %v716
      %v775 = vunpack.c.l.b16 %v717
      %v776 = vunpack.c.l.b16 %v718
      %v777 = vunpack.c.l.b16 %v719
      %v778 = vpack.c.b16 %v750, %v749
      %v779 = vpack.c.b16 %v752, %v751
      %v780 = vpack.c.b16 %v754, %v753
      %v781 = vpack.c.b16 %v756, %v755
      %v782 = vpack.c.b16 %v758, %v757
      %v783 = vpack.c.b16 %v760, %v759
      %v784 = vpack.c.b16 %v762, %v761
      %v785 = vpack.c.b16 %v764, %v763
      %v786 = vpack.c.b16 %v766, %v765
      %v787 = vpack.c.b16 %v768, %v767
      %v788 = vpack.c.b16 %v770, %v769
      %v789 = vpack.c.b16 %v772, %v771
      %v790 = vpack.c.b16 %v774, %v773
      %v791 = vpack.c.b16 %v776, %v775
      %v792 = vpack.c.b16 %v777, %v777
      %808 = vmatprep.subr.bf16.mxu0 0
      %809 = vmatpush1.bf16.msra.mxu0 %v494
      %810 = vmatprep.subr.bf16.mxu0 0
      %811 = vmatpush1.bf16.msra.mxu0 %v495
      %812 = vmatprep.subr.bf16.mxu0 0
      %813 = vmatpush1.bf16.msra.mxu0 %v496
      %814 = vmatprep.subr.bf16.mxu0 0
      %815 = vmatpush1.bf16.msra.mxu0 %v497
      %816 = vmatprep.subr.bf16.mxu0 0
      %817 = vmatpush1.bf16.msra.mxu0 %v498
      %818 = vmatprep.subr.bf16.mxu0 0
      %819 = vmatpush1.bf16.msra.mxu0 %v499
      %820 = vmatprep.subr.bf16.mxu0 0
      %821 = vmatpush1.bf16.msra.mxu0 %v500
      %822 = vmatprep.subr.bf16.mxu0 0
      %823 = vmatpush1.bf16.msra.mxu0 %v501
      %824 = vmatprep.subr.bf16.mxu0 0
      %825 = vmatpush1.bf16.msra.mxu0 0
      %826 = vmatprep.subr.bf16.mxu0 0
      %827 = vmatpush1.bf16.msra.mxu0 0
      %828 = vmatprep.subr.bf16.mxu0 0
      %829 = vmatpush1.bf16.msra.mxu0 0
      %830 = vmatprep.subr.bf16.mxu0 0
      %831 = vmatpush1.bf16.msra.mxu0 0
      %832 = vmatprep.subr.bf16.mxu0 0
      %833 = vmatpush1.bf16.msra.mxu0 0
      %834 = vmatprep.subr.bf16.mxu0 0
      %835 = vmatpush1.bf16.msra.mxu0 0
      %836 = vmatprep.subr.bf16.mxu0 0
      %837 = vmatpush1.bf16.msra.mxu0 0
      %838 = vmatprep.subr.bf16.mxu0 0
      %839 = vmatpush1.bf16.msra.mxu0 0
      %840 = vmatprep.mubr.bf16.mxu0 0
      %841 = vmatmul.mubr.bf16.gmra.mrb[0].mxu0 %v778
      %v842 = vpop.f32.mrb[0].mxu0
      %v843 = vadd.f32 %v372, %v842
      %v844 = vpop.f32.mrb[0].mxu0
      %v845 = vpop.f32.mrb[0].mxu0
      %v846 = vadd.f32 %v372, %v845
      %v847 = vpop.f32.mrb[0].mxu0
      %848 = vmatprep.mubr.bf16.mxu0 0
      %849 = vmatmul.mubr.bf16.gmra.mrb[0].mxu0 %v779
      %v850 = vpop.f32.mrb[0].mxu0
      %v851 = vadd.f32 %v372, %v850
      %v852 = vpop.f32.mrb[0].mxu0
      %v853 = vpop.f32.mrb[0].mxu0
      %v854 = vadd.f32 %v372, %v853
      %v855 = vpop.f32.mrb[0].mxu0
      %856 = vmatprep.mubr.bf16.mxu0 0
      %857 = vmatmul.mubr.bf16.gmra.mrb[0].mxu0 %v780
      %v858 = vpop.f32.mrb[0].mxu0
      %v859 = vadd.f32 %v372, %v858
      %v860 = vpop.f32.mrb[0].mxu0
      %v861 = vpop.f32.mrb[0].mxu0
      %v862 = vadd.f32 %v372, %v861
      %v863 = vpop.f32.mrb[0].mxu0
      %864 = vmatprep.mubr.bf16.mxu0 0
      %865 = vmatmul.mubr.bf16.gmra.mrb[0].mxu0 %v781
      %v866 = vpop.f32.mrb[0].mxu0
      %v867 = vadd.f32 %v372, %v866
      %v868 = vpop.f32.mrb[0].mxu0
      %v869 = vpop.f32.mrb[0].mxu0
      %v870 = vadd.f32 %v372, %v869
      %v871 = vpop.f32.mrb[0].mxu0
      %872 = vmatprep.mubr.bf16.mxu0 0
      %873 = vmatmul.mubr.bf16.gmra.mrb[0].mxu0 %v782
      %v874 = vpop.f32.mrb[0].mxu0
      %v875 = vadd.f32 %v372, %v874
      %v876 = vpop.f32.mrb[0].mxu0
      %v877 = vpop.f32.mrb[0].mxu0
      %v878 = vadd.f32 %v372, %v877
      %v879 = vpop.f32.mrb[0].mxu0
      %880 = vmatprep.mubr.bf16.mxu0 0
      %881 = vmatmul.mubr.bf16.gmra.mrb[0].mxu0 %v783
      %v882 = vpop.f32.mrb[0].mxu0
      %v883 = vadd.f32 %v372, %v882
      %v884 = vpop.f32.mrb[0].mxu0
      %v885 = vpop.f32.mrb[0].mxu0
      %v886 = vadd.f32 %v372, %v885
      %v887 = vpop.f32.mrb[0].mxu0
      %888 = vmatprep.mubr.bf16.mxu0 0
      %889 = vmatmul.mubr.bf16.gmra.mrb[0].mxu0 %v784
      %v890 = vpop.f32.mrb[0].mxu0
      %v891 = vadd.f32 %v372, %v890
      %v892 = vpop.f32.mrb[0].mxu0
      %v893 = vpop.f32.mrb[0].mxu0
      %v894 = vadd.f32 %v372, %v893
      %v895 = vpop.f32.mrb[0].mxu0
      %896 = vmatprep.mubr.bf16.mxu0 0
      %897 = vmatmul.mubr.bf16.gmra.mrb[0].mxu0 %v785
      %v898 = vpop.f32.mrb[0].mxu0
      %v899 = vadd.f32 %v372, %v898
      %v900 = vpop.f32.mrb[0].mxu0
      %v901 = vpop.f32.mrb[0].mxu0
      %v902 = vadd.f32 %v372, %v901
      %v903 = vpop.f32.mrb[0].mxu0
      %904 = vmatprep.mubr.bf16.mxu0 0
      %905 = vmatmul.mubr.bf16.gmra.mrb[0].mxu0 %v786
      %v906 = vpop.f32.mrb[0].mxu0
      %v907 = vadd.f32 %v372, %v906
      %v908 = vpop.f32.mrb[0].mxu0
      %v909 = vpop.f32.mrb[0].mxu0
      %v910 = vadd.f32 %v372, %v909
      %v911 = vpop.f32.mrb[0].mxu0
      %912 = vmatprep.mubr.bf16.mxu0 0
      %913 = vmatmul.mubr.bf16.gmra.mrb[0].mxu0 %v787
      %v914 = vpop.f32.mrb[0].mxu0
      %v915 = vadd.f32 %v372, %v914
      %v916 = vpop.f32.mrb[0].mxu0
      %v917 = vpop.f32.mrb[0].mxu0
      %v918 = vadd.f32 %v372, %v917
      %v919 = vpop.f32.mrb[0].mxu0
      %920 = vmatprep.mubr.bf16.mxu0 0
      %921 = vmatmul.mubr.bf16.gmra.mrb[0].mxu0 %v788
      %v922 = vpop.f32.mrb[0].mxu0
      %v923 = vadd.f32 %v372, %v922
      %v924 = vpop.f32.mrb[0].mxu0
      %v925 = vpop.f32.mrb[0].mxu0
      %v926 = vadd.f32 %v372, %v925
      %v927 = vpop.f32.mrb[0].mxu0
      %928 = vmatprep.mubr.bf16.mxu0 0
      %929 = vmatmul.mubr.bf16.gmra.mrb[0].mxu0 %v789
      %v930 = vpop.f32.mrb[0].mxu0
      %v931 = vadd.f32 %v372, %v930
      %v932 = vpop.f32.mrb[0].mxu0
      %v933 = vpop.f32.mrb[0].mxu0
      %v934 = vadd.f32 %v372, %v933
      %v935 = vpop.f32.mrb[0].mxu0
      %936 = vmatprep.mubr.bf16.mxu0 0
      %937 = vmatmul.mubr.bf16.gmra.mrb[0].mxu0 %v790
      %v938 = vpop.f32.mrb[0].mxu0
      %v939 = vadd.f32 %v372, %v938
      %v940 = vpop.f32.mrb[0].mxu0
      %v941 = vpop.f32.mrb[0].mxu0
      %v942 = vadd.f32 %v372, %v941
      %v943 = vpop.f32.mrb[0].mxu0
      %944 = vmatprep.mubr.bf16.mxu0 0
      %945 = vmatmul.mubr.bf16.gmra.mrb[0].mxu0 %v791
      %v946 = vpop.f32.mrb[0].mxu0
      %v947 = vadd.f32 %v372, %v946
      %v948 = vpop.f32.mrb[0].mxu0
      %v949 = vpop.f32.mrb[0].mxu0
      %v950 = vadd.f32 %v372, %v949
      %v951 = vpop.f32.mrb[0].mxu0
      %952 = vmatprep.mubr.bf16.mxu0 0
      %953 = vmatmul.mubr.bf16.gmra.mrb[0].mxu0 %v792
      %v954 = vpop.f32.mrb[0].mxu0
      %v955 = vadd.f32 %v372, %v954
      %v956 = vpop.f32.mrb[0].mxu0
      %v957 = vpop.f32.mrb[0].mxu0
      %v958 = vpop.f32.mrb[0].mxu0
      %959 = vdwg.mxu0
      %v960 = vmax.f32 %v843, 0.0
      %v961 = vmax.f32 %v846, 0.0
      %v962 = vmax.f32 %v851, 0.0
      %v963 = vmax.f32 %v854, 0.0
      %v964 = vmax.f32 %v859, 0.0
      %v965 = vmax.f32 %v862, 0.0
      %v966 = vmax.f32 %v867, 0.0
      %v967 = vmax.f32 %v870, 0.0
      %v968 = vmax.f32 %v875, 0.0
      %v969 = vmax.f32 %v878, 0.0
      %v970 = vmax.f32 %v883, 0.0
      %v971 = vmax.f32 %v886, 0.0
      %v972 = vmax.f32 %v891, 0.0
      %v973 = vmax.f32 %v894, 0.0
      %v974 = vmax.f32 %v899, 0.0
      %v975 = vmax.f32 %v902, 0.0
      %v976 = vmax.f32 %v907, 0.0
      %v977 = vmax.f32 %v910, 0.0
      %v978 = vmax.f32 %v915, 0.0
      %v979 = vmax.f32 %v918, 0.0
      %v980 = vmax.f32 %v923, 0.0
      %v981 = vmax.f32 %v926, 0.0
      %v982 = vmax.f32 %v931, 0.0
      %v983 = vmax.f32 %v934, 0.0
      %v984 = vmax.f32 %v939, 0.0
      %v985 = vmax.f32 %v942, 0.0
      %v986 = vmax.f32 %v947, 0.0
      %v987 = vmax.f32 %v950, 0.0
      %v988 = vmax.f32 %v955, 0.0
      %v989 = vmax.f32 %v662, %v960
      %v990 = vmax.f32 %v663, %v961
      %v991 = vmax.f32 %v664, %v962
      %v992 = vmax.f32 %v665, %v963
      %v993 = vmax.f32 %v666, %v964
      %v994 = vmax.f32 %v667, %v965
      %v995 = vmax.f32 %v668, %v966
      %v996 = vmax.f32 %v669, %v967
      %v997 = vmax.f32 %v670, %v968
      %v998 = vmax.f32 %v671, %v969
      %v999 = vmax.f32 %v672, %v970
      %v1000 = vmax.f32 %v673, %v971
      %v1001 = vmax.f32 %v674, %v972
      %v1002 = vmax.f32 %v675, %v973
      %v1003 = vmax.f32 %v676, %v974
      %v1004 = vmax.f32 %v677, %v975
      %v1005 = vmax.f32 %v678, %v976
      %v1006 = vmax.f32 %v679, %v977
      %v1007 = vmax.f32 %v680, %v978
      %v1008 = vmax.f32 %v681, %v979
      %v1009 = vmax.f32 %v682, %v980
      %v1010 = vmax.f32 %v683, %v981
      %v1011 = vmax.f32 %v684, %v982
      %v1012 = vmax.f32 %v685, %v983
      %v1013 = vmax.f32 %v686, %v984
      %v1014 = vmax.f32 %v687, %v985
      %v1015 = vmax.f32 %v688, %v986
      %v1016 = vmax.f32 %v689, %v987
      %v1017 = vmax.f32 %v690, %v988
      %v1018 = vld [vmem:[%s307] sm:$0xf]
      %v1019 = vld [vmem:[%s307 + $0x4] sm:$0xf]
      %v1020 = vld [vmem:[%s307 + $0x8] sm:$0xf]
      %v1021 = vld [vmem:[%s307 + $0xc] sm:$0xf]
      %v1022 = vld [vmem:[%s307 + $0x10] sm:$0xf]
      %v1023 = vld [vmem:[%s307 + $0x14] sm:$0xf]
      %v1024 = vld [vmem:[%s307 + $0x18] sm:$0xf]
      %v1025 = vld [vmem:[%s307 + $0x1c] sm:$0xf]
      %v1026 = vld [vmem:[%s307 + $0x20] sm:$0xf]
      %v1027 = vld [vmem:[%s307 + $0x24] sm:$0xf]
      %v1028 = vld [vmem:[%s307 + $0x28] sm:$0xf]
      %v1029 = vld [vmem:[%s307 + $0x2c] sm:$0xf]
      %v1030 = vld [vmem:[%s307 + $0x30] sm:$0xf]
      %v1031 = vld [vmem:[%s307 + $0x34] sm:$0xf]
      %v1032 = vld [vmem:[%s307 + $0x38] sm:$0xf]
      %v1033 = vld [vmem:[%s307 + $0x3c] sm:$0xf]
      %v1034 = vld [vmem:[%s307 + $0x40] sm:$0xf]
      %v1035 = vld [vmem:[%s307 + $0x44] sm:$0xf]
      %v1036 = vld [vmem:[%s307 + $0x48] sm:$0xf]
      %v1037 = vld [vmem:[%s307 + $0x4c] sm:$0xf]
      %v1038 = vld [vmem:[%s307 + $0x50] sm:$0xf]
      %v1039 = vld [vmem:[%s307 + $0x54] sm:$0xf]
      %v1040 = vld [vmem:[%s307 + $0x58] sm:$0xf]
      %v1041 = vld [vmem:[%s307 + $0x5c] sm:$0xf]
      %v1042 = vld [vmem:[%s307 + $0x60] sm:$0xf]
      %v1043 = vld [vmem:[%s307 + $0x64] sm:$0xf]
      %v1044 = vld [vmem:[%s307 + $0x68] sm:$0xf]
      %v1045 = vld [vmem:[%s307 + $0x6c] sm:$0xf]
      %v1046 = vld [vmem:[%s307 + $0x70] sm:$0xf]
      %v1076 = vunpack.c.l.b16 %v1018
      %v1077 = vunpack.c.l.b16 %v1019
      %v1078 = vunpack.c.l.b16 %v1020
      %v1079 = vunpack.c.l.b16 %v1021
      %v1080 = vunpack.c.l.b16 %v1022
      %v1081 = vunpack.c.l.b16 %v1023
      %v1082 = vunpack.c.l.b16 %v1024
      %v1083 = vunpack.c.l.b16 %v1025
      %v1084 = vunpack.c.l.b16 %v1026
      %v1085 = vunpack.c.l.b16 %v1027
      %v1086 = vunpack.c.l.b16 %v1028
      %v1087 = vunpack.c.l.b16 %v1029
      %v1088 = vunpack.c.l.b16 %v1030
      %v1089 = vunpack.c.l.b16 %v1031
      %v1090 = vunpack.c.l.b16 %v1032
      %v1091 = vunpack.c.l.b16 %v1033
      %v1092 = vunpack.c.l.b16 %v1034
      %v1093 = vunpack.c.l.b16 %v1035
      %v1094 = vunpack.c.l.b16 %v1036
      %v1095 = vunpack.c.l.b16 %v1037
      %v1096 = vunpack.c.l.b16 %v1038
      %v1097 = vunpack.c.l.b16 %v1039
      %v1098 = vunpack.c.l.b16 %v1040
      %v1099 = vunpack.c.l.b16 %v1041
      %v1100 = vunpack.c.l.b16 %v1042
      %v1101 = vunpack.c.l.b16 %v1043
      %v1102 = vunpack.c.l.b16 %v1044
      %v1103 = vunpack.c.l.b16 %v1045
      %v1104 = vunpack.c.l.b16 %v1046
      %v1105 = vpack.c.b16 %v1077, %v1076
      %v1106 = vpack.c.b16 %v1079, %v1078
      %v1107 = vpack.c.b16 %v1081, %v1080
      %v1108 = vpack.c.b16 %v1083, %v1082
      %v1109 = vpack.c.b16 %v1085, %v1084
      %v1110 = vpack.c.b16 %v1087, %v1086
      %v1111 = vpack.c.b16 %v1089, %v1088
      %v1112 = vpack.c.b16 %v1091, %v1090
      %v1113 = vpack.c.b16 %v1093, %v1092
      %v1114 = vpack.c.b16 %v1095, %v1094
      %v1115 = vpack.c.b16 %v1097, %v1096
      %v1116 = vpack.c.b16 %v1099, %v1098
      %v1117 = vpack.c.b16 %v1101, %v1100
      %v1118 = vpack.c.b16 %v1103, %v1102
      %v1119 = vpack.c.b16 %v1104, %v1104
      %1135 = vmatprep.subr.bf16.mxu0 0
      %1136 = vmatpush1.bf16.msra.mxu0 %v494
      %1137 = vmatprep.subr.bf16.mxu0 0
      %1138 = vmatpush1.bf16.msra.mxu0 %v495
      %1139 = vmatprep.subr.bf16.mxu0 0
      %1140 = vmatpush1.bf16.msra.mxu0 %v496
      %1141 = vmatprep.subr.bf16.mxu0 0
      %1142 = vmatpush1.bf16.msra.mxu0 %v497
      %1143 = vmatprep.subr.bf16.mxu0 0
      %1144 = vmatpush1.bf16.msra.mxu0 %v498
      %1145 = vmatprep.subr.bf16.mxu0 0
      %1146 = vmatpush1.bf16.msra.mxu0 %v499
      %1147 = vmatprep.subr.bf16.mxu0 0
      %1148 = vmatpush1.bf16.msra.mxu0 %v500
      %1149 = vmatprep.subr.bf16.mxu0 0
      %1150 = vmatpush1.bf16.msra.mxu0 %v501
      %1151 = vmatprep.subr.bf16.mxu0 0
      %1152 = vmatpush1.bf16.msra.mxu0 0
      %1153 = vmatprep.subr.bf16.mxu0 0
      %1154 = vmatpush1.bf16.msra.mxu0 0
      %1155 = vmatprep.subr.bf16.mxu0 0
      %1156 = vmatpush1.bf16.msra.mxu0 0
      %1157 = vmatprep.subr.bf16.mxu0 0
      %1158 = vmatpush1.bf16.msra.mxu0 0
      %1159 = vmatprep.subr.bf16.mxu0 0
      %1160 = vmatpush1.bf16.msra.mxu0 0
      %1161 = vmatprep.subr.bf16.mxu0 0
      %1162 = vmatpush1.bf16.msra.mxu0 0
      %1163 = vmatprep.subr.bf16.mxu0 0
      %1164 = vmatpush1.bf16.msra.mxu0 0
      %1165 = vmatprep.subr.bf16.mxu0 0
      %1166 = vmatpush1.bf16.msra.mxu0 0
      %1167 = vmatprep.mubr.bf16.mxu0 0
      %1168 = vmatmul.mubr.bf16.gmra.mrb[0].mxu0 %v1105
      %v1169 = vpop.f32.mrb[0].mxu0
      %v1170 = vadd.f32 %v372, %v1169
      %v1171 = vpop.f32.mrb[0].mxu0
      %v1172 = vpop.f32.mrb[0].mxu0
      %v1173 = vadd.f32 %v372, %v1172
      %v1174 = vpop.f32.mrb[0].mxu0
      %1175 = vmatprep.mubr.bf16.mxu0 0
      %1176 = vmatmul.mubr.bf16.gmra.mrb[0].mxu0 %v1106
      %v1177 = vpop.f32.mrb[0].mxu0
      %v1178 = vadd.f32 %v372, %v1177
      %v1179 = vpop.f32.mrb[0].mxu0
      %v1180 = vpop.f32.mrb[0].mxu0
      %v1181 = vadd.f32 %v372, %v1180
      %v1182 = vpop.f32.mrb[0].mxu0
      %1183 = vmatprep.mubr.bf16.mxu0 0
      %1184 = vmatmul.mubr.bf16.gmra.mrb[0].mxu0 %v1107
      %v1185 = vpop.f32.mrb[0].mxu0
      %v1186 = vadd.f32 %v372, %v1185
      %v1187 = vpop.f32.mrb[0].mxu0
      %v1188 = vpop.f32.mrb[0].mxu0
      %v1189 = vadd.f32 %v372, %v1188
      %v1190 = vpop.f32.mrb[0].mxu0
      %1191 = vmatprep.mubr.bf16.mxu0 0
      %1192 = vmatmul.mubr.bf16.gmra.mrb[0].mxu0 %v1108
      %v1193 = vpop.f32.mrb[0].mxu0
      %v1194 = vadd.f32 %v372, %v1193
      %v1195 = vpop.f32.mrb[0].mxu0
      %v1196 = vpop.f32.mrb[0].mxu0
      %v1197 = vadd.f32 %v372, %v1196
      %v1198 = vpop.f32.mrb[0].mxu0
      %1199 = vmatprep.mubr.bf16.mxu0 0
      %1200 = vmatmul.mubr.bf16.gmra.mrb[0].mxu0 %v1109
      %v1201 = vpop.f32.mrb[0].mxu0
      %v1202 = vadd.f32 %v372, %v1201
      %v1203 = vpop.f32.mrb[0].mxu0
      %v1204 = vpop.f32.mrb[0].mxu0
      %v1205 = vadd.f32 %v372, %v1204
      %v1206 = vpop.f32.mrb[0].mxu0
      %1207 = vmatprep.mubr.bf16.mxu0 0
      %1208 = vmatmul.mubr.bf16.gmra.mrb[0].mxu0 %v1110
      %v1209 = vpop.f32.mrb[0].mxu0
      %v1210 = vadd.f32 %v372, %v1209
      %v1211 = vpop.f32.mrb[0].mxu0
      %v1212 = vpop.f32.mrb[0].mxu0
      %v1213 = vadd.f32 %v372, %v1212
      %v1214 = vpop.f32.mrb[0].mxu0
      %1215 = vmatprep.mubr.bf16.mxu0 0
      %1216 = vmatmul.mubr.bf16.gmra.mrb[0].mxu0 %v1111
      %v1217 = vpop.f32.mrb[0].mxu0
      %v1218 = vadd.f32 %v372, %v1217
      %v1219 = vpop.f32.mrb[0].mxu0
      %v1220 = vpop.f32.mrb[0].mxu0
      %v1221 = vadd.f32 %v372, %v1220
      %v1222 = vpop.f32.mrb[0].mxu0
      %1223 = vmatprep.mubr.bf16.mxu0 0
      %1224 = vmatmul.mubr.bf16.gmra.mrb[0].mxu0 %v1112
      %v1225 = vpop.f32.mrb[0].mxu0
      %v1226 = vadd.f32 %v372, %v1225
      %v1227 = vpop.f32.mrb[0].mxu0
      %v1228 = vpop.f32.mrb[0].mxu0
      %v1229 = vadd.f32 %v372, %v1228
      %v1230 = vpop.f32.mrb[0].mxu0
      %1231 = vmatprep.mubr.bf16.mxu0 0
      %1232 = vmatmul.mubr.bf16.gmra.mrb[0].mxu0 %v1113
      %v1233 = vpop.f32.mrb[0].mxu0
      %v1234 = vadd.f32 %v372, %v1233
      %v1235 = vpop.f32.mrb[0].mxu0
      %v1236 = vpop.f32.mrb[0].mxu0
      %v1237 = vadd.f32 %v372, %v1236
      %v1238 = vpop.f32.mrb[0].mxu0
      %1239 = vmatprep.mubr.bf16.mxu0 0
      %1240 = vmatmul.mubr.bf16.gmra.mrb[0].mxu0 %v1114
      %v1241 = vpop.f32.mrb[0].mxu0
      %v1242 = vadd.f32 %v372, %v1241
      %v1243 = vpop.f32.mrb[0].mxu0
      %v1244 = vpop.f32.mrb[0].mxu0
      %v1245 = vadd.f32 %v372, %v1244
      %v1246 = vpop.f32.mrb[0].mxu0
      %1247 = vmatprep.mubr.bf16.mxu0 0
      %1248 = vmatmul.mubr.bf16.gmra.mrb[0].mxu0 %v1115
      %v1249 = vpop.f32.mrb[0].mxu0
      %v1250 = vadd.f32 %v372, %v1249
      %v1251 = vpop.f32.mrb[0].mxu0
      %v1252 = vpop.f32.mrb[0].mxu0
      %v1253 = vadd.f32 %v372, %v1252
      %v1254 = vpop.f32.mrb[0].mxu0
      %1255 = vmatprep.mubr.bf16.mxu0 0
      %1256 = vmatmul.mubr.bf16.gmra.mrb[0].mxu0 %v1116
      %v1257 = vpop.f32.mrb[0].mxu0
      %v1258 = vadd.f32 %v372, %v1257
      %v1259 = vpop.f32.mrb[0].mxu0
      %v1260 = vpop.f32.mrb[0].mxu0
      %v1261 = vadd.f32 %v372, %v1260
      %v1262 = vpop.f32.mrb[0].mxu0
      %1263 = vmatprep.mubr.bf16.mxu0 0
      %1264 = vmatmul.mubr.bf16.gmra.mrb[0].mxu0 %v1117
      %v1265 = vpop.f32.mrb[0].mxu0
      %v1266 = vadd.f32 %v372, %v1265
      %v1267 = vpop.f32.mrb[0].mxu0
      %v1268 = vpop.f32.mrb[0].mxu0
      %v1269 = vadd.f32 %v372, %v1268
      %v1270 = vpop.f32.mrb[0].mxu0
      %1271 = vmatprep.mubr.bf16.mxu0 0
      %1272 = vmatmul.mubr.bf16.gmra.mrb[0].mxu0 %v1118
      %v1273 = vpop.f32.mrb[0].mxu0
      %v1274 = vadd.f32 %v372, %v1273
      %v1275 = vpop.f32.mrb[0].mxu0
      %v1276 = vpop.f32.mrb[0].mxu0
      %v1277 = vadd.f32 %v372, %v1276
      %v1278 = vpop.f32.mrb[0].mxu0
      %1279 = vmatprep.mubr.bf16.mxu0 0
      %1280 = vmatmul.mubr.bf16.gmra.mrb[0].mxu0 %v1119
      %v1281 = vpop.f32.mrb[0].mxu0
      %v1282 = vadd.f32 %v372, %v1281
      %v1283 = vpop.f32.mrb[0].mxu0
      %v1284 = vpop.f32.mrb[0].mxu0
      %v1285 = vpop.f32.mrb[0].mxu0
      %1286 = vdwg.mxu0
      %v1287 = vmax.f32 %v1170, 0.0
      %v1288 = vmax.f32 %v1173, 0.0
      %v1289 = vmax.f32 %v1178, 0.0
      %v1290 = vmax.f32 %v1181, 0.0
      %v1291 = vmax.f32 %v1186, 0.0
      %v1292 = vmax.f32 %v1189, 0.0
      %v1293 = vmax.f32 %v1194, 0.0
      %v1294 = vmax.f32 %v1197, 0.0
      %v1295 = vmax.f32 %v1202, 0.0
      %v1296 = vmax.f32 %v1205, 0.0
      %v1297 = vmax.f32 %v1210, 0.0
      %v1298 = vmax.f32 %v1213, 0.0
      %v1299 = vmax.f32 %v1218, 0.0
      %v1300 = vmax.f32 %v1221, 0.0
      %v1301 = vmax.f32 %v1226, 0.0
      %v1302 = vmax.f32 %v1229, 0.0
      %v1303 = vmax.f32 %v1234, 0.0
      %v1304 = vmax.f32 %v1237, 0.0
      %v1305 = vmax.f32 %v1242, 0.0
      %v1306 = vmax.f32 %v1245, 0.0
      %v1307 = vmax.f32 %v1250, 0.0
      %v1308 = vmax.f32 %v1253, 0.0
      %v1309 = vmax.f32 %v1258, 0.0
      %v1310 = vmax.f32 %v1261, 0.0
      %v1311 = vmax.f32 %v1266, 0.0
      %v1312 = vmax.f32 %v1269, 0.0
      %v1313 = vmax.f32 %v1274, 0.0
      %v1314 = vmax.f32 %v1277, 0.0
      %v1315 = vmax.f32 %v1282, 0.0
      %v1316 = vld [vmem:[%s313] sm:$0xf]
      %v1317 = vld [vmem:[%s313 + $0x4] sm:$0xf]
      %v1318 = vld [vmem:[%s313 + $0x8] sm:$0xf]
      %v1319 = vld [vmem:[%s313 + $0xc] sm:$0xf]
      %v1320 = vld [vmem:[%s313 + $0x10] sm:$0xf]
      %v1321 = vld [vmem:[%s313 + $0x14] sm:$0xf]
      %v1322 = vld [vmem:[%s313 + $0x18] sm:$0xf]
      %v1323 = vld [vmem:[%s313 + $0x1c] sm:$0xf]
      %v1324 = vld [vmem:[%s313 + $0x20] sm:$0xf]
      %v1325 = vld [vmem:[%s313 + $0x24] sm:$0xf]
      %v1326 = vld [vmem:[%s313 + $0x28] sm:$0xf]
      %v1327 = vld [vmem:[%s313 + $0x2c] sm:$0xf]
      %v1328 = vld [vmem:[%s313 + $0x30] sm:$0xf]
      %v1329 = vld [vmem:[%s313 + $0x34] sm:$0xf]
      %v1330 = vld [vmem:[%s313 + $0x38] sm:$0xf]
      %v1331 = vld [vmem:[%s313 + $0x3c] sm:$0xf]
      %v1332 = vld [vmem:[%s313 + $0x40] sm:$0xf]
      %v1333 = vld [vmem:[%s313 + $0x44] sm:$0xf]
      %v1334 = vld [vmem:[%s313 + $0x48] sm:$0xf]
      %v1335 = vld [vmem:[%s313 + $0x4c] sm:$0xf]
      %v1336 = vld [vmem:[%s313 + $0x50] sm:$0xf]
      %v1337 = vld [vmem:[%s313 + $0x54] sm:$0xf]
      %v1338 = vld [vmem:[%s313 + $0x58] sm:$0xf]
      %v1339 = vld [vmem:[%s313 + $0x5c] sm:$0xf]
      %v1340 = vld [vmem:[%s313 + $0x60] sm:$0xf]
      %v1341 = vld [vmem:[%s313 + $0x64] sm:$0xf]
      %v1342 = vld [vmem:[%s313 + $0x68] sm:$0xf]
      %v1343 = vld [vmem:[%s313 + $0x6c] sm:$0xf]
      %v1344 = vld [vmem:[%s313 + $0x70] sm:$0xf]
      %v1374 = vunpack.c.l.b16 %v1316
      %v1375 = vunpack.c.l.b16 %v1317
      %v1376 = vunpack.c.l.b16 %v1318
      %v1377 = vunpack.c.l.b16 %v1319
      %v1378 = vunpack.c.l.b16 %v1320
      %v1379 = vunpack.c.l.b16 %v1321
      %v1380 = vunpack.c.l.b16 %v1322
      %v1381 = vunpack.c.l.b16 %v1323
      %v1382 = vunpack.c.l.b16 %v1324
      %v1383 = vunpack.c.l.b16 %v1325
      %v1384 = vunpack.c.l.b16 %v1326
      %v1385 = vunpack.c.l.b16 %v1327
      %v1386 = vunpack.c.l.b16 %v1328
      %v1387 = vunpack.c.l.b16 %v1329
      %v1388 = vunpack.c.l.b16 %v1330
      %v1389 = vunpack.c.l.b16 %v1331
      %v1390 = vunpack.c.l.b16 %v1332
      %v1391 = vunpack.c.l.b16 %v1333
      %v1392 = vunpack.c.l.b16 %v1334
      %v1393 = vunpack.c.l.b16 %v1335
      %v1394 = vunpack.c.l.b16 %v1336
      %v1395 = vunpack.c.l.b16 %v1337
      %v1396 = vunpack.c.l.b16 %v1338
      %v1397 = vunpack.c.l.b16 %v1339
      %v1398 = vunpack.c.l.b16 %v1340
      %v1399 = vunpack.c.l.b16 %v1341
      %v1400 = vunpack.c.l.b16 %v1342
      %v1401 = vunpack.c.l.b16 %v1343
      %v1402 = vunpack.c.l.b16 %v1344
      %v1403 = vpack.c.b16 %v1375, %v1374
      %v1404 = vpack.c.b16 %v1377, %v1376
      %v1405 = vpack.c.b16 %v1379, %v1378
      %v1406 = vpack.c.b16 %v1381, %v1380
      %v1407 = vpack.c.b16 %v1383, %v1382
      %v1408 = vpack.c.b16 %v1385, %v1384
      %v1409 = vpack.c.b16 %v1387, %v1386
      %v1410 = vpack.c.b16 %v1389, %v1388
      %v1411 = vpack.c.b16 %v1391, %v1390
      %v1412 = vpack.c.b16 %v1393, %v1392
      %v1413 = vpack.c.b16 %v1395, %v1394
      %v1414 = vpack.c.b16 %v1397, %v1396
      %v1415 = vpack.c.b16 %v1399, %v1398
      %v1416 = vpack.c.b16 %v1401, %v1400
      %v1417 = vpack.c.b16 %v1402, %v1402
      %1433 = vmatprep.subr.bf16.mxu0 0
      %1434 = vmatpush1.bf16.msra.mxu0 %v494
      %1435 = vmatprep.subr.bf16.mxu0 0
      %1436 = vmatpush1.bf16.msra.mxu0 %v495
      %1437 = vmatprep.subr.bf16.mxu0 0
      %1438 = vmatpush1.bf16.msra.mxu0 %v496
      %1439 = vmatprep.subr.bf16.mxu0 0
      %1440 = vmatpush1.bf16.msra.mxu0 %v497
      %1441 = vmatprep.subr.bf16.mxu0 0
      %1442 = vmatpush1.bf16.msra.mxu0 %v498
      %1443 = vmatprep.subr.bf16.mxu0 0
      %1444 = vmatpush1.bf16.msra.mxu0 %v499
      %1445 = vmatprep.subr.bf16.mxu0 0
      %1446 = vmatpush1.bf16.msra.mxu0 %v500
      %1447 = vmatprep.subr.bf16.mxu0 0
      %1448 = vmatpush1.bf16.msra.mxu0 %v501
      %1449 = vmatprep.subr.bf16.mxu0 0
      %1450 = vmatpush1.bf16.msra.mxu0 0
      %1451 = vmatprep.subr.bf16.mxu0 0
      %1452 = vmatpush1.bf16.msra.mxu0 0
      %1453 = vmatprep.subr.bf16.mxu0 0
      %1454 = vmatpush1.bf16.msra.mxu0 0
      %1455 = vmatprep.subr.bf16.mxu0 0
      %1456 = vmatpush1.bf16.msra.mxu0 0
      %1457 = vmatprep.subr.bf16.mxu0 0
      %1458 = vmatpush1.bf16.msra.mxu0 0
      %1459 = vmatprep.subr.bf16.mxu0 0
      %1460 = vmatpush1.bf16.msra.mxu0 0
      %1461 = vmatprep.subr.bf16.mxu0 0
      %1462 = vmatpush1.bf16.msra.mxu0 0
      %1463 = vmatprep.subr.bf16.mxu0 0
      %1464 = vmatpush1.bf16.msra.mxu0 0
      %1465 = vmatprep.mubr.bf16.mxu0 0
      %1466 = vmatmul.mubr.bf16.gmra.mrb[0].mxu0 %v1403
      %v1467 = vpop.f32.mrb[0].mxu0
      %v1468 = vadd.f32 %v372, %v1467
      %v1469 = vpop.f32.mrb[0].mxu0
      %v1470 = vpop.f32.mrb[0].mxu0
      %v1471 = vadd.f32 %v372, %v1470
      %v1472 = vpop.f32.mrb[0].mxu0
      %1473 = vmatprep.mubr.bf16.mxu0 0
      %1474 = vmatmul.mubr.bf16.gmra.mrb[0].mxu0 %v1404
      %v1475 = vpop.f32.mrb[0].mxu0
      %v1476 = vadd.f32 %v372, %v1475
      %v1477 = vpop.f32.mrb[0].mxu0
      %v1478 = vpop.f32.mrb[0].mxu0
      %v1479 = vadd.f32 %v372, %v1478
      %v1480 = vpop.f32.mrb[0].mxu0
      %1481 = vmatprep.mubr.bf16.mxu0 0
      %1482 = vmatmul.mubr.bf16.gmra.mrb[0].mxu0 %v1405
      %v1483 = vpop.f32.mrb[0].mxu0
      %v1484 = vadd.f32 %v372, %v1483
      %v1485 = vpop.f32.mrb[0].mxu0
      %v1486 = vpop.f32.mrb[0].mxu0
      %v1487 = vadd.f32 %v372, %v1486
      %v1488 = vpop.f32.mrb[0].mxu0
      %1489 = vmatprep.mubr.bf16.mxu0 0
      %1490 = vmatmul.mubr.bf16.gmra.mrb[0].mxu0 %v1406
      %v1491 = vpop.f32.mrb[0].mxu0
      %v1492 = vadd.f32 %v372, %v1491
      %v1493 = vpop.f32.mrb[0].mxu0
      %v1494 = vpop.f32.mrb[0].mxu0
      %v1495 = vadd.f32 %v372, %v1494
      %v1496 = vpop.f32.mrb[0].mxu0
      %1497 = vmatprep.mubr.bf16.mxu0 0
      %1498 = vmatmul.mubr.bf16.gmra.mrb[0].mxu0 %v1407
      %v1499 = vpop.f32.mrb[0].mxu0
      %v1500 = vadd.f32 %v372, %v1499
      %v1501 = vpop.f32.mrb[0].mxu0
      %v1502 = vpop.f32.mrb[0].mxu0
      %v1503 = vadd.f32 %v372, %v1502
      %v1504 = vpop.f32.mrb[0].mxu0
      %1505 = vmatprep.mubr.bf16.mxu0 0
      %1506 = vmatmul.mubr.bf16.gmra.mrb[0].mxu0 %v1408
      %v1507 = vpop.f32.mrb[0].mxu0
      %v1508 = vadd.f32 %v372, %v1507
      %v1509 = vpop.f32.mrb[0].mxu0
      %v1510 = vpop.f32.mrb[0].mxu0
      %v1511 = vadd.f32 %v372, %v1510
      %v1512 = vpop.f32.mrb[0].mxu0
      %1513 = vmatprep.mubr.bf16.mxu0 0
      %1514 = vmatmul.mubr.bf16.gmra.mrb[0].mxu0 %v1409
      %v1515 = vpop.f32.mrb[0].mxu0
      %v1516 = vadd.f32 %v372, %v1515
      %v1517 = vpop.f32.mrb[0].mxu0
      %v1518 = vpop.f32.mrb[0].mxu0
      %v1519 = vadd.f32 %v372, %v1518
      %v1520 = vpop.f32.mrb[0].mxu0
      %1521 = vmatprep.mubr.bf16.mxu0 0
      %1522 = vmatmul.mubr.bf16.gmra.mrb[0].mxu0 %v1410
      %v1523 = vpop.f32.mrb[0].mxu0
      %v1524 = vadd.f32 %v372, %v1523
      %v1525 = vpop.f32.mrb[0].mxu0
      %v1526 = vpop.f32.mrb[0].mxu0
      %v1527 = vadd.f32 %v372, %v1526
      %v1528 = vpop.f32.mrb[0].mxu0
      %1529 = vmatprep.mubr.bf16.mxu0 0
      %1530 = vmatmul.mubr.bf16.gmra.mrb[0].mxu0 %v1411
      %v1531 = vpop.f32.mrb[0].mxu0
      %v1532 = vadd.f32 %v372, %v1531
      %v1533 = vpop.f32.mrb[0].mxu0
      %v1534 = vpop.f32.mrb[0].mxu0
      %v1535 = vadd.f32 %v372, %v1534
      %v1536 = vpop.f32.mrb[0].mxu0
      %1537 = vmatprep.mubr.bf16.mxu0 0
      %1538 = vmatmul.mubr.bf16.gmra.mrb[0].mxu0 %v1412
      %v1539 = vpop.f32.mrb[0].mxu0
      %v1540 = vadd.f32 %v372, %v1539
      %v1541 = vpop.f32.mrb[0].mxu0
      %v1542 = vpop.f32.mrb[0].mxu0
      %v1543 = vadd.f32 %v372, %v1542
      %v1544 = vpop.f32.mrb[0].mxu0
      %1545 = vmatprep.mubr.bf16.mxu0 0
      %1546 = vmatmul.mubr.bf16.gmra.mrb[0].mxu0 %v1413
      %v1547 = vpop.f32.mrb[0].mxu0
      %v1548 = vadd.f32 %v372, %v1547
      %v1549 = vpop.f32.mrb[0].mxu0
      %v1550 = vpop.f32.mrb[0].mxu0
      %v1551 = vadd.f32 %v372, %v1550
      %v1552 = vpop.f32.mrb[0].mxu0
      %1553 = vmatprep.mubr.bf16.mxu0 0
      %1554 = vmatmul.mubr.bf16.gmra.mrb[0].mxu0 %v1414
      %v1555 = vpop.f32.mrb[0].mxu0
      %v1556 = vadd.f32 %v372, %v1555
      %v1557 = vpop.f32.mrb[0].mxu0
      %v1558 = vpop.f32.mrb[0].mxu0
      %v1559 = vadd.f32 %v372, %v1558
      %v1560 = vpop.f32.mrb[0].mxu0
      %1561 = vmatprep.mubr.bf16.mxu0 0
      %1562 = vmatmul.mubr.bf16.gmra.mrb[0].mxu0 %v1415
      %v1563 = vpop.f32.mrb[0].mxu0
      %v1564 = vadd.f32 %v372, %v1563
      %v1565 = vpop.f32.mrb[0].mxu0
      %v1566 = vpop.f32.mrb[0].mxu0
      %v1567 = vadd.f32 %v372, %v1566
      %v1568 = vpop.f32.mrb[0].mxu0
      %1569 = vmatprep.mubr.bf16.mxu0 0
      %1570 = vmatmul.mubr.bf16.gmra.mrb[0].mxu0 %v1416
      %v1571 = vpop.f32.mrb[0].mxu0
      %v1572 = vadd.f32 %v372, %v1571
      %v1573 = vpop.f32.mrb[0].mxu0
      %v1574 = vpop.f32.mrb[0].mxu0
      %v1575 = vadd.f32 %v372, %v1574
      %v1576 = vpop.f32.mrb[0].mxu0
      %1577 = vmatprep.mubr.bf16.mxu0 0
      %1578 = vmatmul.mubr.bf16.gmra.mrb[0].mxu0 %v1417
      %v1579 = vpop.f32.mrb[0].mxu0
      %v1580 = vadd.f32 %v372, %v1579
      %v1581 = vpop.f32.mrb[0].mxu0
      %v1582 = vpop.f32.mrb[0].mxu0
      %v1583 = vpop.f32.mrb[0].mxu0
      %1584 = vdwg.mxu0
      %v1585 = vmax.f32 %v1468, 0.0
      %v1586 = vmax.f32 %v1471, 0.0
      %v1587 = vmax.f32 %v1476, 0.0
      %v1588 = vmax.f32 %v1479, 0.0
      %v1589 = vmax.f32 %v1484, 0.0
      %v1590 = vmax.f32 %v1487, 0.0
      %v1591 = vmax.f32 %v1492, 0.0
      %v1592 = vmax.f32 %v1495, 0.0
      %v1593 = vmax.f32 %v1500, 0.0
      %v1594 = vmax.f32 %v1503, 0.0
      %v1595 = vmax.f32 %v1508, 0.0
      %v1596 = vmax.f32 %v1511, 0.0
      %v1597 = vmax.f32 %v1516, 0.0
      %v1598 = vmax.f32 %v1519, 0.0
      %v1599 = vmax.f32 %v1524, 0.0
      %v1600 = vmax.f32 %v1527, 0.0
      %v1601 = vmax.f32 %v1532, 0.0
      %v1602 = vmax.f32 %v1535, 0.0
      %v1603 = vmax.f32 %v1540, 0.0
      %v1604 = vmax.f32 %v1543, 0.0
      %v1605 = vmax.f32 %v1548, 0.0
      %v1606 = vmax.f32 %v1551, 0.0
      %v1607 = vmax.f32 %v1556, 0.0
      %v1608 = vmax.f32 %v1559, 0.0
      %v1609 = vmax.f32 %v1564, 0.0
      %v1610 = vmax.f32 %v1567, 0.0
      %v1611 = vmax.f32 %v1572, 0.0
      %v1612 = vmax.f32 %v1575, 0.0
      %v1613 = vmax.f32 %v1580, 0.0
      %v1614 = vmax.f32 %v1287, %v1585
      %v1615 = vmax.f32 %v1288, %v1586
      %v1616 = vmax.f32 %v1289, %v1587
      %v1617 = vmax.f32 %v1290, %v1588
      %v1618 = vmax.f32 %v1291, %v1589
      %v1619 = vmax.f32 %v1292, %v1590
      %v1620 = vmax.f32 %v1293, %v1591
      %v1621 = vmax.f32 %v1294, %v1592
      %v1622 = vmax.f32 %v1295, %v1593
      %v1623 = vmax.f32 %v1296, %v1594
      %v1624 = vmax.f32 %v1297, %v1595
      %v1625 = vmax.f32 %v1298, %v1596
      %v1626 = vmax.f32 %v1299, %v1597
      %v1627 = vmax.f32 %v1300, %v1598
      %v1628 = vmax.f32 %v1301, %v1599
      %v1629 = vmax.f32 %v1302, %v1600
      %v1630 = vmax.f32 %v1303, %v1601
      %v1631 = vmax.f32 %v1304, %v1602
      %v1632 = vmax.f32 %v1305, %v1603
      %v1633 = vmax.f32 %v1306, %v1604
      %v1634 = vmax.f32 %v1307, %v1605
      %v1635 = vmax.f32 %v1308, %v1606
      %v1636 = vmax.f32 %v1309, %v1607
      %v1637 = vmax.f32 %v1310, %v1608
      %v1638 = vmax.f32 %v1311, %v1609
      %v1639 = vmax.f32 %v1312, %v1610
      %v1640 = vmax.f32 %v1313, %v1611
      %v1641 = vmax.f32 %v1314, %v1612
      %v1642 = vmax.f32 %v1315, %v1613
      %v1643 = vmax.f32 %v989, %v1614
      %v1644 = vmax.f32 %v990, %v1615
      %v1645 = vmax.f32 %v991, %v1616
      %v1646 = vmax.f32 %v992, %v1617
      %v1647 = vmax.f32 %v993, %v1618
      %v1648 = vmax.f32 %v994, %v1619
      %v1649 = vmax.f32 %v995, %v1620
      %v1650 = vmax.f32 %v996, %v1621
      %v1651 = vmax.f32 %v997, %v1622
      %v1652 = vmax.f32 %v998, %v1623
      %v1653 = vmax.f32 %v999, %v1624
      %v1654 = vmax.f32 %v1000, %v1625
      %v1655 = vmax.f32 %v1001, %v1626
      %v1656 = vmax.f32 %v1002, %v1627
      %v1657 = vmax.f32 %v1003, %v1628
      %v1658 = vmax.f32 %v1004, %v1629
      %v1659 = vmax.f32 %v1005, %v1630
      %v1660 = vmax.f32 %v1006, %v1631
      %v1661 = vmax.f32 %v1007, %v1632
      %v1662 = vmax.f32 %v1008, %v1633
      %v1663 = vmax.f32 %v1009, %v1634
      %v1664 = vmax.f32 %v1010, %v1635
      %v1665 = vmax.f32 %v1011, %v1636
      %v1666 = vmax.f32 %v1012, %v1637
      %v1667 = vmax.f32 %v1013, %v1638
      %v1668 = vmax.f32 %v1014, %v1639
      %v1669 = vmax.f32 %v1015, %v1640
      %v1670 = vmax.f32 %v1016, %v1641
      %v1671 = vmax.f32 %v1017, %v1642
      %v1672 = vpack.c.bf16 %v1644, %v1643
      %v1673 = vpack.c.bf16 %v1646, %v1645
      %v1674 = vpack.c.bf16 %v1648, %v1647
      %v1675 = vpack.c.bf16 %v1650, %v1649
      %v1676 = vpack.c.bf16 %v1652, %v1651
      %v1677 = vpack.c.bf16 %v1654, %v1653
      %v1678 = vpack.c.bf16 %v1656, %v1655
      %v1679 = vpack.c.bf16 %v1658, %v1657
      %v1680 = vpack.c.bf16 %v1660, %v1659
      %v1681 = vpack.c.bf16 %v1662, %v1661
      %v1682 = vpack.c.bf16 %v1664, %v1663
      %v1683 = vpack.c.bf16 %v1666, %v1665
      %v1684 = vpack.c.bf16 %v1668, %v1667
      %v1685 = vpack.c.bf16 %v1670, %v1669
      %v1686 = vpack.c.bf16 %v1671, %v1671
      %v1702 = vunpack.c.l.b16 %v1672
      %v1703 = vunpack.c.h.b16 %v1672
      %v1704 = vunpack.c.l.b16 %v1673
      %v1705 = vunpack.c.h.b16 %v1673
      %v1706 = vunpack.c.l.b16 %v1674
      %v1707 = vunpack.c.h.b16 %v1674
      %v1708 = vunpack.c.l.b16 %v1675
      %v1709 = vunpack.c.h.b16 %v1675
      %v1710 = vunpack.c.l.b16 %v1676
      %v1711 = vunpack.c.h.b16 %v1676
      %v1712 = vunpack.c.l.b16 %v1677
      %v1713 = vunpack.c.h.b16 %v1677
      %v1714 = vunpack.c.l.b16 %v1678
      %v1715 = vunpack.c.h.b16 %v1678
      %v1716 = vunpack.c.l.b16 %v1679
      %v1717 = vunpack.c.h.b16 %v1679
      %v1718 = vunpack.c.l.b16 %v1680
      %v1719 = vunpack.c.h.b16 %v1680
      %v1720 = vunpack.c.l.b16 %v1681
      %v1721 = vunpack.c.h.b16 %v1681
      %v1722 = vunpack.c.l.b16 %v1682
      %v1723 = vunpack.c.h.b16 %v1682
      %v1724 = vunpack.c.l.b16 %v1683
      %v1725 = vunpack.c.h.b16 %v1683
      %v1726 = vunpack.c.l.b16 %v1684
      %v1727 = vunpack.c.h.b16 %v1684
      %v1728 = vunpack.c.l.b16 %v1685
      %v1729 = vunpack.c.h.b16 %v1685
      %v1730 = vunpack.c.l.b16 %v1686
      %v1731 = vpack.c.b16 %v1702, %v1702
      %v1732 = vpack.c.b16 %v1703, %v1703
      %v1733 = vpack.c.b16 %v1704, %v1704
      %v1734 = vpack.c.b16 %v1705, %v1705
      %v1735 = vpack.c.b16 %v1706, %v1706
      %v1736 = vpack.c.b16 %v1707, %v1707
      %v1737 = vpack.c.b16 %v1708, %v1708
      %v1738 = vpack.c.b16 %v1709, %v1709
      %v1739 = vpack.c.b16 %v1710, %v1710
      %v1740 = vpack.c.b16 %v1711, %v1711
      %v1741 = vpack.c.b16 %v1712, %v1712
      %v1742 = vpack.c.b16 %v1713, %v1713
      %v1743 = vpack.c.b16 %v1714, %v1714
      %v1744 = vpack.c.b16 %v1715, %v1715
      %v1745 = vpack.c.b16 %v1716, %v1716
      %v1746 = vpack.c.b16 %v1717, %v1717
      %v1747 = vpack.c.b16 %v1718, %v1718
      %v1748 = vpack.c.b16 %v1719, %v1719
      %v1749 = vpack.c.b16 %v1720, %v1720
      %v1750 = vpack.c.b16 %v1721, %v1721
      %v1751 = vpack.c.b16 %v1722, %v1722
      %v1752 = vpack.c.b16 %v1723, %v1723
      %v1753 = vpack.c.b16 %v1724, %v1724
      %v1754 = vpack.c.b16 %v1725, %v1725
      %v1755 = vpack.c.b16 %v1726, %v1726
      %v1756 = vpack.c.b16 %v1727, %v1727
      %v1757 = vpack.c.b16 %v1728, %v1728
      %v1758 = vpack.c.b16 %v1729, %v1729
      %v1759 = vpack.c.b16 %v1730, %v1730
      %vm1789 = vcmask 125952
      %1790 = vst.msk [vmem:[%s319] sm:$0xf] %vm1789, %v1731
      %1791 = vst.msk [vmem:[%s319 + $0x4] sm:$0xf] %vm1789, %v1732
      %1792 = vst.msk [vmem:[%s319 + $0x8] sm:$0xf] %vm1789, %v1733
      %1793 = vst.msk [vmem:[%s319 + $0xc] sm:$0xf] %vm1789, %v1734
      %1794 = vst.msk [vmem:[%s319 + $0x10] sm:$0xf] %vm1789, %v1735
      %1795 = vst.msk [vmem:[%s319 + $0x14] sm:$0xf] %vm1789, %v1736
      %1796 = vst.msk [vmem:[%s319 + $0x18] sm:$0xf] %vm1789, %v1737
      %1797 = vst.msk [vmem:[%s319 + $0x1c] sm:$0xf] %vm1789, %v1738
      %1798 = vst.msk [vmem:[%s319 + $0x20] sm:$0xf] %vm1789, %v1739
      %1799 = vst.msk [vmem:[%s319 + $0x24] sm:$0xf] %vm1789, %v1740
      %1800 = vst.msk [vmem:[%s319 + $0x28] sm:$0xf] %vm1789, %v1741
      %1801 = vst.msk [vmem:[%s319 + $0x2c] sm:$0xf] %vm1789, %v1742
      %1802 = vst.msk [vmem:[%s319 + $0x30] sm:$0xf] %vm1789, %v1743
      %1803 = vst.msk [vmem:[%s319 + $0x34] sm:$0xf] %vm1789, %v1744
      %1804 = vst.msk [vmem:[%s319 + $0x38] sm:$0xf] %vm1789, %v1745
      %1805 = vst.msk [vmem:[%s319 + $0x3c] sm:$0xf] %vm1789, %v1746
      %1806 = vst.msk [vmem:[%s319 + $0x40] sm:$0xf] %vm1789, %v1747
      %1807 = vst.msk [vmem:[%s319 + $0x44] sm:$0xf] %vm1789, %v1748
      %1808 = vst.msk [vmem:[%s319 + $0x48] sm:$0xf] %vm1789, %v1749
      %1809 = vst.msk [vmem:[%s319 + $0x4c] sm:$0xf] %vm1789, %v1750
      %1810 = vst.msk [vmem:[%s319 + $0x50] sm:$0xf] %vm1789, %v1751
      %1811 = vst.msk [vmem:[%s319 + $0x54] sm:$0xf] %vm1789, %v1752
      %1812 = vst.msk [vmem:[%s319 + $0x58] sm:$0xf] %vm1789, %v1753
      %1813 = vst.msk [vmem:[%s319 + $0x5c] sm:$0xf] %vm1789, %v1754
      %1814 = vst.msk [vmem:[%s319 + $0x60] sm:$0xf] %vm1789, %v1755
      %1815 = vst.msk [vmem:[%s319 + $0x64] sm:$0xf] %vm1789, %v1756
      %1816 = vst.msk [vmem:[%s319 + $0x68] sm:$0xf] %vm1789, %v1757
      %1817 = vst.msk [vmem:[%s319 + $0x6c] sm:$0xf] %vm1789, %v1758
      %1818 = vst.msk [vmem:[%s319 + $0x70] sm:$0xf] %vm1789, %v1759
      %s1819 = smul.u32 29, %s17
      %p1820 = scmp.lt.s32.totalorder %s1819, 57
      %s1821 = scalar_select %p1820, %s1819, 57
      %s1822 = smul.addr %s1821, 4
      %s1823 = scalar_lea.vmem %s6, %s1822
      // Predicated region
      $region45: #{forward.3} parent=43 // pred_check
        %p1824 = pneg %p181
      $region46: #{forward.3} parent=43 // pred_check_branch
        %1826 = sbr.rel (%p1824) target = $region48
      $region47: #{forward.3} parent=43 // pred_region
        %s1827 = smul.u32 29, %s17
      $region48: #{forward.3} parent=43 // pred_fallthru
        _
    $region44: #{forward.3} parent=5 // pred_fallthru
      _
    %p1828 = scmp.le.s32.totalorder 2, %s12
    // Predicated region
    $region49: #{forward.3} parent=5 // pred_check
      %p1829 = pneg %p1828
    $region50: #{forward.3} parent=5 // pred_check_branch
      %1831 = sbr.rel (%p1829) target = $region52
    $region51: #{forward.3} parent=5 // pred_region
      %s1832 = ssub.s32 %s12, 2
      // Predicated region
      $region53: #{forward.3} parent=51 // pred_check
        %p1833 = pneg %p187
      $region54: #{forward.3} parent=51 // pred_check_branch
        %1835 = sbr.rel (%p1833) target = $region56
      $region55: #{forward.3} parent=51 // pred_region
        %s1836 = smul.u32 29, %s18
        %p1837 = scmp.lt.s32.totalorder %s1836, 57
        %s1838 = scalar_select %p1837, %s1836, 57
        %s1839 = smul.addr %s1838, 4
        %s1840 = scalar_lea.vmem %s6, %s1839
      $region56: #{forward.3} parent=51 // pred_fallthru
        _
    $region52: #{forward.3} parent=5 // pred_fallthru
      _
  $region6: #{forward.3} parent=0 // loop_footer
    %s16 = sadd.s32 1, %s12
  $region7: #{forward.3} parent=0 // loop_footer_branch
    %11 = sbr.rel target = $region3
  $region8: #{forward.3} parent=0 // loop_exit
    _

// kernel: forward.4
$region0: #{forward.4}
  #allocation0 [shape = 'u32[]', space=smem, size = 0x4, offset = 0x4, fixed_abs, tag = 'smem constant byte address 0x4 - core index']
  #allocation1 [shape = 'u32[144,128]{1,0:T(1,128)}', space=vmem, size = 0x12000, scoped, tag = 'internal scratch']
  %s0 = inlined_call_operand.vmem [shape: bf16[32,256], index: 0, kind: input, shape index: {}]
  %s1 = inlined_call_operand.vmem [shape: bf16[32,256], index: 1, kind: input, shape index: {}]
  %s2 = inlined_call_operand.vmem [shape: bf16[32,256], index: 2, kind: input, shape index: {}]
  %s3 = inlined_call_operand.vmem [shape: bf16[32,256], index: 3, kind: input, shape index: {}]
  %s4 = inlined_call_operand.vmem [shape: bf16[256,32], index: 4, kind: input, shape index: {}]
  %s5 = inlined_call_operand.vmem [shape: f32[1,32], index: 5, kind: input, shape index: {}]
  %s6 = inlined_call_operand.vmem [shape: bf16[32,32], index: 6, kind: output, shape index: {}]
  %s7 = sld [smem:[#allocation0]]
  $region57: #{forward.4} parent=0
    _
  %s9 = ssub.s32 1, %s7
  %s10 = scalar_select 0, %s9, %s7
  loop: start=0, step=1, limit=4
  $region2: #{forward.4} parent=0 // loop_pre_header
    _
  $region3: #{forward.4} parent=0 // loop_header
    %s12 = sphi 0, %s16
    %p13 = scmp.ge.s32.totalorder %s12, 4
    %s22 = sphi 0, %s24
    %s25 = sphi 0, %s22
    %s26 = sphi 0, %s25
    %s42 = sphi 0, %s26
    %s48 = sphi 0, %s50
    %s51 = sphi 0, %s48
    %s52 = sphi 0, %s51
    %s68 = sphi 0, %s52
    %s74 = sphi 0, %s76
    %s77 = sphi 0, %s74
    %s78 = sphi 0, %s77
    %s94 = sphi 0, %s78
    %s100 = sphi 0, %s102
    %s103 = sphi 0, %s100
    %s104 = sphi 0, %s103
    %s120 = sphi 0, %s104
    %s124 = sphi 0, %s124
    %s126 = sphi 0, %s124
    %s127 = sphi 0, %s126
    %s141 = sphi 0, %s127
    %s145 = sphi 0, %s145
    %s147 = sphi 0, %s145
    %s148 = sphi 0, %s147
    %s162 = sphi 0, %s148
    %s168 = sphi 0, %s170
    %s171 = sphi 0, %s168
    %s172 = sphi 0, %s171
    %s188 = sphi 0, %s172
  $region4: #{forward.4} parent=0 // loop_header_branch
    %15 = sbr.rel (%p13) target = $region8
  $region5: #{forward.4} parent=0 // loop_body
    %s17 = ssub.s32 %s12, 1
    %s18 = ssub.s32 %s12, 2
    %s19 = sadd.s32 %s12, 1
    %s20 = ssub.s32 %s12, %s19
    %p21 = scmp.eq.s32.totalorder %s20, 0
    %s23 = sadd.s32 %s22, 1
    %s24 = scalar_select %p21, %s22, %s23
    %p27 = pneg %p21
    %p28 = scmp.eq.s32.totalorder %s12, 1
    %p29 = por %p27, %p28
    %p30 = scmp.ne.s32.totalorder %s22, %s25
    %p31 = scmp.eq.s32.totalorder %s12, 0
    %p32 = por %p30, %p31
    %p33 = scmp.ne.s32.totalorder %s22, %s25
    %p34 = scmp.eq.s32.totalorder %s17, 1
    %p35 = por %p33, %p34
    %p36 = scmp.ne.s32.totalorder %s25, %s26
    %p37 = scmp.eq.s32.totalorder %s17, 0
    %p38 = por %p36, %p37
    %p39 = scmp.ne.s32.totalorder %s25, %s26
    %p40 = scmp.eq.s32.totalorder %s18, 1
    %p41 = por %p39, %p40
    %p43 = scmp.ne.s32.totalorder %s26, %s42
    %p44 = scmp.eq.s32.totalorder %s18, 0
    %p45 = por %p43, %p44
    %s46 = ssub.s32 %s12, %s19
    %p47 = scmp.eq.s32.totalorder %s46, 0
    %s49 = sadd.s32 %s48, 1
    %s50 = scalar_select %p47, %s48, %s49
    %p53 = pneg %p47
    %p54 = scmp.eq.s32.totalorder %s12, 1
    %p55 = por %p53, %p54
    %p56 = scmp.ne.s32.totalorder %s48, %s51
    %p57 = scmp.eq.s32.totalorder %s12, 0
    %p58 = por %p56, %p57
    %p59 = scmp.ne.s32.totalorder %s48, %s51
    %p60 = scmp.eq.s32.totalorder %s17, 1
    %p61 = por %p59, %p60
    %p62 = scmp.ne.s32.totalorder %s51, %s52
    %p63 = scmp.eq.s32.totalorder %s17, 0
    %p64 = por %p62, %p63
    %p65 = scmp.ne.s32.totalorder %s51, %s52
    %p66 = scmp.eq.s32.totalorder %s18, 1
    %p67 = por %p65, %p66
    %p69 = scmp.ne.s32.totalorder %s52, %s68
    %p70 = scmp.eq.s32.totalorder %s18, 0
    %p71 = por %p69, %p70
    %s72 = ssub.s32 %s12, %s19
    %p73 = scmp.eq.s32.totalorder %s72, 0
    %s75 = sadd.s32 %s74, 1
    %s76 = scalar_select %p73, %s74, %s75
    %p79 = pneg %p73
    %p80 = scmp.eq.s32.totalorder %s12, 1
    %p81 = por %p79, %p80
    %p82 = scmp.ne.s32.totalorder %s74, %s77
    %p83 = scmp.eq.s32.totalorder %s12, 0
    %p84 = por %p82, %p83
    %p85 = scmp.ne.s32.totalorder %s74, %s77
    %p86 = scmp.eq.s32.totalorder %s17, 1
    %p87 = por %p85, %p86
    %p88 = scmp.ne.s32.totalorder %s77, %s78
    %p89 = scmp.eq.s32.totalorder %s17, 0
    %p90 = por %p88, %p89
    %p91 = scmp.ne.s32.totalorder %s77, %s78
    %p92 = scmp.eq.s32.totalorder %s18, 1
    %p93 = por %p91, %p92
    %p95 = scmp.ne.s32.totalorder %s78, %s94
    %p96 = scmp.eq.s32.totalorder %s18, 0
    %p97 = por %p95, %p96
    %s98 = ssub.s32 %s12, %s19
    %p99 = scmp.eq.s32.totalorder %s98, 0
    %s101 = sadd.s32 %s100, 1
    %s102 = scalar_select %p99, %s100, %s101
    %p105 = pneg %p99
    %p106 = scmp.eq.s32.totalorder %s12, 1
    %p107 = por %p105, %p106
    %p108 = scmp.ne.s32.totalorder %s100, %s103
    %p109 = scmp.eq.s32.totalorder %s12, 0
    %p110 = por %p108, %p109
    %p111 = scmp.ne.s32.totalorder %s100, %s103
    %p112 = scmp.eq.s32.totalorder %s17, 1
    %p113 = por %p111, %p112
    %p114 = scmp.ne.s32.totalorder %s103, %s104
    %p115 = scmp.eq.s32.totalorder %s17, 0
    %p116 = por %p114, %p115
    %p117 = scmp.ne.s32.totalorder %s103, %s104
    %p118 = scmp.eq.s32.totalorder %s18, 1
    %p119 = por %p117, %p118
    %p121 = scmp.ne.s32.totalorder %s104, %s120
    %p122 = scmp.eq.s32.totalorder %s18, 0
    %p123 = por %p121, %p122
    %s125 = sadd.s32 %s124, 1
    %p128 = scmp.eq.s32.totalorder %s12, 1
    %p129 = scmp.ne.s32.totalorder %s124, %s126
    %p130 = scmp.eq.s32.totalorder %s12, 0
    %p131 = por %p129, %p130
    %p132 = scmp.ne.s32.totalorder %s124, %s126
    %p133 = scmp.eq.s32.totalorder %s17, 1
    %p134 = por %p132, %p133
    %p135 = scmp.ne.s32.totalorder %s126, %s127
    %p136 = scmp.eq.s32.totalorder %s17, 0
    %p137 = por %p135, %p136
    %p138 = scmp.ne.s32.totalorder %s126, %s127
    %p139 = scmp.eq.s32.totalorder %s18, 1
    %p140 = por %p138, %p139
    %p142 = scmp.ne.s32.totalorder %s127, %s141
    %p143 = scmp.eq.s32.totalorder %s18, 0
    %p144 = por %p142, %p143
    %s146 = sadd.s32 %s145, 1
    %p149 = scmp.eq.s32.totalorder %s12, 1
    %p150 = scmp.ne.s32.totalorder %s145, %s147
    %p151 = scmp.eq.s32.totalorder %s12, 0
    %p152 = por %p150, %p151
    %p153 = scmp.ne.s32.totalorder %s145, %s147
    %p154 = scmp.eq.s32.totalorder %s17, 1
    %p155 = por %p153, %p154
    %p156 = scmp.ne.s32.totalorder %s147, %s148
    %p157 = scmp.eq.s32.totalorder %s17, 0
    %p158 = por %p156, %p157
    %p159 = scmp.ne.s32.totalorder %s147, %s148
    %p160 = scmp.eq.s32.totalorder %s18, 1
    %p161 = por %p159, %p160
    %p163 = scmp.ne.s32.totalorder %s148, %s162
    %p164 = scmp.eq.s32.totalorder %s18, 0
    %p165 = por %p163, %p164
    %s166 = ssub.s32 %s12, %s19
    %p167 = scmp.eq.s32.totalorder %s166, 0
    %s169 = sadd.s32 %s168, 1
    %s170 = scalar_select %p167, %s168, %s169
    %p173 = pneg %p167
    %p174 = scmp.eq.s32.totalorder %s12, 1
    %p175 = por %p173, %p174
    %p176 = scmp.ne.s32.totalorder %s168, %s171
    %p177 = scmp.eq.s32.totalorder %s12, 0
    %p178 = por %p176, %p177
    %p179 = scmp.ne.s32.totalorder %s168, %s171
    %p180 = scmp.eq.s32.totalorder %s17, 1
    %p181 = por %p179, %p180
    %p182 = scmp.ne.s32.totalorder %s171, %s172
    %p183 = scmp.eq.s32.totalorder %s17, 0
    %p184 = por %p182, %p183
    %p185 = scmp.ne.s32.totalorder %s171, %s172
    %p186 = scmp.eq.s32.totalorder %s18, 1
    %p187 = por %p185, %p186
    %p189 = scmp.ne.s32.totalorder %s172, %s188
    %p190 = scmp.eq.s32.totalorder %s18, 0
    %p191 = por %p189, %p190
    %p192 = scmp.le.s32.totalorder 1, %s12
    %p193 = scmp.lt.s32.totalorder %s12, 3
    %p194 = pnand %p192, %p193
    %p195 = pneg %p194
    // Predicated region
    $region9: #{forward.4} parent=5 // pred_check
      _
    $region10: #{forward.4} parent=5 // pred_check_branch
      %197 = sbr.rel (%p194) target = $region12
    $region11: #{forward.4} parent=5 // pred_region
      %s198 = ssub.s32 %s12, 1
      // Predicated region
      $region13: #{forward.4} parent=11 // pred_check
        %p199 = pneg %p137
      $region14: #{forward.4} parent=11 // pred_check_branch
        %201 = sbr.rel (%p199) target = $region16
      $region15: #{forward.4} parent=11 // pred_region
        _
      $region16: #{forward.4} parent=11 // pred_fallthru
        _
      // Predicated region
      $region17: #{forward.4} parent=11 // pred_check
        %p202 = pneg %p158
      $region18: #{forward.4} parent=11 // pred_check_branch
        %204 = sbr.rel (%p202) target = $region20
      $region19: #{forward.4} parent=11 // pred_region
        _
      $region20: #{forward.4} parent=11 // pred_fallthru
        _
    $region12: #{forward.4} parent=5 // pred_fallthru
      _
    %p205 = scmp.lt.s32.totalorder %s12, 2
    // Predicated region
    $region21: #{forward.4} parent=5 // pred_check
      %p206 = pneg %p205
    $region22: #{forward.4} parent=5 // pred_check_branch
      %208 = sbr.rel (%p206) target = $region24
    $region23: #{forward.4} parent=5 // pred_region
      // Predicated region
      $region25: #{forward.4} parent=23 // pred_check
        %p209 = pneg %p32
      $region26: #{forward.4} parent=23 // pred_check_branch
        %211 = sbr.rel (%p209) target = $region28
      $region27: #{forward.4} parent=23 // pred_region
        %s212 = smul.u32 2, %s12
        %p213 = scmp.lt.s32.totalorder %s212, 3
        %s214 = scalar_select %p213, %s212, 3
        %s215 = smul.addr %s214, 2
        %s216 = smul.addr %s215, 4
        %s217 = scalar_lea.vmem %s0, %s216
        %s218 = smul.u32 2, %s12
      $region28: #{forward.4} parent=23 // pred_fallthru
        _
      // Predicated region
      $region29: #{forward.4} parent=23 // pred_check
        %p219 = pneg %p58
      $region30: #{forward.4} parent=23 // pred_check_branch
        %221 = sbr.rel (%p219) target = $region32
      $region31: #{forward.4} parent=23 // pred_region
        %s222 = smul.u32 2, %s12
        %p223 = scmp.lt.s32.totalorder %s222, 3
        %s224 = scalar_select %p223, %s222, 3
        %s225 = smul.addr %s224, 2
        %s226 = smul.addr %s225, 4
        %s227 = scalar_lea.vmem %s1, %s226
        %s228 = smul.u32 2, %s12
      $region32: #{forward.4} parent=23 // pred_fallthru
        _
      // Predicated region
      $region33: #{forward.4} parent=23 // pred_check
        %p229 = pneg %p84
      $region34: #{forward.4} parent=23 // pred_check_branch
        %231 = sbr.rel (%p229) target = $region36
      $region35: #{forward.4} parent=23 // pred_region
        %s232 = smul.u32 2, %s12
        %p233 = scmp.lt.s32.totalorder %s232, 3
        %s234 = scalar_select %p233, %s232, 3
        %s235 = smul.addr %s234, 2
        %s236 = smul.addr %s235, 4
        %s237 = scalar_lea.vmem %s2, %s236
        %s238 = smul.u32 2, %s12
      $region36: #{forward.4} parent=23 // pred_fallthru
        _
      // Predicated region
      $region37: #{forward.4} parent=23 // pred_check
        %p239 = pneg %p110
      $region38: #{forward.4} parent=23 // pred_check_branch
        %241 = sbr.rel (%p239) target = $region40
      $region39: #{forward.4} parent=23 // pred_region
        %s242 = smul.u32 2, %s12
        %p243 = scmp.lt.s32.totalorder %s242, 3
        %s244 = scalar_select %p243, %s242, 3
        %s245 = smul.addr %s244, 2
        %s246 = smul.addr %s245, 4
        %s247 = scalar_lea.vmem %s3, %s246
        %s248 = smul.u32 2, %s12
      $region40: #{forward.4} parent=23 // pred_fallthru
        _
    $region24: #{forward.4} parent=5 // pred_fallthru
      _
    %p249 = scmp.le.s32.totalorder 1, %s12
    %p250 = scmp.lt.s32.totalorder %s12, 3
    %p251 = pnand %p249, %p250
    %p252 = pneg %p251
    // Predicated region
    $region41: #{forward.4} parent=5 // pred_check
      _
    $region42: #{forward.4} parent=5 // pred_check_branch
      %254 = sbr.rel (%p251) target = $region44
    $region43: #{forward.4} parent=5 // pred_region
      %s255 = ssub.s32 %s12, 1
      %s256 = smul.u32 2, %s17
      %p257 = scmp.lt.s32.totalorder %s256, 3
      %s258 = scalar_select %p257, %s256, 3
      %s259 = smul.addr %s258, 2
      %s260 = smul.addr %s259, 4
      %s261 = scalar_lea.vmem %s0, %s260
      %p262 = pneg %p38
      %p263 = pneg %p35
      %s264 = smul.u32 2, %s17
      %p265 = scmp.lt.s32.totalorder %s264, 3
      %s266 = scalar_select %p265, %s264, 3
      %s267 = smul.addr %s266, 2
      %s268 = smul.addr %s267, 4
      %s269 = scalar_lea.vmem %s1, %s268
      %p270 = pneg %p64
      %p271 = pneg %p61
      %s272 = smul.u32 2, %s17
      %p273 = scmp.lt.s32.totalorder %s272, 3
      %s274 = scalar_select %p273, %s272, 3
      %s275 = smul.addr %s274, 2
      %s276 = smul.addr %s275, 4
      %s277 = scalar_lea.vmem %s2, %s276
      %p278 = pneg %p90
      %p279 = pneg %p87
      %s280 = smul.u32 2, %s17
      %p281 = scmp.lt.s32.totalorder %s280, 3
      %s282 = scalar_select %p281, %s280, 3
      %s283 = smul.addr %s282, 2
      %s284 = smul.addr %s283, 4
      %s285 = scalar_lea.vmem %s3, %s284
      %p286 = pneg %p116
      %p287 = pneg %p113
      %p288 = pneg %p137
      %p289 = pneg %p134
      %p290 = pneg %p158
      %p291 = pneg %p155
      %p292 = pneg %p184
      %p293 = pneg %p181
      %s294 = smul.u32 2, %s17
      %p295 = scmp.lt.s32.totalorder %s294, 3
      %s296 = scalar_select %p295, %s294, 3
      %s297 = smul.addr %s296, 4
      %s298 = scalar_lea.vmem %s6, %s297
      %s299 = smul.u32 2, %s17
      %p300 = scmp.lt.s32.totalorder %s299, 3
      %s301 = scalar_select %p300, %s299, 3
      %s302 = smul.addr %s301, 2
      %s303 = smul.addr %s302, 4
      %s304 = scalar_lea.vmem %s0, %s303
      %s305 = smul.u32 2, %s17
      %s306 = smul.u32 2, %s17
      %p307 = scmp.lt.s32.totalorder %s306, 3
      %s308 = scalar_select %p307, %s306, 3
      %s309 = smul.addr %s308, 2
      %s310 = smul.addr %s309, 4
      %s311 = scalar_lea.vmem %s1, %s310
      %s312 = smul.u32 2, %s17
      %s313 = smul.u32 2, %s17
      %p314 = scmp.lt.s32.totalorder %s313, 3
      %s315 = scalar_select %p314, %s313, 3
      %s316 = smul.addr %s315, 2
      %s317 = smul.addr %s316, 4
      %s318 = scalar_lea.vmem %s2, %s317
      %s319 = smul.u32 2, %s17
      %s320 = smul.u32 2, %s17
      %p321 = scmp.lt.s32.totalorder %s320, 3
      %s322 = scalar_select %p321, %s320, 3
      %s323 = smul.addr %s322, 2
      %s324 = smul.addr %s323, 4
      %s325 = scalar_lea.vmem %s3, %s324
      %s326 = smul.u32 2, %s17
      %s327 = smul.u32 2, %s17
      %p328 = scmp.lt.s32.totalorder %s327, 3
      %s329 = scalar_select %p328, %s327, 3
      %s330 = smul.addr %s329, 4
      %s331 = scalar_lea.vmem %s6, %s330
      %s332 = smul.u32 2, %s17
      %v334 = vld [vmem:[%s4] sm:$0xf]
      %v335 = vld [vmem:[%s4 + $0x4] sm:$0xf]
      %v336 = vld [vmem:[%s4 + $0x8] sm:$0xf]
      %v337 = vld [vmem:[%s4 + $0xc] sm:$0xf]
      %v338 = vld [vmem:[%s4 + $0x10] sm:$0xf]
      %v339 = vld [vmem:[%s4 + $0x14] sm:$0xf]
      %v340 = vld [vmem:[%s4 + $0x18] sm:$0xf]
      %v341 = vld [vmem:[%s4 + $0x1c] sm:$0xf]
      %v342 = vld [vmem:[%s4 + $0x20] sm:$0xf]
      %v343 = vld [vmem:[%s4 + $0x24] sm:$0xf]
      %v344 = vld [vmem:[%s4 + $0x28] sm:$0xf]
      %v345 = vld [vmem:[%s4 + $0x2c] sm:$0xf]
      %v346 = vld [vmem:[%s4 + $0x30] sm:$0xf]
      %v347 = vld [vmem:[%s4 + $0x34] sm:$0xf]
      %v348 = vld [vmem:[%s4 + $0x38] sm:$0xf]
      %v349 = vld [vmem:[%s4 + $0x3c] sm:$0xf]
      %v350 = vld [vmem:[%s4 + $0x40] sm:$0xf]
      %v351 = vld [vmem:[%s4 + $0x44] sm:$0xf]
      %v352 = vld [vmem:[%s4 + $0x48] sm:$0xf]
      %v353 = vld [vmem:[%s4 + $0x4c] sm:$0xf]
      %v354 = vld [vmem:[%s4 + $0x50] sm:$0xf]
      %v355 = vld [vmem:[%s4 + $0x54] sm:$0xf]
      %v356 = vld [vmem:[%s4 + $0x58] sm:$0xf]
      %v357 = vld [vmem:[%s4 + $0x5c] sm:$0xf]
      %v358 = vld [vmem:[%s4 + $0x60] sm:$0xf]
      %v359 = vld [vmem:[%s4 + $0x64] sm:$0xf]
      %v360 = vld [vmem:[%s4 + $0x68] sm:$0xf]
      %v361 = vld [vmem:[%s4 + $0x6c] sm:$0xf]
      %v362 = vld [vmem:[%s4 + $0x70] sm:$0xf]
      %v363 = vld [vmem:[%s4 + $0x74] sm:$0xf]
      %v364 = vld [vmem:[%s4 + $0x78] sm:$0xf]
      %v365 = vld [vmem:[%s4 + $0x7c] sm:$0xf]
      %v366 = vld [vmem:[%s5] sm:$0x1]
      %v367 = vld [vmem:[%s304] sm:$0xff]
      %v368 = vld [vmem:[%s304 + $0x8] sm:$0xff]
      %v370 = vlaneseq
      %v371 = vshrl.u32 %v370, 7
      %v372 = vsub.s32 0, %v371
      %v373 = vrot.slane %v366, %v372
      %v377 = vunpack.c.l.b16 %v367
      %v378 = vunpack.c.h.b16 %v367
      %v379 = vunpack.c.l.b16 %v368
      %v380 = vunpack.c.h.b16 %v368
      %v381 = vpack.c.b16 %v379, %v377
      %v382 = vpack.c.b16 %v380, %v378
      %v417 = vunpack.c.l.b16 %v334
      %v418 = vunpack.c.l.b16 %v335
      %v419 = vunpack.c.l.b16 %v336
      %v420 = vunpack.c.l.b16 %v337
      %v421 = vunpack.c.l.b16 %v338
      %v422 = vunpack.c.l.b16 %v339
      %v423 = vunpack.c.l.b16 %v340
      %v424 = vunpack.c.l.b16 %v341
      %v425 = vunpack.c.l.b16 %v342
      %v426 = vunpack.c.l.b16 %v343
      %v427 = vunpack.c.l.b16 %v344
      %v428 = vunpack.c.l.b16 %v345
      %v429 = vunpack.c.l.b16 %v346
      %v430 = vunpack.c.l.b16 %v347
      %v431 = vunpack.c.l.b16 %v348
      %v432 = vunpack.c.l.b16 %v349
      %v433 = vunpack.c.l.b16 %v350
      %v434 = vunpack.c.l.b16 %v351
      %v435 = vunpack.c.l.b16 %v352
      %v436 = vunpack.c.l.b16 %v353
      %v437 = vunpack.c.l.b16 %v354
      %v438 = vunpack.c.l.b16 %v355
      %v439 = vunpack.c.l.b16 %v356
      %v440 = vunpack.c.l.b16 %v357
      %v441 = vunpack.c.l.b16 %v358
      %v442 = vunpack.c.l.b16 %v359
      %v443 = vunpack.c.l.b16 %v360
      %v444 = vunpack.c.l.b16 %v361
      %v445 = vunpack.c.l.b16 %v362
      %v446 = vunpack.c.l.b16 %v363
      %v447 = vunpack.c.l.b16 %v364
      %v448 = vunpack.c.l.b16 %v365
      %v449 = vpack.c.b16 %v418, %v417
      %v450 = vpack.c.b16 %v420, %v419
      %v451 = vpack.c.b16 %v422, %v421
      %v452 = vpack.c.b16 %v424, %v423
      %v453 = vpack.c.b16 %v426, %v425
      %v454 = vpack.c.b16 %v428, %v427
      %v455 = vpack.c.b16 %v430, %v429
      %v456 = vpack.c.b16 %v432, %v431
      %v457 = vpack.c.b16 %v434, %v433
      %v458 = vpack.c.b16 %v436, %v435
      %v459 = vpack.c.b16 %v438, %v437
      %v460 = vpack.c.b16 %v440, %v439
      %v461 = vpack.c.b16 %v442, %v441
      %v462 = vpack.c.b16 %v444, %v443
      %v463 = vpack.c.b16 %v446, %v445
      %v464 = vpack.c.b16 %v448, %v447
      %481 = vmatprep.subr.bf16.mxu0 0
      %482 = vmatpush1.bf16.msra.mxu0 %v449
      %483 = vmatprep.subr.bf16.mxu0 0
      %484 = vmatpush1.bf16.msra.mxu0 %v450
      %485 = vmatprep.subr.bf16.mxu0 0
      %486 = vmatpush1.bf16.msra.mxu0 %v451
      %487 = vmatprep.subr.bf16.mxu0 0
      %488 = vmatpush1.bf16.msra.mxu0 %v452
      %489 = vmatprep.subr.bf16.mxu0 0
      %490 = vmatpush1.bf16.msra.mxu0 %v453
      %491 = vmatprep.subr.bf16.mxu0 0
      %492 = vmatpush1.bf16.msra.mxu0 %v454
      %493 = vmatprep.subr.bf16.mxu0 0
      %494 = vmatpush1.bf16.msra.mxu0 %v455
      %495 = vmatprep.subr.bf16.mxu0 0
      %496 = vmatpush1.bf16.msra.mxu0 %v456
      %497 = vmatprep.subr.bf16.mxu0 0
      %498 = vmatpush1.bf16.msra.mxu0 %v457
      %499 = vmatprep.subr.bf16.mxu0 0
      %500 = vmatpush1.bf16.msra.mxu0 %v458
      %501 = vmatprep.subr.bf16.mxu0 0
      %502 = vmatpush1.bf16.msra.mxu0 %v459
      %503 = vmatprep.subr.bf16.mxu0 0
      %504 = vmatpush1.bf16.msra.mxu0 %v460
      %505 = vmatprep.subr.bf16.mxu0 0
      %506 = vmatpush1.bf16.msra.mxu0 %v461
      %507 = vmatprep.subr.bf16.mxu0 0
      %508 = vmatpush1.bf16.msra.mxu0 %v462
      %509 = vmatprep.subr.bf16.mxu0 0
      %510 = vmatpush1.bf16.msra.mxu0 %v463
      %511 = vmatprep.subr.bf16.mxu0 0
      %512 = vmatpush1.bf16.msra.mxu0 %v464
      %513 = vmatprep.mubr.bf16.mxu0 %v382
      %514 = vmatmul.mubr.bf16.gmra.mrb[0].mxu0 %v381
      %v515 = vpop.f32.mrb[0].mxu0
      %v516 = vadd.f32 %v373, %v515
      %v517 = vpop.f32.mrb[0].mxu0
      %v518 = vpop.f32.mrb[0].mxu0
      %v519 = vadd.f32 %v373, %v518
      %v520 = vpop.f32.mrb[0].mxu0
      %521 = vdwg.mxu0
      %v522 = vmax.f32 %v516, 0.0
      %v523 = vmax.f32 %v519, 0.0
      %v524 = vld [vmem:[%s311] sm:$0xff]
      %v525 = vld [vmem:[%s311 + $0x8] sm:$0xff]
      %v528 = vunpack.c.l.b16 %v524
      %v529 = vunpack.c.h.b16 %v524
      %v530 = vunpack.c.l.b16 %v525
      %v531 = vunpack.c.h.b16 %v525
      %v532 = vpack.c.b16 %v530, %v528
      %v533 = vpack.c.b16 %v531, %v529
      %536 = vmatprep.subr.bf16.mxu0 0
      %537 = vmatpush1.bf16.msra.mxu0 %v449
      %538 = vmatprep.subr.bf16.mxu0 0
      %539 = vmatpush1.bf16.msra.mxu0 %v450
      %540 = vmatprep.subr.bf16.mxu0 0
      %541 = vmatpush1.bf16.msra.mxu0 %v451
      %542 = vmatprep.subr.bf16.mxu0 0
      %543 = vmatpush1.bf16.msra.mxu0 %v452
      %544 = vmatprep.subr.bf16.mxu0 0
      %545 = vmatpush1.bf16.msra.mxu0 %v453
      %546 = vmatprep.subr.bf16.mxu0 0
      %547 = vmatpush1.bf16.msra.mxu0 %v454
      %548 = vmatprep.subr.bf16.mxu0 0
      %549 = vmatpush1.bf16.msra.mxu0 %v455
      %550 = vmatprep.subr.bf16.mxu0 0
      %551 = vmatpush1.bf16.msra.mxu0 %v456
      %552 = vmatprep.subr.bf16.mxu0 0
      %553 = vmatpush1.bf16.msra.mxu0 %v457
      %554 = vmatprep.subr.bf16.mxu0 0
      %555 = vmatpush1.bf16.msra.mxu0 %v458
      %556 = vmatprep.subr.bf16.mxu0 0
      %557 = vmatpush1.bf16.msra.mxu0 %v459
      %558 = vmatprep.subr.bf16.mxu0 0
      %559 = vmatpush1.bf16.msra.mxu0 %v460
      %560 = vmatprep.subr.bf16.mxu0 0
      %561 = vmatpush1.bf16.msra.mxu0 %v461
      %562 = vmatprep.subr.bf16.mxu0 0
      %563 = vmatpush1.bf16.msra.mxu0 %v462
      %564 = vmatprep.subr.bf16.mxu0 0
      %565 = vmatpush1.bf16.msra.mxu0 %v463
      %566 = vmatprep.subr.bf16.mxu0 0
      %567 = vmatpush1.bf16.msra.mxu0 %v464
      %568 = vmatprep.mubr.bf16.mxu0 %v533
      %569 = vmatmul.mubr.bf16.gmra.mrb[0].mxu0 %v532
      %v570 = vpop.f32.mrb[0].mxu0
      %v571 = vadd.f32 %v373, %v570
      %v572 = vpop.f32.mrb[0].mxu0
      %v573 = vpop.f32.mrb[0].mxu0
      %v574 = vadd.f32 %v373, %v573
      %v575 = vpop.f32.mrb[0].mxu0
      %576 = vdwg.mxu0
      %v577 = vmax.f32 %v571, 0.0
      %v578 = vmax.f32 %v574, 0.0
      %v579 = vmax.f32 %v522, %v577
      %v580 = vmax.f32 %v523, %v578
      %v581 = vld [vmem:[%s318] sm:$0xff]
      %v582 = vld [vmem:[%s318 + $0x8] sm:$0xff]
      %v585 = vunpack.c.l.b16 %v581
      %v586 = vunpack.c.h.b16 %v581
      %v587 = vunpack.c.l.b16 %v582
      %v588 = vunpack.c.h.b16 %v582
      %v589 = vpack.c.b16 %v587, %v585
      %v590 = vpack.c.b16 %v588, %v586
      %593 = vmatprep.subr.bf16.mxu0 0
      %594 = vmatpush1.bf16.msra.mxu0 %v449
      %595 = vmatprep.subr.bf16.mxu0 0
      %596 = vmatpush1.bf16.msra.mxu0 %v450
      %597 = vmatprep.subr.bf16.mxu0 0
      %598 = vmatpush1.bf16.msra.mxu0 %v451
      %599 = vmatprep.subr.bf16.mxu0 0
      %600 = vmatpush1.bf16.msra.mxu0 %v452
      %601 = vmatprep.subr.bf16.mxu0 0
      %602 = vmatpush1.bf16.msra.mxu0 %v453
      %603 = vmatprep.subr.bf16.mxu0 0
      %604 = vmatpush1.bf16.msra.mxu0 %v454
      %605 = vmatprep.subr.bf16.mxu0 0
      %606 = vmatpush1.bf16.msra.mxu0 %v455
      %607 = vmatprep.subr.bf16.mxu0 0
      %608 = vmatpush1.bf16.msra.mxu0 %v456
      %609 = vmatprep.subr.bf16.mxu0 0
      %610 = vmatpush1.bf16.msra.mxu0 %v457
      %611 = vmatprep.subr.bf16.mxu0 0
      %612 = vmatpush1.bf16.msra.mxu0 %v458
      %613 = vmatprep.subr.bf16.mxu0 0
      %614 = vmatpush1.bf16.msra.mxu0 %v459
      %615 = vmatprep.subr.bf16.mxu0 0
      %616 = vmatpush1.bf16.msra.mxu0 %v460
      %617 = vmatprep.subr.bf16.mxu0 0
      %618 = vmatpush1.bf16.msra.mxu0 %v461
      %619 = vmatprep.subr.bf16.mxu0 0
      %620 = vmatpush1.bf16.msra.mxu0 %v462
      %621 = vmatprep.subr.bf16.mxu0 0
      %622 = vmatpush1.bf16.msra.mxu0 %v463
      %623 = vmatprep.subr.bf16.mxu0 0
      %624 = vmatpush1.bf16.msra.mxu0 %v464
      %625 = vmatprep.mubr.bf16.mxu0 %v590
      %626 = vmatmul.mubr.bf16.gmra.mrb[0].mxu0 %v589
      %v627 = vpop.f32.mrb[0].mxu0
      %v628 = vadd.f32 %v373, %v627
      %v629 = vpop.f32.mrb[0].mxu0
      %v630 = vpop.f32.mrb[0].mxu0
      %v631 = vadd.f32 %v373, %v630
      %v632 = vpop.f32.mrb[0].mxu0
      %633 = vdwg.mxu0
      %v634 = vmax.f32 %v628, 0.0
      %v635 = vmax.f32 %v631, 0.0
      %v636 = vld [vmem:[%s325] sm:$0xff]
      %v637 = vld [vmem:[%s325 + $0x8] sm:$0xff]
      %v640 = vunpack.c.l.b16 %v636
      %v641 = vunpack.c.h.b16 %v636
      %v642 = vunpack.c.l.b16 %v637
      %v643 = vunpack.c.h.b16 %v637
      %v644 = vpack.c.b16 %v642, %v640
      %v645 = vpack.c.b16 %v643, %v641
      %648 = vmatprep.subr.bf16.mxu0 0
      %649 = vmatpush1.bf16.msra.mxu0 %v449
      %650 = vmatprep.subr.bf16.mxu0 0
      %651 = vmatpush1.bf16.msra.mxu0 %v450
      %652 = vmatprep.subr.bf16.mxu0 0
      %653 = vmatpush1.bf16.msra.mxu0 %v451
      %654 = vmatprep.subr.bf16.mxu0 0
      %655 = vmatpush1.bf16.msra.mxu0 %v452
      %656 = vmatprep.subr.bf16.mxu0 0
      %657 = vmatpush1.bf16.msra.mxu0 %v453
      %658 = vmatprep.subr.bf16.mxu0 0
      %659 = vmatpush1.bf16.msra.mxu0 %v454
      %660 = vmatprep.subr.bf16.mxu0 0
      %661 = vmatpush1.bf16.msra.mxu0 %v455
      %662 = vmatprep.subr.bf16.mxu0 0
      %663 = vmatpush1.bf16.msra.mxu0 %v456
      %664 = vmatprep.subr.bf16.mxu0 0
      %665 = vmatpush1.bf16.msra.mxu0 %v457
      %666 = vmatprep.subr.bf16.mxu0 0
      %667 = vmatpush1.bf16.msra.mxu0 %v458
      %668 = vmatprep.subr.bf16.mxu0 0
      %669 = vmatpush1.bf16.msra.mxu0 %v459
      %670 = vmatprep.subr.bf16.mxu0 0
      %671 = vmatpush1.bf16.msra.mxu0 %v460
      %672 = vmatprep.subr.bf16.mxu0 0
      %673 = vmatpush1.bf16.msra.mxu0 %v461
      %674 = vmatprep.subr.bf16.mxu0 0
      %675 = vmatpush1.bf16.msra.mxu0 %v462
      %676 = vmatprep.subr.bf16.mxu0 0
      %677 = vmatpush1.bf16.msra.mxu0 %v463
      %678 = vmatprep.subr.bf16.mxu0 0
      %679 = vmatpush1.bf16.msra.mxu0 %v464
      %680 = vmatprep.mubr.bf16.mxu0 %v645
      %681 = vmatmul.mubr.bf16.gmra.mrb[0].mxu0 %v644
      %v682 = vpop.f32.mrb[0].mxu0
      %v683 = vadd.f32 %v373, %v682
      %v684 = vpop.f32.mrb[0].mxu0
      %v685 = vpop.f32.mrb[0].mxu0
      %v686 = vadd.f32 %v373, %v685
      %v687 = vpop.f32.mrb[0].mxu0
      %688 = vdwg.mxu0
      %v689 = vmax.f32 %v683, 0.0
      %v690 = vmax.f32 %v686, 0.0
      %v691 = vmax.f32 %v634, %v689
      %v692 = vmax.f32 %v635, %v690
      %v693 = vmax.f32 %v579, %v691
      %v694 = vmax.f32 %v580, %v692
      %v695 = vpack.c.bf16 %v694, %v693
      %v697 = vunpack.c.l.b16 %v695
      %v698 = vunpack.c.h.b16 %v695
      %v699 = vpack.c.b16 %v697, %v697
      %v700 = vpack.c.b16 %v698, %v698
      %vm703 = vcmask 257024
      %704 = vst.msk [vmem:[%s331] sm:$0xf] %vm703, %v699
      %705 = vst.msk [vmem:[%s331 + $0x4] sm:$0xf] %vm703, %v700
      %s706 = smul.u32 2, %s17
      %p707 = scmp.lt.s32.totalorder %s706, 3
      %s708 = scalar_select %p707, %s706, 3
      %s709 = smul.addr %s708, 4
      %s710 = scalar_lea.vmem %s6, %s709
      // Predicated region
      $region45: #{forward.4} parent=43 // pred_check
        %p711 = pneg %p181
      $region46: #{forward.4} parent=43 // pred_check_branch
        %713 = sbr.rel (%p711) target = $region48
      $region47: #{forward.4} parent=43 // pred_region
        %s714 = smul.u32 2, %s17
      $region48: #{forward.4} parent=43 // pred_fallthru
        _
    $region44: #{forward.4} parent=5 // pred_fallthru
      _
    %p715 = scmp.le.s32.totalorder 2, %s12
    // Predicated region
    $region49: #{forward.4} parent=5 // pred_check
      %p716 = pneg %p715
    $region50: #{forward.4} parent=5 // pred_check_branch
      %718 = sbr.rel (%p716) target = $region52
    $region51: #{forward.4} parent=5 // pred_region
      %s719 = ssub.s32 %s12, 2
      // Predicated region
      $region53: #{forward.4} parent=51 // pred_check
        %p720 = pneg %p187
      $region54: #{forward.4} parent=51 // pred_check_branch
        %722 = sbr.rel (%p720) target = $region56
      $region55: #{forward.4} parent=51 // pred_region
        %s723 = smul.u32 2, %s18
        %p724 = scmp.lt.s32.totalorder %s723, 3
        %s725 = scalar_select %p724, %s723, 3
        %s726 = smul.addr %s725, 4
        %s727 = scalar_lea.vmem %s6, %s726
      $region56: #{forward.4} parent=51 // pred_fallthru
        _
    $region52: #{forward.4} parent=5 // pred_fallthru
      _
  $region6: #{forward.4} parent=0 // loop_footer
    %s16 = sadd.s32 1, %s12
  $region7: #{forward.4} parent=0 // loop_footer_branch
    %11 = sbr.rel target = $region3
  $region8: #{forward.4} parent=0 // loop_exit
    _

// kernel: forward.5
$region0: #{forward.5}
  #allocation0 [shape = 'u32[]', space=smem, size = 0x4, offset = 0x4, fixed_abs, tag = 'smem constant byte address 0x4 - core index']
  #allocation1 [shape = 'u32[144,128]{1,0:T(1,128)}', space=vmem, size = 0x12000, scoped, tag = 'internal scratch']
  %s0 = inlined_call_operand.vmem [shape: bf16[8,384], index: 0, kind: input, shape index: {}]
  %s1 = inlined_call_operand.vmem [shape: bf16[384,32], index: 1, kind: input, shape index: {}]
  %s2 = inlined_call_operand.vmem [shape: f32[1,32], index: 2, kind: input, shape index: {}]
  %s3 = inlined_call_operand.vmem [shape: bf16[32,128], index: 3, kind: input, shape index: {}]
  %s4 = inlined_call_operand.vmem [shape: f32[1,128], index: 4, kind: input, shape index: {}]
  %s5 = inlined_call_operand.vmem [shape: bf16[128,256], index: 5, kind: input, shape index: {}]
  %s6 = inlined_call_operand.vmem [shape: f32[1,256], index: 6, kind: input, shape index: {}]
  %s7 = inlined_call_operand.vmem [shape: bf16[256,896], index: 7, kind: input, shape index: {}]
  %s8 = inlined_call_operand.vmem [shape: f32[1,896], index: 8, kind: input, shape index: {}]
  %s9 = inlined_call_operand.vmem [shape: f32[768,768], index: 9, kind: input, shape index: {}]
  %s10 = inlined_call_operand.vmem [shape: f32[768,6], index: 10, kind: input, shape index: {}]
  %s11 = inlined_call_operand.vmem [shape: f32[8,6], index: 11, kind: output, shape index: {}]
  %s12 = sld [smem:[#allocation0]]
  $region54: #{forward.5} parent=0
    _
  %s14 = ssub.s32 1, %s12
  %s15 = scalar_select 0, %s14, %s12
  // Predicated region
  $region2: #{forward.5} parent=0 // pred_check
    _
  $region3: #{forward.5} parent=0 // pred_check_branch
    %17 = sbr.rel (0) target = $region5
  $region4: #{forward.5} parent=0 // pred_region
    _
  $region5: #{forward.5} parent=0 // pred_fallthru
    _
  // Predicated region
  $region6: #{forward.5} parent=0 // pred_check
    _
  $region7: #{forward.5} parent=0 // pred_check_branch
    %19 = sbr.rel (0) target = $region9
  $region8: #{forward.5} parent=0 // pred_region
    _
  $region9: #{forward.5} parent=0 // pred_fallthru
    _
  // Predicated region
  $region10: #{forward.5} parent=0 // pred_check
    _
  $region11: #{forward.5} parent=0 // pred_check_branch
    %21 = sbr.rel (0) target = $region13
  $region12: #{forward.5} parent=0 // pred_region
    _
  $region13: #{forward.5} parent=0 // pred_fallthru
    _
  // Predicated region
  $region14: #{forward.5} parent=0 // pred_check
    _
  $region15: #{forward.5} parent=0 // pred_check_branch
    %23 = sbr.rel (0) target = $region17
  $region16: #{forward.5} parent=0 // pred_region
    _
  $region17: #{forward.5} parent=0 // pred_fallthru
    _
  // Predicated region
  $region18: #{forward.5} parent=0 // pred_check
    _
  $region19: #{forward.5} parent=0 // pred_check_branch
    %25 = sbr.rel (0) target = $region21
  $region20: #{forward.5} parent=0 // pred_region
    _
  $region21: #{forward.5} parent=0 // pred_fallthru
    _
  // Predicated region
  $region22: #{forward.5} parent=0 // pred_check
    _
  $region23: #{forward.5} parent=0 // pred_check_branch
    %27 = sbr.rel (0) target = $region25
  $region24: #{forward.5} parent=0 // pred_region
    _
  $region25: #{forward.5} parent=0 // pred_fallthru
    _
  // Predicated region
  $region26: #{forward.5} parent=0 // pred_check
    _
  $region27: #{forward.5} parent=0 // pred_check_branch
    %29 = sbr.rel (0) target = $region29
  $region28: #{forward.5} parent=0 // pred_region
    _
  $region29: #{forward.5} parent=0 // pred_fallthru
    _
  // Predicated region
  $region30: #{forward.5} parent=0 // pred_check
    _
  $region31: #{forward.5} parent=0 // pred_check_branch
    %31 = sbr.rel (0) target = $region33
  $region32: #{forward.5} parent=0 // pred_region
    _
  $region33: #{forward.5} parent=0 // pred_fallthru
    _
  // Predicated region
  $region34: #{forward.5} parent=0 // pred_check
    _
  $region35: #{forward.5} parent=0 // pred_check_branch
    %33 = sbr.rel (0) target = $region37
  $region36: #{forward.5} parent=0 // pred_region
    _
  $region37: #{forward.5} parent=0 // pred_fallthru
    _
  // Predicated region
  $region38: #{forward.5} parent=0 // pred_check
    _
  $region39: #{forward.5} parent=0 // pred_check_branch
    %35 = sbr.rel (0) target = $region41
  $region40: #{forward.5} parent=0 // pred_region
    _
  $region41: #{forward.5} parent=0 // pred_fallthru
    _
  // Predicated region
  $region42: #{forward.5} parent=0 // pred_check
    _
  $region43: #{forward.5} parent=0 // pred_check_branch
    %37 = sbr.rel (0) target = $region45
  $region44: #{forward.5} parent=0 // pred_region
    _
  $region45: #{forward.5} parent=0 // pred_fallthru
    _
  %v39 = vld [vmem:[%s0] sm:$0xff]
  %v40 = vld [vmem:[%s0 + $0x8] sm:$0xf]
  %v41 = vld [vmem:[%s1] sm:$0xf]
  %v42 = vld [vmem:[%s1 + $0x4] sm:$0xf]
  %v43 = vld [vmem:[%s1 + $0x8] sm:$0xf]
  %v44 = vld [vmem:[%s1 + $0xc] sm:$0xf]
  %v45 = vld [vmem:[%s1 + $0x10] sm:$0xf]
  %v46 = vld [vmem:[%s1 + $0x14] sm:$0xf]
  %v47 = vld [vmem:[%s1 + $0x18] sm:$0xf]
  %v48 = vld [vmem:[%s1 + $0x1c] sm:$0xf]
  %v49 = vld [vmem:[%s1 + $0x20] sm:$0xf]
  %v50 = vld [vmem:[%s1 + $0x24] sm:$0xf]
  %v51 = vld [vmem:[%s1 + $0x28] sm:$0xf]
  %v52 = vld [vmem:[%s1 + $0x2c] sm:$0xf]
  %v53 = vld [vmem:[%s1 + $0x30] sm:$0xf]
  %v54 = vld [vmem:[%s1 + $0x34] sm:$0xf]
  %v55 = vld [vmem:[%s1 + $0x38] sm:$0xf]
  %v56 = vld [vmem:[%s1 + $0x3c] sm:$0xf]
  %v57 = vld [vmem:[%s1 + $0x40] sm:$0xf]
  %v58 = vld [vmem:[%s1 + $0x44] sm:$0xf]
  %v59 = vld [vmem:[%s1 + $0x48] sm:$0xf]
  %v60 = vld [vmem:[%s1 + $0x4c] sm:$0xf]
  %v61 = vld [vmem:[%s1 + $0x50] sm:$0xf]
  %v62 = vld [vmem:[%s1 + $0x54] sm:$0xf]
  %v63 = vld [vmem:[%s1 + $0x58] sm:$0xf]
  %v64 = vld [vmem:[%s1 + $0x5c] sm:$0xf]
  %v65 = vld [vmem:[%s1 + $0x60] sm:$0xf]
  %v66 = vld [vmem:[%s1 + $0x64] sm:$0xf]
  %v67 = vld [vmem:[%s1 + $0x68] sm:$0xf]
  %v68 = vld [vmem:[%s1 + $0x6c] sm:$0xf]
  %v69 = vld [vmem:[%s1 + $0x70] sm:$0xf]
  %v70 = vld [vmem:[%s1 + $0x74] sm:$0xf]
  %v71 = vld [vmem:[%s1 + $0x78] sm:$0xf]
  %v72 = vld [vmem:[%s1 + $0x7c] sm:$0xf]
  %v73 = vld [vmem:[%s1 + $0x80] sm:$0xf]
  %v74 = vld [vmem:[%s1 + $0x84] sm:$0xf]
  %v75 = vld [vmem:[%s1 + $0x88] sm:$0xf]
  %v76 = vld [vmem:[%s1 + $0x8c] sm:$0xf]
  %v77 = vld [vmem:[%s1 + $0x90] sm:$0xf]
  %v78 = vld [vmem:[%s1 + $0x94] sm:$0xf]
  %v79 = vld [vmem:[%s1 + $0x98] sm:$0xf]
  %v80 = vld [vmem:[%s1 + $0x9c] sm:$0xf]
  %v81 = vld [vmem:[%s1 + $0xa0] sm:$0xf]
  %v82 = vld [vmem:[%s1 + $0xa4] sm:$0xf]
  %v83 = vld [vmem:[%s1 + $0xa8] sm:$0xf]
  %v84 = vld [vmem:[%s1 + $0xac] sm:$0xf]
  %v85 = vld [vmem:[%s1 + $0xb0] sm:$0xf]
  %v86 = vld [vmem:[%s1 + $0xb4] sm:$0xf]
  %v87 = vld [vmem:[%s1 + $0xb8] sm:$0xf]
  %v88 = vld [vmem:[%s1 + $0xbc] sm:$0xf]
  %v89 = vld [vmem:[%s2] sm:$0x1]
  %v91 = vlaneseq
  %v92 = vshrl.u32 %v91, 7
  %v93 = vsub.s32 0, %v92
  %v94 = vrot.slane %v89, %v93
  %v98 = vunpack.c.l.b16 %v39
  %v99 = vunpack.c.h.b16 %v39
  %v100 = vunpack.c.l.b16 %v40
  %v101 = vpack.c.b16 %v98, %v98
  %v102 = vpack.c.b16 %v99, %v99
  %v103 = vpack.c.b16 %v100, %v100
  %v155 = vunpack.c.l.b16 %v41
  %v156 = vunpack.c.l.b16 %v42
  %v157 = vunpack.c.l.b16 %v43
  %v158 = vunpack.c.l.b16 %v44
  %v159 = vunpack.c.l.b16 %v45
  %v160 = vunpack.c.l.b16 %v46
  %v161 = vunpack.c.l.b16 %v47
  %v162 = vunpack.c.l.b16 %v48
  %v163 = vunpack.c.l.b16 %v49
  %v164 = vunpack.c.l.b16 %v50
  %v165 = vunpack.c.l.b16 %v51
  %v166 = vunpack.c.l.b16 %v52
  %v167 = vunpack.c.l.b16 %v53
  %v168 = vunpack.c.l.b16 %v54
  %v169 = vunpack.c.l.b16 %v55
  %v170 = vunpack.c.l.b16 %v56
  %v171 = vunpack.c.l.b16 %v57
  %v172 = vunpack.c.l.b16 %v58
  %v173 = vunpack.c.l.b16 %v59
  %v174 = vunpack.c.l.b16 %v60
  %v175 = vunpack.c.l.b16 %v61
  %v176 = vunpack.c.l.b16 %v62
  %v177 = vunpack.c.l.b16 %v63
  %v178 = vunpack.c.l.b16 %v64
  %v179 = vunpack.c.l.b16 %v65
  %v180 = vunpack.c.l.b16 %v66
  %v181 = vunpack.c.l.b16 %v67
  %v182 = vunpack.c.l.b16 %v68
  %v183 = vunpack.c.l.b16 %v69
  %v184 = vunpack.c.l.b16 %v70
  %v185 = vunpack.c.l.b16 %v71
  %v186 = vunpack.c.l.b16 %v72
  %v187 = vunpack.c.l.b16 %v73
  %v188 = vunpack.c.l.b16 %v74
  %v189 = vunpack.c.l.b16 %v75
  %v190 = vunpack.c.l.b16 %v76
  %v191 = vunpack.c.l.b16 %v77
  %v192 = vunpack.c.l.b16 %v78
  %v193 = vunpack.c.l.b16 %v79
  %v194 = vunpack.c.l.b16 %v80
  %v195 = vunpack.c.l.b16 %v81
  %v196 = vunpack.c.l.b16 %v82
  %v197 = vunpack.c.l.b16 %v83
  %v198 = vunpack.c.l.b16 %v84
  %v199 = vunpack.c.l.b16 %v85
  %v200 = vunpack.c.l.b16 %v86
  %v201 = vunpack.c.l.b16 %v87
  %v202 = vunpack.c.l.b16 %v88
  %v203 = vpack.c.b16 %v156, %v155
  %v204 = vpack.c.b16 %v158, %v157
  %v205 = vpack.c.b16 %v160, %v159
  %v206 = vpack.c.b16 %v162, %v161
  %v207 = vpack.c.b16 %v164, %v163
  %v208 = vpack.c.b16 %v166, %v165
  %v209 = vpack.c.b16 %v168, %v167
  %v210 = vpack.c.b16 %v170, %v169
  %v211 = vpack.c.b16 %v172, %v171
  %v212 = vpack.c.b16 %v174, %v173
  %v213 = vpack.c.b16 %v176, %v175
  %v214 = vpack.c.b16 %v178, %v177
  %v215 = vpack.c.b16 %v180, %v179
  %v216 = vpack.c.b16 %v182, %v181
  %v217 = vpack.c.b16 %v184, %v183
  %v218 = vpack.c.b16 %v186, %v185
  %v219 = vpack.c.b16 %v188, %v187
  %v220 = vpack.c.b16 %v190, %v189
  %v221 = vpack.c.b16 %v192, %v191
  %v222 = vpack.c.b16 %v194, %v193
  %v223 = vpack.c.b16 %v196, %v195
  %v224 = vpack.c.b16 %v198, %v197
  %v225 = vpack.c.b16 %v200, %v199
  %v226 = vpack.c.b16 %v202, %v201
  %251 = vmatprep.subr.bf16.mxu0 0
  %252 = vmatpush1.bf16.msra.mxu0 %v203
  %253 = vmatprep.subr.bf16.mxu0 0
  %254 = vmatpush1.bf16.msra.mxu0 %v204
  %255 = vmatprep.subr.bf16.mxu0 0
  %256 = vmatpush1.bf16.msra.mxu0 %v205
  %257 = vmatprep.subr.bf16.mxu0 0
  %258 = vmatpush1.bf16.msra.mxu0 %v206
  %259 = vmatprep.subr.bf16.mxu0 0
  %260 = vmatpush1.bf16.msra.mxu0 %v207
  %261 = vmatprep.subr.bf16.mxu0 0
  %262 = vmatpush1.bf16.msra.mxu0 %v208
  %263 = vmatprep.subr.bf16.mxu0 0
  %264 = vmatpush1.bf16.msra.mxu0 %v209
  %265 = vmatprep.subr.bf16.mxu0 0
  %266 = vmatpush1.bf16.msra.mxu0 %v210
  %267 = vmatprep.subr.bf16.mxu0 0
  %268 = vmatpush1.bf16.msra.mxu0 %v211
  %269 = vmatprep.subr.bf16.mxu0 0
  %270 = vmatpush1.bf16.msra.mxu0 %v212
  %271 = vmatprep.subr.bf16.mxu0 0
  %272 = vmatpush1.bf16.msra.mxu0 %v213
  %273 = vmatprep.subr.bf16.mxu0 0
  %274 = vmatpush1.bf16.msra.mxu0 %v214
  %275 = vmatprep.subr.bf16.mxu0 0
  %276 = vmatpush1.bf16.msra.mxu0 %v215
  %277 = vmatprep.subr.bf16.mxu0 0
  %278 = vmatpush1.bf16.msra.mxu0 %v216
  %279 = vmatprep.subr.bf16.mxu0 0
  %280 = vmatpush1.bf16.msra.mxu0 %v217
  %281 = vmatprep.subr.bf16.mxu0 0
  %282 = vmatpush1.bf16.msra.mxu0 %v218
  %283 = vmatprep.mubr.bf16.mxu0 %v102
  %284 = vmatmul.mubr.bf16.gmra.mrb[0].mxu0 %v101
  %v285 = vpop.f32.mrb[0].mxu0
  %v286 = vadd.f32 %v94, %v285
  %v287 = vpop.f32.mrb[0].mxu0
  %v288 = vpop.f32.mrb[0].mxu0
  %v289 = vpop.f32.mrb[0].mxu0
  %290 = vdwg.mxu0
  %291 = vmatprep.subr.bf16.mxu0 0
  %292 = vmatpush1.bf16.msra.mxu0 %v219
  %293 = vmatprep.subr.bf16.mxu0 0
  %294 = vmatpush1.bf16.msra.mxu0 %v220
  %295 = vmatprep.subr.bf16.mxu0 0
  %296 = vmatpush1.bf16.msra.mxu0 %v221
  %297 = vmatprep.subr.bf16.mxu0 0
  %298 = vmatpush1.bf16.msra.mxu0 %v222
  %299 = vmatprep.subr.bf16.mxu0 0
  %300 = vmatpush1.bf16.msra.mxu0 %v223
  %301 = vmatprep.subr.bf16.mxu0 0
  %302 = vmatpush1.bf16.msra.mxu0 %v224
  %303 = vmatprep.subr.bf16.mxu0 0
  %304 = vmatpush1.bf16.msra.mxu0 %v225
  %305 = vmatprep.subr.bf16.mxu0 0
  %306 = vmatpush1.bf16.msra.mxu0 %v226
  %307 = vmatprep.subr.bf16.mxu0 0
  %308 = vmatpush1.bf16.msra.mxu0 0
  %309 = vmatprep.subr.bf16.mxu0 0
  %310 = vmatpush1.bf16.msra.mxu0 0
  %311 = vmatprep.subr.bf16.mxu0 0
  %312 = vmatpush1.bf16.msra.mxu0 0
  %313 = vmatprep.subr.bf16.mxu0 0
  %314 = vmatpush1.bf16.msra.mxu0 0
  %315 = vmatprep.subr.bf16.mxu0 0
  %316 = vmatpush1.bf16.msra.mxu0 0
  %317 = vmatprep.subr.bf16.mxu0 0
  %318 = vmatpush1.bf16.msra.mxu0 0
  %319 = vmatprep.subr.bf16.mxu0 0
  %320 = vmatpush1.bf16.msra.mxu0 0
  %321 = vmatprep.subr.bf16.mxu0 0
  %322 = vmatpush1.bf16.msra.mxu0 0
  %323 = vmatprep.mubr.bf16.mxu0 0
  %324 = vmatmul.mubr.bf16.gmra.mrb[0].mxu0 %v103
  %v325 = vpop.f32.mrb[0].mxu0
  %v326 = vadd.f32 %v286, %v325
  %v327 = vpop.f32.mrb[0].mxu0
  %v328 = vpop.f32.mrb[0].mxu0
  %v329 = vpop.f32.mrb[0].mxu0
  %330 = vdwg.mxu0
  %v331 = vmax.f32 %v326, 0.0
  %v332 = vpack.c.bf16 %v331, %v331
  %v333 = vld [vmem:[%s3] sm:$0xf]
  %v334 = vld [vmem:[%s3 + $0x4] sm:$0xf]
  %v335 = vld [vmem:[%s3 + $0x8] sm:$0xf]
  %v336 = vld [vmem:[%s3 + $0xc] sm:$0xf]
  %v337 = vld [vmem:[%s4] sm:$0x1]
  %v339 = vlaneseq
  %v340 = vshrl.u32 %v339, 7
  %v341 = vsub.s32 0, %v340
  %v342 = vrot.slane %v337, %v341
  %v348 = vunpack.c.l.b16 %v333
  %v349 = vunpack.c.l.b16 %v334
  %v350 = vunpack.c.l.b16 %v335
  %v351 = vunpack.c.l.b16 %v336
  %v352 = vpack.c.b16 %v349, %v348
  %v353 = vpack.c.b16 %v351, %v350
  %vm356 = vcmask 261120
  %v358 = vsel %vm356, %v332, 0
  %360 = vmatprep.subr.bf16.mxu0 0
  %361 = vmatpush1.bf16.msra.mxu0 %v352
  %362 = vmatprep.subr.bf16.mxu0 0
  %363 = vmatpush1.bf16.msra.mxu0 %v353
  %364 = vmatprep.subr.bf16.mxu0 0
  %365 = vmatpush1.bf16.msra.mxu0 0
  %366 = vmatprep.subr.bf16.mxu0 0
  %367 = vmatpush1.bf16.msra.mxu0 0
  %368 = vmatprep.subr.bf16.mxu0 0
  %369 = vmatpush1.bf16.msra.mxu0 0
  %370 = vmatprep.subr.bf16.mxu0 0
  %371 = vmatpush1.bf16.msra.mxu0 0
  %372 = vmatprep.subr.bf16.mxu0 0
  %373 = vmatpush1.bf16.msra.mxu0 0
  %374 = vmatprep.subr.bf16.mxu0 0
  %375 = vmatpush1.bf16.msra.mxu0 0
  %376 = vmatprep.subr.bf16.mxu0 0
  %377 = vmatpush1.bf16.msra.mxu0 0
  %378 = vmatprep.subr.bf16.mxu0 0
  %379 = vmatpush1.bf16.msra.mxu0 0
  %380 = vmatprep.subr.bf16.mxu0 0
  %381 = vmatpush1.bf16.msra.mxu0 0
  %382 = vmatprep.subr.bf16.mxu0 0
  %383 = vmatpush1.bf16.msra.mxu0 0
  %384 = vmatprep.subr.bf16.mxu0 0
  %385 = vmatpush1.bf16.msra.mxu0 0
  %386 = vmatprep.subr.bf16.mxu0 0
  %387 = vmatpush1.bf16.msra.mxu0 0
  %388 = vmatprep.subr.bf16.mxu0 0
  %389 = vmatpush1.bf16.msra.mxu0 0
  %390 = vmatprep.subr.bf16.mxu0 0
  %391 = vmatpush1.bf16.msra.mxu0 0
  %392 = vmatprep.mubr.bf16.mxu0 0
  %393 = vmatmul.mubr.bf16.gmra.mrb[0].mxu0 %v358
  %v394 = vpop.f32.mrb[0].mxu0
  %v395 = vadd.f32 %v342, %v394
  %v396 = vpop.f32.mrb[0].mxu0
  %v397 = vpop.f32.mrb[0].mxu0
  %v398 = vpop.f32.mrb[0].mxu0
  %399 = vdwg.mxu0
  %v400 = vmax.f32 %v395, 0.0
  %v401 = vpack.c.bf16 %v400, %v400
  %v402 = vld [vmem:[%s5] sm:$0xff]
  %v403 = vld [vmem:[%s5 + $0x8] sm:$0xff]
  %v404 = vld [vmem:[%s5 + $0x10] sm:$0xff]
  %v405 = vld [vmem:[%s5 + $0x18] sm:$0xff]
  %v406 = vld [vmem:[%s5 + $0x20] sm:$0xff]
  %v407 = vld [vmem:[%s5 + $0x28] sm:$0xff]
  %v408 = vld [vmem:[%s5 + $0x30] sm:$0xff]
  %v409 = vld [vmem:[%s5 + $0x38] sm:$0xff]
  %v410 = vld [vmem:[%s5 + $0x40] sm:$0xff]
  %v411 = vld [vmem:[%s5 + $0x48] sm:$0xff]
  %v412 = vld [vmem:[%s5 + $0x50] sm:$0xff]
  %v413 = vld [vmem:[%s5 + $0x58] sm:$0xff]
  %v414 = vld [vmem:[%s5 + $0x60] sm:$0xff]
  %v415 = vld [vmem:[%s5 + $0x68] sm:$0xff]
  %v416 = vld [vmem:[%s5 + $0x70] sm:$0xff]
  %v417 = vld [vmem:[%s5 + $0x78] sm:$0xff]
  %v418 = vld [vmem:[%s6] sm:$0x3]
  %v420 = vlaneseq
  %v421 = vshrl.u32 %v420, 7
  %v422 = vsub.s32 0, %v421
  %v423 = vrot.slane %v418, %v422
  %v424 = vlaneseq
  %v425 = vshrl.u32 %v424, 7
  %v426 = vsub.s32 1, %v425
  %v427 = vrot.slane %v418, %v426
  %v446 = vunpack.c.l.b16 %v402
  %v447 = vunpack.c.h.b16 %v402
  %v448 = vunpack.c.l.b16 %v403
  %v449 = vunpack.c.h.b16 %v403
  %v450 = vunpack.c.l.b16 %v404
  %v451 = vunpack.c.h.b16 %v404
  %v452 = vunpack.c.l.b16 %v405
  %v453 = vunpack.c.h.b16 %v405
  %v454 = vunpack.c.l.b16 %v406
  %v455 = vunpack.c.h.b16 %v406
  %v456 = vunpack.c.l.b16 %v407
  %v457 = vunpack.c.h.b16 %v407
  %v458 = vunpack.c.l.b16 %v408
  %v459 = vunpack.c.h.b16 %v408
  %v460 = vunpack.c.l.b16 %v409
  %v461 = vunpack.c.h.b16 %v409
  %v462 = vunpack.c.l.b16 %v410
  %v463 = vunpack.c.h.b16 %v410
  %v464 = vunpack.c.l.b16 %v411
  %v465 = vunpack.c.h.b16 %v411
  %v466 = vunpack.c.l.b16 %v412
  %v467 = vunpack.c.h.b16 %v412
  %v468 = vunpack.c.l.b16 %v413
  %v469 = vunpack.c.h.b16 %v413
  %v470 = vunpack.c.l.b16 %v414
  %v471 = vunpack.c.h.b16 %v414
  %v472 = vunpack.c.l.b16 %v415
  %v473 = vunpack.c.h.b16 %v415
  %v474 = vunpack.c.l.b16 %v416
  %v475 = vunpack.c.h.b16 %v416
  %v476 = vunpack.c.l.b16 %v417
  %v477 = vunpack.c.h.b16 %v417
  %v478 = vpack.c.b16 %v448, %v446
  %v479 = vpack.c.b16 %v449, %v447
  %v480 = vpack.c.b16 %v452, %v450
  %v481 = vpack.c.b16 %v453, %v451
  %v482 = vpack.c.b16 %v456, %v454
  %v483 = vpack.c.b16 %v457, %v455
  %v484 = vpack.c.b16 %v460, %v458
  %v485 = vpack.c.b16 %v461, %v459
  %v486 = vpack.c.b16 %v464, %v462
  %v487 = vpack.c.b16 %v465, %v463
  %v488 = vpack.c.b16 %v468, %v466
  %v489 = vpack.c.b16 %v469, %v467
  %v490 = vpack.c.b16 %v472, %v470
  %v491 = vpack.c.b16 %v473, %v471
  %v492 = vpack.c.b16 %v476, %v474
  %v493 = vpack.c.b16 %v477, %v475
  %510 = vmatprep.subr.bf16.mxu0 %v479
  %511 = vmatpush1.bf16.msra.mxu0 %v478
  %512 = vmatprep.subr.bf16.mxu0 %v481
  %513 = vmatpush1.bf16.msra.mxu0 %v480
  %514 = vmatprep.subr.bf16.mxu0 %v483
  %515 = vmatpush1.bf16.msra.mxu0 %v482
  %516 = vmatprep.subr.bf16.mxu0 %v485
  %517 = vmatpush1.bf16.msra.mxu0 %v484
  %518 = vmatprep.subr.bf16.mxu0 %v487
  %519 = vmatpush1.bf16.msra.mxu0 %v486
  %520 = vmatprep.subr.bf16.mxu0 %v489
  %521 = vmatpush1.bf16.msra.mxu0 %v488
  %522 = vmatprep.subr.bf16.mxu0 %v491
  %523 = vmatpush1.bf16.msra.mxu0 %v490
  %524 = vmatprep.subr.bf16.mxu0 %v493
  %525 = vmatpush1.bf16.msra.mxu0 %v492
  %526 = vmatprep.subr.bf16.mxu0 0
  %527 = vmatpush1.bf16.msra.mxu0 0
  %528 = vmatprep.subr.bf16.mxu0 0
  %529 = vmatpush1.bf16.msra.mxu0 0
  %530 = vmatprep.subr.bf16.mxu0 0
  %531 = vmatpush1.bf16.msra.mxu0 0
  %532 = vmatprep.subr.bf16.mxu0 0
  %533 = vmatpush1.bf16.msra.mxu0 0
  %534 = vmatprep.subr.bf16.mxu0 0
  %535 = vmatpush1.bf16.msra.mxu0 0
  %536 = vmatprep.subr.bf16.mxu0 0
  %537 = vmatpush1.bf16.msra.mxu0 0
  %538 = vmatprep.subr.bf16.mxu0 0
  %539 = vmatpush1.bf16.msra.mxu0 0
  %540 = vmatprep.subr.bf16.mxu0 0
  %541 = vmatpush1.bf16.msra.mxu0 0
  %542 = vmatprep.mubr.bf16.mxu0 0
  %543 = vmatmul.mubr.bf16.gmra.mrb[0].mxu0 %v401
  %v544 = vpop.f32.mrb[0].mxu0
  %v545 = vadd.f32 %v423, %v544
  %v546 = vpop.f32.mrb[0].mxu0
  %v547 = vadd.f32 %v427, %v546
  %v548 = vpop.f32.mrb[0].mxu0
  %v549 = vpop.f32.mrb[0].mxu0
  %550 = vdwg.mxu0
  %v551 = vmax.f32 %v545, 0.0
  %v552 = vmax.f32 %v547, 0.0
  %v553 = vpack.c.bf16 %v551, %v551
  %v554 = vpack.c.bf16 %v552, %v552
  %v555 = vld [vmem:[%s7] sm:$0xff]
  %v556 = vld [vmem:[%s7 + $0x8] sm:$0xff]
  %v557 = vld [vmem:[%s7 + $0x10] sm:$0xff]
  %v558 = vld [vmem:[%s7 + $0x18] sm:$0xf]
  %v559 = vld [vmem:[%s7 + $0x1c] sm:$0xff]
  %v560 = vld [vmem:[%s7 + $0x24] sm:$0xff]
  %v561 = vld [vmem:[%s7 + $0x2c] sm:$0xff]
  %v562 = vld [vmem:[%s7 + $0x34] sm:$0xf]
  %v563 = vld [vmem:[%s7 + $0x38] sm:$0xff]
  %v564 = vld [vmem:[%s7 + $0x40] sm:$0xff]
  %v565 = vld [vmem:[%s7 + $0x48] sm:$0xff]
  %v566 = vld [vmem:[%s7 + $0x50] sm:$0xf]
  %v567 = vld [vmem:[%s7 + $0x54] sm:$0xff]
  %v568 = vld [vmem:[%s7 + $0x5c] sm:$0xff]
  %v569 = vld [vmem:[%s7 + $0x64] sm:$0xff]
  %v570 = vld [vmem:[%s7 + $0x6c] sm:$0xf]
  %v571 = vld [vmem:[%s7 + $0x70] sm:$0xff]
  %v572 = vld [vmem:[%s7 + $0x78] sm:$0xff]
  %v573 = vld [vmem:[%s7 + $0x80] sm:$0xff]
  %v574 = vld [vmem:[%s7 + $0x88] sm:$0xf]
  %v575 = vld [vmem:[%s7 + $0x8c] sm:$0xff]
  %v576 = vld [vmem:[%s7 + $0x94] sm:$0xff]
  %v577 = vld [vmem:[%s7 + $0x9c] sm:$0xff]
  %v578 = vld [vmem:[%s7 + $0xa4] sm:$0xf]
  %v579 = vld [vmem:[%s7 + $0xa8] sm:$0xff]
  %v580 = vld [vmem:[%s7 + $0xb0] sm:$0xff]
  %v581 = vld [vmem:[%s7 + $0xb8] sm:$0xff]
  %v582 = vld [vmem:[%s7 + $0xc0] sm:$0xf]
  %v583 = vld [vmem:[%s7 + $0xc4] sm:$0xff]
  %v584 = vld [vmem:[%s7 + $0xcc] sm:$0xff]
  %v585 = vld [vmem:[%s7 + $0xd4] sm:$0xff]
  %v586 = vld [vmem:[%s7 + $0xdc] sm:$0xf]
  %v587 = vld [vmem:[%s7 + $0xe0] sm:$0xff]
  %v588 = vld [vmem:[%s7 + $0xe8] sm:$0xff]
  %v589 = vld [vmem:[%s7 + $0xf0] sm:$0xff]
  %v590 = vld [vmem:[%s7 + $0xf8] sm:$0xf]
  %v591 = vld [vmem:[%s7 + $0xfc] sm:$0xff]
  %v592 = vld [vmem:[%s7 + $0x104] sm:$0xff]
  %v593 = vld [vmem:[%s7 + $0x10c] sm:$0xff]
  %v594 = vld [vmem:[%s7 + $0x114] sm:$0xf]
  %v595 = vld [vmem:[%s7 + $0x118] sm:$0xff]
  %v596 = vld [vmem:[%s7 + $0x120] sm:$0xff]
  %v597 = vld [vmem:[%s7 + $0x128] sm:$0xff]
  %v598 = vld [vmem:[%s7 + $0x130] sm:$0xf]
  %v599 = vld [vmem:[%s7 + $0x134] sm:$0xff]
  %v600 = vld [vmem:[%s7 + $0x13c] sm:$0xff]
  %v601 = vld [vmem:[%s7 + $0x144] sm:$0xff]
  %v602 = vld [vmem:[%s7 + $0x14c] sm:$0xf]
  %v603 = vld [vmem:[%s7 + $0x150] sm:$0xff]
  %v604 = vld [vmem:[%s7 + $0x158] sm:$0xff]
  %v605 = vld [vmem:[%s7 + $0x160] sm:$0xff]
  %v606 = vld [vmem:[%s7 + $0x168] sm:$0xf]
  %v607 = vld [vmem:[%s7 + $0x16c] sm:$0xff]
  %v608 = vld [vmem:[%s7 + $0x174] sm:$0xff]
  %v609 = vld [vmem:[%s7 + $0x17c] sm:$0xff]
  %v610 = vld [vmem:[%s7 + $0x184] sm:$0xf]
  %v611 = vld [vmem:[%s7 + $0x188] sm:$0xff]
  %v612 = vld [vmem:[%s7 + $0x190] sm:$0xff]
  %v613 = vld [vmem:[%s7 + $0x198] sm:$0xff]
  %v614 = vld [vmem:[%s7 + $0x1a0] sm:$0xf]
  %v615 = vld [vmem:[%s7 + $0x1a4] sm:$0xff]
  %v616 = vld [vmem:[%s7 + $0x1ac] sm:$0xff]
  %v617 = vld [vmem:[%s7 + $0x1b4] sm:$0xff]
  %v618 = vld [vmem:[%s7 + $0x1bc] sm:$0xf]
  %v619 = vld [vmem:[%s7 + $0x1c0] sm:$0xff]
  %v620 = vld [vmem:[%s7 + $0x1c8] sm:$0xff]
  %v621 = vld [vmem:[%s7 + $0x1d0] sm:$0xff]
  %v622 = vld [vmem:[%s7 + $0x1d8] sm:$0xf]
  %v623 = vld [vmem:[%s7 + $0x1dc] sm:$0xff]
  %v624 = vld [vmem:[%s7 + $0x1e4] sm:$0xff]
  %v625 = vld [vmem:[%s7 + $0x1ec] sm:$0xff]
  %v626 = vld [vmem:[%s7 + $0x1f4] sm:$0xf]
  %v627 = vld [vmem:[%s7 + $0x1f8] sm:$0xff]
  %v628 = vld [vmem:[%s7 + $0x200] sm:$0xff]
  %v629 = vld [vmem:[%s7 + $0x208] sm:$0xff]
  %v630 = vld [vmem:[%s7 + $0x210] sm:$0xf]
  %v631 = vld [vmem:[%s7 + $0x214] sm:$0xff]
  %v632 = vld [vmem:[%s7 + $0x21c] sm:$0xff]
  %v633 = vld [vmem:[%s7 + $0x224] sm:$0xff]
  %v634 = vld [vmem:[%s7 + $0x22c] sm:$0xf]
  %v635 = vld [vmem:[%s7 + $0x230] sm:$0xff]
  %v636 = vld [vmem:[%s7 + $0x238] sm:$0xff]
  %v637 = vld [vmem:[%s7 + $0x240] sm:$0xff]
  %v638 = vld [vmem:[%s7 + $0x248] sm:$0xf]
  %v639 = vld [vmem:[%s7 + $0x24c] sm:$0xff]
  %v640 = vld [vmem:[%s7 + $0x254] sm:$0xff]
  %v641 = vld [vmem:[%s7 + $0x25c] sm:$0xff]
  %v642 = vld [vmem:[%s7 + $0x264] sm:$0xf]
  %v643 = vld [vmem:[%s7 + $0x268] sm:$0xff]
  %v644 = vld [vmem:[%s7 + $0x270] sm:$0xff]
  %v645 = vld [vmem:[%s7 + $0x278] sm:$0xff]
  %v646 = vld [vmem:[%s7 + $0x280] sm:$0xf]
  %v647 = vld [vmem:[%s7 + $0x284] sm:$0xff]
  %v648 = vld [vmem:[%s7 + $0x28c] sm:$0xff]
  %v649 = vld [vmem:[%s7 + $0x294] sm:$0xff]
  %v650 = vld [vmem:[%s7 + $0x29c] sm:$0xf]
  %v651 = vld [vmem:[%s7 + $0x2a0] sm:$0xff]
  %v652 = vld [vmem:[%s7 + $0x2a8] sm:$0xff]
  %v653 = vld [vmem:[%s7 + $0x2b0] sm:$0xff]
  %v654 = vld [vmem:[%s7 + $0x2b8] sm:$0xf]
  %v655 = vld [vmem:[%s7 + $0x2bc] sm:$0xff]
  %v656 = vld [vmem:[%s7 + $0x2c4] sm:$0xff]
  %v657 = vld [vmem:[%s7 + $0x2cc] sm:$0xff]
  %v658 = vld [vmem:[%s7 + $0x2d4] sm:$0xf]
  %v659 = vld [vmem:[%s7 + $0x2d8] sm:$0xff]
  %v660 = vld [vmem:[%s7 + $0x2e0] sm:$0xff]
  %v661 = vld [vmem:[%s7 + $0x2e8] sm:$0xff]
  %v662 = vld [vmem:[%s7 + $0x2f0] sm:$0xf]
  %v663 = vld [vmem:[%s7 + $0x2f4] sm:$0xff]
  %v664 = vld [vmem:[%s7 + $0x2fc] sm:$0xff]
  %v665 = vld [vmem:[%s7 + $0x304] sm:$0xff]
  %v666 = vld [vmem:[%s7 + $0x30c] sm:$0xf]
  %v667 = vld [vmem:[%s7 + $0x310] sm:$0xff]
  %v668 = vld [vmem:[%s7 + $0x318] sm:$0xff]
  %v669 = vld [vmem:[%s7 + $0x320] sm:$0xff]
  %v670 = vld [vmem:[%s7 + $0x328] sm:$0xf]
  %v671 = vld [vmem:[%s7 + $0x32c] sm:$0xff]
  %v672 = vld [vmem:[%s7 + $0x334] sm:$0xff]
  %v673 = vld [vmem:[%s7 + $0x33c] sm:$0xff]
  %v674 = vld [vmem:[%s7 + $0x344] sm:$0xf]
  %v675 = vld [vmem:[%s7 + $0x348] sm:$0xff]
  %v676 = vld [vmem:[%s7 + $0x350] sm:$0xff]
  %v677 = vld [vmem:[%s7 + $0x358] sm:$0xff]
  %v678 = vld [vmem:[%s7 + $0x360] sm:$0xf]
  %v679 = vld [vmem:[%s7 + $0x364] sm:$0xff]
  %v680 = vld [vmem:[%s7 + $0x36c] sm:$0xff]
  %v681 = vld [vmem:[%s7 + $0x374] sm:$0xff]
  %v682 = vld [vmem:[%s7 + $0x37c] sm:$0xf]
  %v683 = vld [vmem:[%s8] sm:$0xff]
  %v685 = vlaneseq
  %v686 = vshrl.u32 %v685, 7
  %v687 = vsub.s32 0, %v686
  %v688 = vrot.slane %v683, %v687
  %v689 = vlaneseq
  %v690 = vshrl.u32 %v689, 7
  %v691 = vsub.s32 1, %v690
  %v692 = vrot.slane %v683, %v691
  %v693 = vlaneseq
  %v694 = vshrl.u32 %v693, 7
  %v695 = vsub.s32 2, %v694
  %v696 = vrot.slane %v683, %v695
  %v697 = vlaneseq
  %v698 = vshrl.u32 %v697, 7
  %v699 = vsub.s32 3, %v698
  %v700 = vrot.slane %v683, %v699
  %v701 = vlaneseq
  %v702 = vshrl.u32 %v701, 7
  %v703 = vsub.s32 4, %v702
  %v704 = vrot.slane %v683, %v703
  %v705 = vlaneseq
  %v706 = vshrl.u32 %v705, 7
  %v707 = vsub.s32 5, %v706
  %v708 = vrot.slane %v683, %v707
  %v709 = vlaneseq
  %v710 = vshrl.u32 %v709, 7
  %v711 = vsub.s32 6, %v710
  %v712 = vrot.slane %v683, %v711
  %v848 = vunpack.c.l.b16 %v555
  %v849 = vunpack.c.h.b16 %v555
  %v850 = vunpack.c.l.b16 %v556
  %v851 = vunpack.c.h.b16 %v556
  %v852 = vunpack.c.l.b16 %v557
  %v853 = vunpack.c.h.b16 %v557
  %v854 = vunpack.c.l.b16 %v558
  %v855 = vunpack.c.l.b16 %v559
  %v856 = vunpack.c.h.b16 %v559
  %v857 = vunpack.c.l.b16 %v560
  %v858 = vunpack.c.h.b16 %v560
  %v859 = vunpack.c.l.b16 %v561
  %v860 = vunpack.c.h.b16 %v561
  %v861 = vunpack.c.l.b16 %v562
  %v862 = vunpack.c.l.b16 %v563
  %v863 = vunpack.c.h.b16 %v563
  %v864 = vunpack.c.l.b16 %v564
  %v865 = vunpack.c.h.b16 %v564
  %v866 = vunpack.c.l.b16 %v565
  %v867 = vunpack.c.h.b16 %v565
  %v868 = vunpack.c.l.b16 %v566
  %v869 = vunpack.c.l.b16 %v567
  %v870 = vunpack.c.h.b16 %v567
  %v871 = vunpack.c.l.b16 %v568
  %v872 = vunpack.c.h.b16 %v568
  %v873 = vunpack.c.l.b16 %v569
  %v874 = vunpack.c.h.b16 %v569
  %v875 = vunpack.c.l.b16 %v570
  %v876 = vunpack.c.l.b16 %v571
  %v877 = vunpack.c.h.b16 %v571
  %v878 = vunpack.c.l.b16 %v572
  %v879 = vunpack.c.h.b16 %v572
  %v880 = vunpack.c.l.b16 %v573
  %v881 = vunpack.c.h.b16 %v573
  %v882 = vunpack.c.l.b16 %v574
  %v883 = vunpack.c.l.b16 %v575
  %v884 = vunpack.c.h.b16 %v575
  %v885 = vunpack.c.l.b16 %v576
  %v886 = vunpack.c.h.b16 %v576
  %v887 = vunpack.c.l.b16 %v577
  %v888 = vunpack.c.h.b16 %v577
  %v889 = vunpack.c.l.b16 %v578
  %v890 = vunpack.c.l.b16 %v579
  %v891 = vunpack.c.h.b16 %v579
  %v892 = vunpack.c.l.b16 %v580
  %v893 = vunpack.c.h.b16 %v580
  %v894 = vunpack.c.l.b16 %v581
  %v895 = vunpack.c.h.b16 %v581
  %v896 = vunpack.c.l.b16 %v582
  %v897 = vunpack.c.l.b16 %v583
  %v898 = vunpack.c.h.b16 %v583
  %v899 = vunpack.c.l.b16 %v584
  %v900 = vunpack.c.h.b16 %v584
  %v901 = vunpack.c.l.b16 %v585
  %v902 = vunpack.c.h.b16 %v585
  %v903 = vunpack.c.l.b16 %v586
  %v904 = vunpack.c.l.b16 %v587
  %v905 = vunpack.c.h.b16 %v587
  %v906 = vunpack.c.l.b16 %v588
  %v907 = vunpack.c.h.b16 %v588
  %v908 = vunpack.c.l.b16 %v589
  %v909 = vunpack.c.h.b16 %v589
  %v910 = vunpack.c.l.b16 %v590
  %v911 = vunpack.c.l.b16 %v591
  %v912 = vunpack.c.h.b16 %v591
  %v913 = vunpack.c.l.b16 %v592
  %v914 = vunpack.c.h.b16 %v592
  %v915 = vunpack.c.l.b16 %v593
  %v916 = vunpack.c.h.b16 %v593
  %v917 = vunpack.c.l.b16 %v594
  %v918 = vunpack.c.l.b16 %v595
  %v919 = vunpack.c.h.b16 %v595
  %v920 = vunpack.c.l.b16 %v596
  %v921 = vunpack.c.h.b16 %v596
  %v922 = vunpack.c.l.b16 %v597
  %v923 = vunpack.c.h.b16 %v597
  %v924 = vunpack.c.l.b16 %v598
  %v925 = vunpack.c.l.b16 %v599
  %v926 = vunpack.c.h.b16 %v599
  %v927 = vunpack.c.l.b16 %v600
  %v928 = vunpack.c.h.b16 %v600
  %v929 = vunpack.c.l.b16 %v601
  %v930 = vunpack.c.h.b16 %v601
  %v931 = vunpack.c.l.b16 %v602
  %v932 = vunpack.c.l.b16 %v603
  %v933 = vunpack.c.h.b16 %v603
  %v934 = vunpack.c.l.b16 %v604
  %v935 = vunpack.c.h.b16 %v604
  %v936 = vunpack.c.l.b16 %v605
  %v937 = vunpack.c.h.b16 %v605
  %v938 = vunpack.c.l.b16 %v606
  %v939 = vunpack.c.l.b16 %v607
  %v940 = vunpack.c.h.b16 %v607
  %v941 = vunpack.c.l.b16 %v608
  %v942 = vunpack.c.h.b16 %v608
  %v943 = vunpack.c.l.b16 %v609
  %v944 = vunpack.c.h.b16 %v609
  %v945 = vunpack.c.l.b16 %v610
  %v946 = vunpack.c.l.b16 %v611
  %v947 = vunpack.c.h.b16 %v611
  %v948 = vunpack.c.l.b16 %v612
  %v949 = vunpack.c.h.b16 %v612
  %v950 = vunpack.c.l.b16 %v613
  %v951 = vunpack.c.h.b16 %v613
  %v952 = vunpack.c.l.b16 %v614
  %v953 = vunpack.c.l.b16 %v615
  %v954 = vunpack.c.h.b16 %v615
  %v955 = vunpack.c.l.b16 %v616
  %v956 = vunpack.c.h.b16 %v616
  %v957 = vunpack.c.l.b16 %v617
  %v958 = vunpack.c.h.b16 %v617
  %v959 = vunpack.c.l.b16 %v618
  %v960 = vunpack.c.l.b16 %v619
  %v961 = vunpack.c.h.b16 %v619
  %v962 = vunpack.c.l.b16 %v620
  %v963 = vunpack.c.h.b16 %v620
  %v964 = vunpack.c.l.b16 %v621
  %v965 = vunpack.c.h.b16 %v621
  %v966 = vunpack.c.l.b16 %v622
  %v967 = vunpack.c.l.b16 %v623
  %v968 = vunpack.c.h.b16 %v623
  %v969 = vunpack.c.l.b16 %v624
  %v970 = vunpack.c.h.b16 %v624
  %v971 = vunpack.c.l.b16 %v625
  %v972 = vunpack.c.h.b16 %v625
  %v973 = vunpack.c.l.b16 %v626
  %v974 = vunpack.c.l.b16 %v627
  %v975 = vunpack.c.h.b16 %v627
  %v976 = vunpack.c.l.b16 %v628
  %v977 = vunpack.c.h.b16 %v628
  %v978 = vunpack.c.l.b16 %v629
  %v979 = vunpack.c.h.b16 %v629
  %v980 = vunpack.c.l.b16 %v630
  %v981 = vunpack.c.l.b16 %v631
  %v982 = vunpack.c.h.b16 %v631
  %v983 = vunpack.c.l.b16 %v632
  %v984 = vunpack.c.h.b16 %v632
  %v985 = vunpack.c.l.b16 %v633
  %v986 = vunpack.c.h.b16 %v633
  %v987 = vunpack.c.l.b16 %v634
  %v988 = vunpack.c.l.b16 %v635
  %v989 = vunpack.c.h.b16 %v635
  %v990 = vunpack.c.l.b16 %v636
  %v991 = vunpack.c.h.b16 %v636
  %v992 = vunpack.c.l.b16 %v637
  %v993 = vunpack.c.h.b16 %v637
  %v994 = vunpack.c.l.b16 %v638
  %v995 = vunpack.c.l.b16 %v639
  %v996 = vunpack.c.h.b16 %v639
  %v997 = vunpack.c.l.b16 %v640
  %v998 = vunpack.c.h.b16 %v640
  %v999 = vunpack.c.l.b16 %v641
  %v1000 = vunpack.c.h.b16 %v641
  %v1001 = vunpack.c.l.b16 %v642
  %v1002 = vunpack.c.l.b16 %v643
  %v1003 = vunpack.c.h.b16 %v643
  %v1004 = vunpack.c.l.b16 %v644
  %v1005 = vunpack.c.h.b16 %v644
  %v1006 = vunpack.c.l.b16 %v645
  %v1007 = vunpack.c.h.b16 %v645
  %v1008 = vunpack.c.l.b16 %v646
  %v1009 = vunpack.c.l.b16 %v647
  %v1010 = vunpack.c.h.b16 %v647
  %v1011 = vunpack.c.l.b16 %v648
  %v1012 = vunpack.c.h.b16 %v648
  %v1013 = vunpack.c.l.b16 %v649
  %v1014 = vunpack.c.h.b16 %v649
  %v1015 = vunpack.c.l.b16 %v650
  %v1016 = vunpack.c.l.b16 %v651
  %v1017 = vunpack.c.h.b16 %v651
  %v1018 = vunpack.c.l.b16 %v652
  %v1019 = vunpack.c.h.b16 %v652
  %v1020 = vunpack.c.l.b16 %v653
  %v1021 = vunpack.c.h.b16 %v653
  %v1022 = vunpack.c.l.b16 %v654
  %v1023 = vunpack.c.l.b16 %v655
  %v1024 = vunpack.c.h.b16 %v655
  %v1025 = vunpack.c.l.b16 %v656
  %v1026 = vunpack.c.h.b16 %v656
  %v1027 = vunpack.c.l.b16 %v657
  %v1028 = vunpack.c.h.b16 %v657
  %v1029 = vunpack.c.l.b16 %v658
  %v1030 = vunpack.c.l.b16 %v659
  %v1031 = vunpack.c.h.b16 %v659
  %v1032 = vunpack.c.l.b16 %v660
  %v1033 = vunpack.c.h.b16 %v660
  %v1034 = vunpack.c.l.b16 %v661
  %v1035 = vunpack.c.h.b16 %v661
  %v1036 = vunpack.c.l.b16 %v662
  %v1037 = vunpack.c.l.b16 %v663
  %v1038 = vunpack.c.h.b16 %v663
  %v1039 = vunpack.c.l.b16 %v664
  %v1040 = vunpack.c.h.b16 %v664
  %v1041 = vunpack.c.l.b16 %v665
  %v1042 = vunpack.c.h.b16 %v665
  %v1043 = vunpack.c.l.b16 %v666
  %v1044 = vunpack.c.l.b16 %v667
  %v1045 = vunpack.c.h.b16 %v667
  %v1046 = vunpack.c.l.b16 %v668
  %v1047 = vunpack.c.h.b16 %v668
  %v1048 = vunpack.c.l.b16 %v669
  %v1049 = vunpack.c.h.b16 %v669
  %v1050 = vunpack.c.l.b16 %v670
  %v1051 = vunpack.c.l.b16 %v671
  %v1052 = vunpack.c.h.b16 %v671
  %v1053 = vunpack.c.l.b16 %v672
  %v1054 = vunpack.c.h.b16 %v672
  %v1055 = vunpack.c.l.b16 %v673
  %v1056 = vunpack.c.h.b16 %v673
  %v1057 = vunpack.c.l.b16 %v674
  %v1058 = vunpack.c.l.b16 %v675
  %v1059 = vunpack.c.h.b16 %v675
  %v1060 = vunpack.c.l.b16 %v676
  %v1061 = vunpack.c.h.b16 %v676
  %v1062 = vunpack.c.l.b16 %v677
  %v1063 = vunpack.c.h.b16 %v677
  %v1064 = vunpack.c.l.b16 %v678
  %v1065 = vunpack.c.l.b16 %v679
  %v1066 = vunpack.c.h.b16 %v679
  %v1067 = vunpack.c.l.b16 %v680
  %v1068 = vunpack.c.h.b16 %v680
  %v1069 = vunpack.c.l.b16 %v681
  %v1070 = vunpack.c.h.b16 %v681
  %v1071 = vunpack.c.l.b16 %v682
  %v1072 = vpack.c.b16 %v855, %v848
  %v1073 = vpack.c.b16 %v856, %v849
  %v1074 = vpack.c.b16 %v857, %v850
  %v1075 = vpack.c.b16 %v858, %v851
  %v1076 = vpack.c.b16 %v859, %v852
  %v1077 = vpack.c.b16 %v860, %v853
  %v1078 = vpack.c.b16 %v861, %v854
  %v1079 = vpack.c.b16 %v869, %v862
  %v1080 = vpack.c.b16 %v870, %v863
  %v1081 = vpack.c.b16 %v871, %v864
  %v1082 = vpack.c.b16 %v872, %v865
  %v1083 = vpack.c.b16 %v873, %v866
  %v1084 = vpack.c.b16 %v874, %v867
  %v1085 = vpack.c.b16 %v875, %v868
  %v1086 = vpack.c.b16 %v883, %v876
  %v1087 = vpack.c.b16 %v884, %v877
  %v1088 = vpack.c.b16 %v885, %v878
  %v1089 = vpack.c.b16 %v886, %v879
  %v1090 = vpack.c.b16 %v887, %v880
  %v1091 = vpack.c.b16 %v888, %v881
  %v1092 = vpack.c.b16 %v889, %v882
  %v1093 = vpack.c.b16 %v897, %v890
  %v1094 = vpack.c.b16 %v898, %v891
  %v1095 = vpack.c.b16 %v899, %v892
  %v1096 = vpack.c.b16 %v900, %v893
  %v1097 = vpack.c.b16 %v901, %v894
  %v1098 = vpack.c.b16 %v902, %v895
  %v1099 = vpack.c.b16 %v903, %v896
  %v1100 = vpack.c.b16 %v911, %v904
  %v1101 = vpack.c.b16 %v912, %v905
  %v1102 = vpack.c.b16 %v913, %v906
  %v1103 = vpack.c.b16 %v914, %v907
  %v1104 = vpack.c.b16 %v915, %v908
  %v1105 = vpack.c.b16 %v916, %v909
  %v1106 = vpack.c.b16 %v917, %v910
  %v1107 = vpack.c.b16 %v925, %v918
  %v1108 = vpack.c.b16 %v926, %v919
  %v1109 = vpack.c.b16 %v927, %v920
  %v1110 = vpack.c.b16 %v928, %v921
  %v1111 = vpack.c.b16 %v929, %v922
  %v1112 = vpack.c.b16 %v930, %v923
  %v1113 = vpack.c.b16 %v931, %v924
  %v1114 = vpack.c.b16 %v939, %v932
  %v1115 = vpack.c.b16 %v940, %v933
  %v1116 = vpack.c.b16 %v941, %v934
  %v1117 = vpack.c.b16 %v942, %v935
  %v1118 = vpack.c.b16 %v943, %v936
  %v1119 = vpack.c.b16 %v944, %v937
  %v1120 = vpack.c.b16 %v945, %v938
  %v1121 = vpack.c.b16 %v953, %v946
  %v1122 = vpack.c.b16 %v954, %v947
  %v1123 = vpack.c.b16 %v955, %v948
  %v1124 = vpack.c.b16 %v956, %v949
  %v1125 = vpack.c.b16 %v957, %v950
  %v1126 = vpack.c.b16 %v958, %v951
  %v1127 = vpack.c.b16 %v959, %v952
  %v1128 = vpack.c.b16 %v967, %v960
  %v1129 = vpack.c.b16 %v968, %v961
  %v1130 = vpack.c.b16 %v969, %v962
  %v1131 = vpack.c.b16 %v970, %v963
  %v1132 = vpack.c.b16 %v971, %v964
  %v1133 = vpack.c.b16 %v972, %v965
  %v1134 = vpack.c.b16 %v973, %v966
  %v1135 = vpack.c.b16 %v981, %v974
  %v1136 = vpack.c.b16 %v982, %v975
  %v1137 = vpack.c.b16 %v983, %v976
  %v1138 = vpack.c.b16 %v984, %v977
  %v1139 = vpack.c.b16 %v985, %v978
  %v1140 = vpack.c.b16 %v986, %v979
  %v1141 = vpack.c.b16 %v987, %v980
  %v1142 = vpack.c.b16 %v995, %v988
  %v1143 = vpack.c.b16 %v996, %v989
  %v1144 = vpack.c.b16 %v997, %v990
  %v1145 = vpack.c.b16 %v998, %v991
  %v1146 = vpack.c.b16 %v999, %v992
  %v1147 = vpack.c.b16 %v1000, %v993
  %v1148 = vpack.c.b16 %v1001, %v994
  %v1149 = vpack.c.b16 %v1009, %v1002
  %v1150 = vpack.c.b16 %v1010, %v1003
  %v1151 = vpack.c.b16 %v1011, %v1004
  %v1152 = vpack.c.b16 %v1012, %v1005
  %v1153 = vpack.c.b16 %v1013, %v1006
  %v1154 = vpack.c.b16 %v1014, %v1007
  %v1155 = vpack.c.b16 %v1015, %v1008
  %v1156 = vpack.c.b16 %v1023, %v1016
  %v1157 = vpack.c.b16 %v1024, %v1017
  %v1158 = vpack.c.b16 %v1025, %v1018
  %v1159 = vpack.c.b16 %v1026, %v1019
  %v1160 = vpack.c.b16 %v1027, %v1020
  %v1161 = vpack.c.b16 %v1028, %v1021
  %v1162 = vpack.c.b16 %v1029, %v1022
  %v1163 = vpack.c.b16 %v1037, %v1030
  %v1164 = vpack.c.b16 %v1038, %v1031
  %v1165 = vpack.c.b16 %v1039, %v1032
  %v1166 = vpack.c.b16 %v1040, %v1033
  %v1167 = vpack.c.b16 %v1041, %v1034
  %v1168 = vpack.c.b16 %v1042, %v1035
  %v1169 = vpack.c.b16 %v1043, %v1036
  %v1170 = vpack.c.b16 %v1051, %v1044
  %v1171 = vpack.c.b16 %v1052, %v1045
  %v1172 = vpack.c.b16 %v1053, %v1046
  %v1173 = vpack.c.b16 %v1054, %v1047
  %v1174 = vpack.c.b16 %v1055, %v1048
  %v1175 = vpack.c.b16 %v1056, %v1049
  %v1176 = vpack.c.b16 %v1057, %v1050
  %v1177 = vpack.c.b16 %v1065, %v1058
  %v1178 = vpack.c.b16 %v1066, %v1059
  %v1179 = vpack.c.b16 %v1067, %v1060
  %v1180 = vpack.c.b16 %v1068, %v1061
  %v1181 = vpack.c.b16 %v1069, %v1062
  %v1182 = vpack.c.b16 %v1070, %v1063
  %v1183 = vpack.c.b16 %v1071, %v1064
  %1296 = vmatprep.subr.bf16.mxu0 %v1073
  %1297 = vmatpush1.bf16.msra.mxu0 %v1072
  %1298 = vmatprep.subr.bf16.mxu0 %v1080
  %1299 = vmatpush1.bf16.msra.mxu0 %v1079
  %1300 = vmatprep.subr.bf16.mxu0 %v1087
  %1301 = vmatpush1.bf16.msra.mxu0 %v1086
  %1302 = vmatprep.subr.bf16.mxu0 %v1094
  %1303 = vmatpush1.bf16.msra.mxu0 %v1093
  %1304 = vmatprep.subr.bf16.mxu0 %v1101
  %1305 = vmatpush1.bf16.msra.mxu0 %v1100
  %1306 = vmatprep.subr.bf16.mxu0 %v1108
  %1307 = vmatpush1.bf16.msra.mxu0 %v1107
  %1308 = vmatprep.subr.bf16.mxu0 %v1115
  %1309 = vmatpush1.bf16.msra.mxu0 %v1114
  %1310 = vmatprep.subr.bf16.mxu0 %v1122
  %1311 = vmatpush1.bf16.msra.mxu0 %v1121
  %1312 = vmatprep.subr.bf16.mxu0 %v1129
  %1313 = vmatpush1.bf16.msra.mxu0 %v1128
  %1314 = vmatprep.subr.bf16.mxu0 %v1136
  %1315 = vmatpush1.bf16.msra.mxu0 %v1135
  %1316 = vmatprep.subr.bf16.mxu0 %v1143
  %1317 = vmatpush1.bf16.msra.mxu0 %v1142
  %1318 = vmatprep.subr.bf16.mxu0 %v1150
  %1319 = vmatpush1.bf16.msra.mxu0 %v1149
  %1320 = vmatprep.subr.bf16.mxu0 %v1157
  %1321 = vmatpush1.bf16.msra.mxu0 %v1156
  %1322 = vmatprep.subr.bf16.mxu0 %v1164
  %1323 = vmatpush1.bf16.msra.mxu0 %v1163
  %1324 = vmatprep.subr.bf16.mxu0 %v1171
  %1325 = vmatpush1.bf16.msra.mxu0 %v1170
  %1326 = vmatprep.subr.bf16.mxu0 %v1178
  %1327 = vmatpush1.bf16.msra.mxu0 %v1177
  %1328 = vmatprep.mubr.bf16.mxu0 %v554
  %1329 = vmatmul.mubr.bf16.gmra.mrb[0].mxu0 %v553
  %v1330 = vpop.f32.mrb[0].mxu0
  %v1331 = vadd.f32 %v688, %v1330
  %v1332 = vpop.f32.mrb[0].mxu0
  %v1333 = vadd.f32 %v692, %v1332
  %v1334 = vpop.f32.mrb[0].mxu0
  %v1335 = vpop.f32.mrb[0].mxu0
  %1336 = vdwg.mxu0
  %1337 = vmatprep.subr.bf16.mxu0 %v1075
  %1338 = vmatpush1.bf16.msra.mxu0 %v1074
  %1339 = vmatprep.subr.bf16.mxu0 %v1082
  %1340 = vmatpush1.bf16.msra.mxu0 %v1081
  %1341 = vmatprep.subr.bf16.mxu0 %v1089
  %1342 = vmatpush1.bf16.msra.mxu0 %v1088
  %1343 = vmatprep.subr.bf16.mxu0 %v1096
  %1344 = vmatpush1.bf16.msra.mxu0 %v1095
  %1345 = vmatprep.subr.bf16.mxu0 %v1103
  %1346 = vmatpush1.bf16.msra.mxu0 %v1102
  %1347 = vmatprep.subr.bf16.mxu0 %v1110
  %1348 = vmatpush1.bf16.msra.mxu0 %v1109
  %1349 = vmatprep.subr.bf16.mxu0 %v1117
  %1350 = vmatpush1.bf16.msra.mxu0 %v1116
  %1351 = vmatprep.subr.bf16.mxu0 %v1124
  %1352 = vmatpush1.bf16.msra.mxu0 %v1123
  %1353 = vmatprep.subr.bf16.mxu0 %v1131
  %1354 = vmatpush1.bf16.msra.mxu0 %v1130
  %1355 = vmatprep.subr.bf16.mxu0 %v1138
  %1356 = vmatpush1.bf16.msra.mxu0 %v1137
  %1357 = vmatprep.subr.bf16.mxu0 %v1145
  %1358 = vmatpush1.bf16.msra.mxu0 %v1144
  %1359 = vmatprep.subr.bf16.mxu0 %v1152
  %1360 = vmatpush1.bf16.msra.mxu0 %v1151
  %1361 = vmatprep.subr.bf16.mxu0 %v1159
  %1362 = vmatpush1.bf16.msra.mxu0 %v1158
  %1363 = vmatprep.subr.bf16.mxu0 %v1166
  %1364 = vmatpush1.bf16.msra.mxu0 %v1165
  %1365 = vmatprep.subr.bf16.mxu0 %v1173
  %1366 = vmatpush1.bf16.msra.mxu0 %v1172
  %1367 = vmatprep.subr.bf16.mxu0 %v1180
  %1368 = vmatpush1.bf16.msra.mxu0 %v1179
  %1369 = vmatprep.mubr.bf16.mxu0 %v554
  %1370 = vmatmul.mubr.bf16.gmra.mrb[0].mxu0 %v553
  %v1371 = vpop.f32.mrb[0].mxu0
  %v1372 = vadd.f32 %v696, %v1371
  %v1373 = vpop.f32.mrb[0].mxu0
  %v1374 = vadd.f32 %v700, %v1373
  %v1375 = vpop.f32.mrb[0].mxu0
  %v1376 = vpop.f32.mrb[0].mxu0
  %1377 = vdwg.mxu0
  %1378 = vmatprep.subr.bf16.mxu0 %v1077
  %1379 = vmatpush1.bf16.msra.mxu0 %v1076
  %1380 = vmatprep.subr.bf16.mxu0 %v1084
  %1381 = vmatpush1.bf16.msra.mxu0 %v1083
  %1382 = vmatprep.subr.bf16.mxu0 %v1091
  %1383 = vmatpush1.bf16.msra.mxu0 %v1090
  %1384 = vmatprep.subr.bf16.mxu0 %v1098
  %1385 = vmatpush1.bf16.msra.mxu0 %v1097
  %1386 = vmatprep.subr.bf16.mxu0 %v1105
  %1387 = vmatpush1.bf16.msra.mxu0 %v1104
  %1388 = vmatprep.subr.bf16.mxu0 %v1112
  %1389 = vmatpush1.bf16.msra.mxu0 %v1111
  %1390 = vmatprep.subr.bf16.mxu0 %v1119
  %1391 = vmatpush1.bf16.msra.mxu0 %v1118
  %1392 = vmatprep.subr.bf16.mxu0 %v1126
  %1393 = vmatpush1.bf16.msra.mxu0 %v1125
  %1394 = vmatprep.subr.bf16.mxu0 %v1133
  %1395 = vmatpush1.bf16.msra.mxu0 %v1132
  %1396 = vmatprep.subr.bf16.mxu0 %v1140
  %1397 = vmatpush1.bf16.msra.mxu0 %v1139
  %1398 = vmatprep.subr.bf16.mxu0 %v1147
  %1399 = vmatpush1.bf16.msra.mxu0 %v1146
  %1400 = vmatprep.subr.bf16.mxu0 %v1154
  %1401 = vmatpush1.bf16.msra.mxu0 %v1153
  %1402 = vmatprep.subr.bf16.mxu0 %v1161
  %1403 = vmatpush1.bf16.msra.mxu0 %v1160
  %1404 = vmatprep.subr.bf16.mxu0 %v1168
  %1405 = vmatpush1.bf16.msra.mxu0 %v1167
  %1406 = vmatprep.subr.bf16.mxu0 %v1175
  %1407 = vmatpush1.bf16.msra.mxu0 %v1174
  %1408 = vmatprep.subr.bf16.mxu0 %v1182
  %1409 = vmatpush1.bf16.msra.mxu0 %v1181
  %1410 = vmatprep.mubr.bf16.mxu0 %v554
  %1411 = vmatmul.mubr.bf16.gmra.mrb[0].mxu0 %v553
  %v1412 = vpop.f32.mrb[0].mxu0
  %v1413 = vadd.f32 %v704, %v1412
  %v1414 = vpop.f32.mrb[0].mxu0
  %v1415 = vadd.f32 %v708, %v1414
  %v1416 = vpop.f32.mrb[0].mxu0
  %v1417 = vpop.f32.mrb[0].mxu0
  %1418 = vdwg.mxu0
  %1419 = vmatprep.subr.bf16.mxu0 0
  %1420 = vmatpush1.bf16.msra.mxu0 %v1078
  %1421 = vmatprep.subr.bf16.mxu0 0
  %1422 = vmatpush1.bf16.msra.mxu0 %v1085
  %1423 = vmatprep.subr.bf16.mxu0 0
  %1424 = vmatpush1.bf16.msra.mxu0 %v1092
  %1425 = vmatprep.subr.bf16.mxu0 0
  %1426 = vmatpush1.bf16.msra.mxu0 %v1099
  %1427 = vmatprep.subr.bf16.mxu0 0
  %1428 = vmatpush1.bf16.msra.mxu0 %v1106
  %1429 = vmatprep.subr.bf16.mxu0 0
  %1430 = vmatpush1.bf16.msra.mxu0 %v1113
  %1431 = vmatprep.subr.bf16.mxu0 0
  %1432 = vmatpush1.bf16.msra.mxu0 %v1120
  %1433 = vmatprep.subr.bf16.mxu0 0
  %1434 = vmatpush1.bf16.msra.mxu0 %v1127
  %1435 = vmatprep.subr.bf16.mxu0 0
  %1436 = vmatpush1.bf16.msra.mxu0 %v1134
  %1437 = vmatprep.subr.bf16.mxu0 0
  %1438 = vmatpush1.bf16.msra.mxu0 %v1141
  %1439 = vmatprep.subr.bf16.mxu0 0
  %1440 = vmatpush1.bf16.msra.mxu0 %v1148
  %1441 = vmatprep.subr.bf16.mxu0 0
  %1442 = vmatpush1.bf16.msra.mxu0 %v1155
  %1443 = vmatprep.subr.bf16.mxu0 0
  %1444 = vmatpush1.bf16.msra.mxu0 %v1162
  %1445 = vmatprep.subr.bf16.mxu0 0
  %1446 = vmatpush1.bf16.msra.mxu0 %v1169
  %1447 = vmatprep.subr.bf16.mxu0 0
  %1448 = vmatpush1.bf16.msra.mxu0 %v1176
  %1449 = vmatprep.subr.bf16.mxu0 0
  %1450 = vmatpush1.bf16.msra.mxu0 %v1183
  %1451 = vmatprep.mubr.bf16.mxu0 %v554
  %1452 = vmatmul.mubr.bf16.gmra.mrb[0].mxu0 %v553
  %v1453 = vpop.f32.mrb[0].mxu0
  %v1454 = vadd.f32 %v712, %v1453
  %v1455 = vpop.f32.mrb[0].mxu0
  %v1456 = vpop.f32.mrb[0].mxu0
  %v1457 = vpop.f32.mrb[0].mxu0
  %1458 = vdwg.mxu0
  %v1459 = vadd.f32 %v1331, %v1333
  %v1460 = vadd.f32 %v1459, %v1372
  %v1461 = vadd.f32 %v1460, %v1374
  %v1462 = vadd.f32 %v1461, %v1413
  %v1463 = vadd.f32 %v1462, %v1415
  %v1464 = vmul.f32 %v1463, 0.16666667
  %v1465 = vsub.f32 %v1454, %v1464
  %v1466 = vadd.f32 %v1331, %v1465
  %v1467 = vadd.f32 %v1333, %v1465
  %v1468 = vadd.f32 %v1372, %v1465
  %v1469 = vadd.f32 %v1374, %v1465
  %v1470 = vadd.f32 %v1413, %v1465
  %v1471 = vadd.f32 %v1415, %v1465
  %v1472 = vlaneseq
  %v1473 = vand.u32 %v1472, 127
  %v1474 = vadd.s32 %v1473, 128
  %v1475 = vadd.s32 %v1473, 256
  %v1476 = vadd.s32 %v1473, 384
  %v1477 = vadd.s32 %v1473, 512
  %v1478 = vadd.s32 %v1473, 640
  %vm1479 = vcmp.lt.s32.totalorder %v1473, 0
  %v1480 = vsub.s32 0, %v1473
  %v1481 = vsel %vm1479, %v1480, %v1473
  %v1482 = vshrl.u32 %v1481, 7
  %v1483 = vand.u32 %v1481, 127
  %v1484 = vsub.s32 0, %v1483
  %v1485 = vsel %vm1479, %v1484, %v1483
  %vm1486 = vcmp.lt.s32.totalorder %v1474, 0
  %v1487 = vsub.s32 0, %v1474
  %v1488 = vsel %vm1486, %v1487, %v1474
  %v1489 = vshrl.u32 %v1488, 7
  %v1490 = vand.u32 %v1488, 127
  %v1491 = vsub.s32 0, %v1490
  %v1492 = vsel %vm1486, %v1491, %v1490
  %vm1493 = vcmp.lt.s32.totalorder %v1475, 0
  %v1494 = vsub.s32 0, %v1475
  %v1495 = vsel %vm1493, %v1494, %v1475
  %v1496 = vshrl.u32 %v1495, 7
  %v1497 = vand.u32 %v1495, 127
  %v1498 = vsub.s32 0, %v1497
  %v1499 = vsel %vm1493, %v1498, %v1497
  %vm1500 = vcmp.lt.s32.totalorder %v1476, 0
  %v1501 = vsub.s32 0, %v1476
  %v1502 = vsel %vm1500, %v1501, %v1476
  %v1503 = vshrl.u32 %v1502, 7
  %v1504 = vand.u32 %v1502, 127
  %v1505 = vsub.s32 0, %v1504
  %v1506 = vsel %vm1500, %v1505, %v1504
  %vm1507 = vcmp.lt.s32.totalorder %v1477, 0
  %v1508 = vsub.s32 0, %v1477
  %v1509 = vsel %vm1507, %v1508, %v1477
  %v1510 = vshrl.u32 %v1509, 7
  %v1511 = vand.u32 %v1509, 127
  %v1512 = vsub.s32 0, %v1511
  %v1513 = vsel %vm1507, %v1512, %v1511
  %vm1514 = vcmp.lt.s32.totalorder %v1478, 0
  %v1515 = vsub.s32 0, %v1478
  %v1516 = vsel %vm1514, %v1515, %v1478
  %v1517 = vshrl.u32 %v1516, 7
  %v1518 = vand.u32 %v1516, 127
  %v1519 = vsub.s32 0, %v1518
  %v1520 = vsel %vm1514, %v1519, %v1518
  %vm1521 = vcmp.ne.s32.totalorder %v1485, 0
  %vm1522 = vcmp.ne.s32.totalorder %v1492, 0
  %vm1523 = vcmp.ne.s32.totalorder %v1499, 0
  %vm1524 = vcmp.ne.s32.totalorder %v1506, 0
  %vm1525 = vcmp.ne.s32.totalorder %v1513, 0
  %vm1526 = vcmp.ne.s32.totalorder %v1520, 0
  %vm1527 = vcmp.lt.s32.totalorder %v1485, 0
  %vm1528 = vcmp.lt.s32.totalorder %v1492, 0
  %vm1529 = vcmp.lt.s32.totalorder %v1499, 0
  %vm1530 = vcmp.lt.s32.totalorder %v1506, 0
  %vm1531 = vcmp.lt.s32.totalorder %v1513, 0
  %vm1532 = vcmp.lt.s32.totalorder %v1520, 0
  %vm1533 = vmand %vm1527, %vm1521
  %vm1534 = vmand %vm1528, %vm1522
  %vm1535 = vmand %vm1529, %vm1523
  %vm1536 = vmand %vm1530, %vm1524
  %vm1537 = vmand %vm1531, %vm1525
  %vm1538 = vmand %vm1532, %vm1526
  %v1539 = vadd.s32 %v1485, 128
  %v1540 = vadd.s32 %v1492, 128
  %v1541 = vadd.s32 %v1499, 128
  %v1542 = vadd.s32 %v1506, 128
  %v1543 = vadd.s32 %v1513, 128
  %v1544 = vadd.s32 %v1520, 128
  %v1545 = vsel %vm1533, %v1539, %v1485
  %v1546 = vsel %vm1534, %v1540, %v1492
  %v1547 = vsel %vm1535, %v1541, %v1499
  %v1548 = vsel %vm1536, %v1542, %v1506
  %v1549 = vsel %vm1537, %v1543, %v1513
  %v1550 = vsel %vm1538, %v1544, %v1520
  %vm1551 = vcmp.lt.s32.totalorder %v1545, 51
  %vm1552 = vcmp.lt.s32.totalorder %v1546, 51
  %vm1553 = vcmp.lt.s32.totalorder %v1547, 51
  %vm1554 = vcmp.lt.s32.totalorder %v1548, 51
  %vm1555 = vcmp.lt.s32.totalorder %v1549, 51
  %vm1556 = vcmp.lt.s32.totalorder %v1550, 51
  %v1557 = vsel %vm1551, 1, 0
  %v1558 = vsel %vm1552, 1, 0
  %v1559 = vsel %vm1553, 1, 0
  %v1560 = vsel %vm1554, 1, 0
  %v1561 = vsel %vm1555, 1, 0
  %v1562 = vsel %vm1556, 1, 0
  %vm1563 = vcmp.eq.s32.totalorder %v1557, 1
  %vm1564 = vcmp.eq.s32.totalorder %v1558, 1
  %vm1565 = vcmp.eq.s32.totalorder %v1559, 1
  %vm1566 = vcmp.eq.s32.totalorder %v1560, 1
  %vm1567 = vcmp.eq.s32.totalorder %v1561, 1
  %vm1568 = vcmp.eq.s32.totalorder %v1562, 1
  %v1569 = vsel %vm1563, %v1466, -1e+30
  %v1570 = vsel %vm1564, %v1467, -1e+30
  %v1571 = vsel %vm1565, %v1468, -1e+30
  %v1572 = vsel %vm1566, %v1469, -1e+30
  %v1573 = vsel %vm1567, %v1470, -1e+30
  %v1574 = vsel %vm1568, %v1471, -1e+30
  %v1575 = vmax.f32 %v1569, %v1573
  %v1576 = vmax.f32 %v1570, %v1574
  %v1577 = vmax.f32 %v1575, %v1576
  %v1578 = vmax.f32 %v1571, %v1572
  %v1579 = vmax.f32 %v1577, %v1578
  %1580 = vmax.xlane.f32.xlu0 %v1579
  %v1581 = vpop.xlane.xlu0 %1580
  %v1582 = vsub.f32 %v1466, %v1581
  %v1583 = vsub.f32 %v1467, %v1581
  %v1584 = vsub.f32 %v1468, %v1581
  %v1585 = vsub.f32 %v1469, %v1581
  %v1586 = vsub.f32 %v1470, %v1581
  %v1587 = vsub.f32 %v1471, %v1581
  %v1588 = vmul.f32 %v1582, 1.442695
  %v1589 = vpow.pop %v1588
  %v1590 = vmul.f32 %v1583, 1.442695
  %v1591 = vpow.pop %v1590
  %v1592 = vmul.f32 %v1584, 1.442695
  %v1593 = vpow.pop %v1592
  %v1594 = vmul.f32 %v1585, 1.442695
  %v1595 = vpow.pop %v1594
  %v1596 = vmul.f32 %v1586, 1.442695
  %v1597 = vpow.pop %v1596
  %v1598 = vmul.f32 %v1587, 1.442695
  %v1599 = vpow.pop %v1598
  %v1600 = vsel %vm1563, %v1589, 0.0
  %v1601 = vsel %vm1564, %v1591, 0.0
  %v1602 = vsel %vm1565, %v1593, 0.0
  %v1603 = vsel %vm1566, %v1595, 0.0
  %v1604 = vsel %vm1567, %v1597, 0.0
  %v1605 = vsel %vm1568, %v1599, 0.0
  %v1606 = vld [vmem:[%s9] sm:$0xff]
  %v1607 = vld [vmem:[%s9 + $0x8] sm:$0xff]
  %v1608 = vld [vmem:[%s9 + $0x10] sm:$0xff]
  %v1609 = vld [vmem:[%s9 + $0x18] sm:$0xff]
  %v1610 = vld [vmem:[%s9 + $0x20] sm:$0xff]
  %v1611 = vld [vmem:[%s9 + $0x28] sm:$0xff]
  %v1612 = vld [vmem:[%s9 + $0x30] sm:$0xff]
  %v1613 = vld [vmem:[%s9 + $0x38] sm:$0xff]
  %v1614 = vld [vmem:[%s9 + $0x40] sm:$0xff]
  %v1615 = vld [vmem:[%s9 + $0x48] sm:$0xff]
  %v1616 = vld [vmem:[%s9 + $0x50] sm:$0xff]
  %v1617 = vld [vmem:[%s9 + $0x58] sm:$0xff]
  %v1618 = vld [vmem:[%s9 + $0x60] sm:$0xff]
  %v1619 = vld [vmem:[%s9 + $0x68] sm:$0xff]
  %v1620 = vld [vmem:[%s9 + $0x70] sm:$0xff]
  %v1621 = vld [vmem:[%s9 + $0x78] sm:$0xff]
  %v1622 = vld [vmem:[%s9 + $0x80] sm:$0xff]
  %v1623 = vld [vmem:[%s9 + $0x88] sm:$0xff]
  %v1624 = vld [vmem:[%s9 + $0x90] sm:$0xff]
  %v1625 = vld [vmem:[%s9 + $0x98] sm:$0xff]
  %v1626 = vld [vmem:[%s9 + $0xa0] sm:$0xff]
  %v1627 = vld [vmem:[%s9 + $0xa8] sm:$0xff]
  %v1628 = vld [vmem:[%s9 + $0xb0] sm:$0xff]
  %v1629 = vld [vmem:[%s9 + $0xb8] sm:$0xff]
  %v1630 = vld [vmem:[%s9 + $0xc0] sm:$0xff]
  %v1631 = vld [vmem:[%s9 + $0xc8] sm:$0xff]
  %v1632 = vld [vmem:[%s9 + $0xd0] sm:$0xff]
  %v1633 = vld [vmem:[%s9 + $0xd8] sm:$0xff]
  %v1634 = vld [vmem:[%s9 + $0xe0] sm:$0xff]
  %v1635 = vld [vmem:[%s9 + $0xe8] sm:$0xff]
  %v1636 = vld [vmem:[%s9 + $0xf0] sm:$0xff]
  %v1637 = vld [vmem:[%s9 + $0xf8] sm:$0xff]
  %v1638 = vld [vmem:[%s9 + $0x100] sm:$0xff]
  %v1639 = vld [vmem:[%s9 + $0x108] sm:$0xff]
  %v1640 = vld [vmem:[%s9 + $0x110] sm:$0xff]
  %v1641 = vld [vmem:[%s9 + $0x118] sm:$0xff]
  %v1642 = vld [vmem:[%s9 + $0x120] sm:$0xff]
  %v1643 = vld [vmem:[%s9 + $0x128] sm:$0xff]
  %v1644 = vld [vmem:[%s9 + $0x130] sm:$0xff]
  %v1645 = vld [vmem:[%s9 + $0x138] sm:$0xff]
  %v1646 = vld [vmem:[%s9 + $0x140] sm:$0xff]
  %v1647 = vld [vmem:[%s9 + $0x148] sm:$0xff]
  %v1648 = vld [vmem:[%s9 + $0x150] sm:$0xff]
  %v1649 = vld [vmem:[%s9 + $0x158] sm:$0xff]
  %v1650 = vld [vmem:[%s9 + $0x160] sm:$0xff]
  %v1651 = vld [vmem:[%s9 + $0x168] sm:$0xff]
  %v1652 = vld [vmem:[%s9 + $0x170] sm:$0xff]
  %v1653 = vld [vmem:[%s9 + $0x178] sm:$0xff]
  %v1654 = vld [vmem:[%s9 + $0x180] sm:$0xff]
  %v1655 = vld [vmem:[%s9 + $0x188] sm:$0xff]
  %v1656 = vld [vmem:[%s9 + $0x190] sm:$0xff]
  %v1657 = vld [vmem:[%s9 + $0x198] sm:$0xff]
  %v1658 = vld [vmem:[%s9 + $0x1a0] sm:$0xff]
  %v1659 = vld [vmem:[%s9 + $0x1a8] sm:$0xff]
  %v1660 = vld [vmem:[%s9 + $0x1b0] sm:$0xff]
  %v1661 = vld [vmem:[%s9 + $0x1b8] sm:$0xff]
  %v1662 = vld [vmem:[%s9 + $0x1c0] sm:$0xff]
  %v1663 = vld [vmem:[%s9 + $0x1c8] sm:$0xff]
  %v1664 = vld [vmem:[%s9 + $0x1d0] sm:$0xff]
  %v1665 = vld [vmem:[%s9 + $0x1d8] sm:$0xff]
  %v1666 = vld [vmem:[%s9 + $0x1e0] sm:$0xff]
  %v1667 = vld [vmem:[%s9 + $0x1e8] sm:$0xff]
  %v1668 = vld [vmem:[%s9 + $0x1f0] sm:$0xff]
  %v1669 = vld [vmem:[%s9 + $0x1f8] sm:$0xff]
  %v1670 = vld [vmem:[%s9 + $0x200] sm:$0xff]
  %v1671 = vld [vmem:[%s9 + $0x208] sm:$0xff]
  %v1672 = vld [vmem:[%s9 + $0x210] sm:$0xff]
  %v1673 = vld [vmem:[%s9 + $0x218] sm:$0xff]
  %v1674 = vld [vmem:[%s9 + $0x220] sm:$0xff]
  %v1675 = vld [vmem:[%s9 + $0x228] sm:$0xff]
  %v1676 = vld [vmem:[%s9 + $0x230] sm:$0xff]
  %v1677 = vld [vmem:[%s9 + $0x238] sm:$0xff]
  %v1678 = vld [vmem:[%s9 + $0x240] sm:$0xff]
  %v1679 = vld [vmem:[%s9 + $0x248] sm:$0xff]
  %v1680 = vld [vmem:[%s9 + $0x250] sm:$0xff]
  %v1681 = vld [vmem:[%s9 + $0x258] sm:$0xff]
  %v1682 = vld [vmem:[%s9 + $0x260] sm:$0xff]
  %v1683 = vld [vmem:[%s9 + $0x268] sm:$0xff]
  %v1684 = vld [vmem:[%s9 + $0x270] sm:$0xff]
  %v1685 = vld [vmem:[%s9 + $0x278] sm:$0xff]
  %v1686 = vld [vmem:[%s9 + $0x280] sm:$0xff]
  %v1687 = vld [vmem:[%s9 + $0x288] sm:$0xff]
  %v1688 = vld [vmem:[%s9 + $0x290] sm:$0xff]
  %v1689 = vld [vmem:[%s9 + $0x298] sm:$0xff]
  %v1690 = vld [vmem:[%s9 + $0x2a0] sm:$0xff]
  %v1691 = vld [vmem:[%s9 + $0x2a8] sm:$0xff]
  %v1692 = vld [vmem:[%s9 + $0x2b0] sm:$0xff]
  %v1693 = vld [vmem:[%s9 + $0x2b8] sm:$0xff]
  %v1694 = vld [vmem:[%s9 + $0x2c0] sm:$0xff]
  %v1695 = vld [vmem:[%s9 + $0x2c8] sm:$0xff]
  %v1696 = vld [vmem:[%s9 + $0x2d0] sm:$0xff]
  %v1697 = vld [vmem:[%s9 + $0x2d8] sm:$0xff]
  %v1698 = vld [vmem:[%s9 + $0x2e0] sm:$0xff]
  %v1699 = vld [vmem:[%s9 + $0x2e8] sm:$0xff]
  %v1700 = vld [vmem:[%s9 + $0x2f0] sm:$0xff]
  %v1701 = vld [vmem:[%s9 + $0x2f8] sm:$0xff]
  %v1702 = vld [vmem:[%s9 + $0x300] sm:$0xff]
  %v1703 = vld [vmem:[%s9 + $0x308] sm:$0xff]
  %v1704 = vld [vmem:[%s9 + $0x310] sm:$0xff]
  %v1705 = vld [vmem:[%s9 + $0x318] sm:$0xff]
  %v1706 = vld [vmem:[%s9 + $0x320] sm:$0xff]
  %v1707 = vld [vmem:[%s9 + $0x328] sm:$0xff]
  %v1708 = vld [vmem:[%s9 + $0x330] sm:$0xff]
  %v1709 = vld [vmem:[%s9 + $0x338] sm:$0xff]
  %v1710 = vld [vmem:[%s9 + $0x340] sm:$0xff]
  %v1711 = vld [vmem:[%s9 + $0x348] sm:$0xff]
  %v1712 = vld [vmem:[%s9 + $0x350] sm:$0xff]
  %v1713 = vld [vmem:[%s9 + $0x358] sm:$0xff]
  %v1714 = vld [vmem:[%s9 + $0x360] sm:$0xff]
  %v1715 = vld [vmem:[%s9 + $0x368] sm:$0xff]
  %v1716 = vld [vmem:[%s9 + $0x370] sm:$0xff]
  %v1717 = vld [vmem:[%s9 + $0x378] sm:$0xff]
  %v1718 = vld [vmem:[%s9 + $0x380] sm:$0xff]
  %v1719 = vld [vmem:[%s9 + $0x388] sm:$0xff]
  %v1720 = vld [vmem:[%s9 + $0x390] sm:$0xff]
  %v1721 = vld [vmem:[%s9 + $0x398] sm:$0xff]
  %v1722 = vld [vmem:[%s9 + $0x3a0] sm:$0xff]
  %v1723 = vld [vmem:[%s9 + $0x3a8] sm:$0xff]
  %v1724 = vld [vmem:[%s9 + $0x3b0] sm:$0xff]
  %v1725 = vld [vmem:[%s9 + $0x3b8] sm:$0xff]
  %v1726 = vld [vmem:[%s9 + $0x3c0] sm:$0xff]
  %v1727 = vld [vmem:[%s9 + $0x3c8] sm:$0xff]
  %v1728 = vld [vmem:[%s9 + $0x3d0] sm:$0xff]
  %v1729 = vld [vmem:[%s9 + $0x3d8] sm:$0xff]
  %v1730 = vld [vmem:[%s9 + $0x3e0] sm:$0xff]
  %v1731 = vld [vmem:[%s9 + $0x3e8] sm:$0xff]
  %v1732 = vld [vmem:[%s9 + $0x3f0] sm:$0xff]
  %v1733 = vld [vmem:[%s9 + $0x3f8] sm:$0xff]
  %v1734 = vld [vmem:[%s9 + $0x400] sm:$0xff]
  %v1735 = vld [vmem:[%s9 + $0x408] sm:$0xff]
  %v1736 = vld [vmem:[%s9 + $0x410] sm:$0xff]
  %v1737 = vld [vmem:[%s9 + $0x418] sm:$0xff]
  %v1738 = vld [vmem:[%s9 + $0x420] sm:$0xff]
  %v1739 = vld [vmem:[%s9 + $0x428] sm:$0xff]
  %v1740 = vld [vmem:[%s9 + $0x430] sm:$0xff]
  %v1741 = vld [vmem:[%s9 + $0x438] sm:$0xff]
  %v1742 = vld [vmem:[%s9 + $0x440] sm:$0xff]
  %v1743 = vld [vmem:[%s9 + $0x448] sm:$0xff]
  %v1744 = vld [vmem:[%s9 + $0x450] sm:$0xff]
  %v1745 = vld [vmem:[%s9 + $0x458] sm:$0xff]
  %v1746 = vld [vmem:[%s9 + $0x460] sm:$0xff]
  %v1747 = vld [vmem:[%s9 + $0x468] sm:$0xff]
  %v1748 = vld [vmem:[%s9 + $0x470] sm:$0xff]
  %v1749 = vld [vmem:[%s9 + $0x478] sm:$0xff]
  %v1750 = vld [vmem:[%s9 + $0x480] sm:$0xff]
  %v1751 = vld [vmem:[%s9 + $0x488] sm:$0xff]
  %v1752 = vld [vmem:[%s9 + $0x490] sm:$0xff]
  %v1753 = vld [vmem:[%s9 + $0x498] sm:$0xff]
  %v1754 = vld [vmem:[%s9 + $0x4a0] sm:$0xff]
  %v1755 = vld [vmem:[%s9 + $0x4a8] sm:$0xff]
  %v1756 = vld [vmem:[%s9 + $0x4b0] sm:$0xff]
  %v1757 = vld [vmem:[%s9 + $0x4b8] sm:$0xff]
  %v1758 = vld [vmem:[%s9 + $0x4c0] sm:$0xff]
  %v1759 = vld [vmem:[%s9 + $0x4c8] sm:$0xff]
  %v1760 = vld [vmem:[%s9 + $0x4d0] sm:$0xff]
  %v1761 = vld [vmem:[%s9 + $0x4d8] sm:$0xff]
  %v1762 = vld [vmem:[%s9 + $0x4e0] sm:$0xff]
  %v1763 = vld [vmem:[%s9 + $0x4e8] sm:$0xff]
  %v1764 = vld [vmem:[%s9 + $0x4f0] sm:$0xff]
  %v1765 = vld [vmem:[%s9 + $0x4f8] sm:$0xff]
  %v1766 = vld [vmem:[%s9 + $0x500] sm:$0xff]
  %v1767 = vld [vmem:[%s9 + $0x508] sm:$0xff]
  %v1768 = vld [vmem:[%s9 + $0x510] sm:$0xff]
  %v1769 = vld [vmem:[%s9 + $0x518] sm:$0xff]
  %v1770 = vld [vmem:[%s9 + $0x520] sm:$0xff]
  %v1771 = vld [vmem:[%s9 + $0x528] sm:$0xff]
  %v1772 = vld [vmem:[%s9 + $0x530] sm:$0xff]
  %v1773 = vld [vmem:[%s9 + $0x538] sm:$0xff]
  %v1774 = vld [vmem:[%s9 + $0x540] sm:$0xff]
  %v1775 = vld [vmem:[%s9 + $0x548] sm:$0xff]
  %v1776 = vld [vmem:[%s9 + $0x550] sm:$0xff]
  %v1777 = vld [vmem:[%s9 + $0x558] sm:$0xff]
  %v1778 = vld [vmem:[%s9 + $0x560] sm:$0xff]
  %v1779 = vld [vmem:[%s9 + $0x568] sm:$0xff]
  %v1780 = vld [vmem:[%s9 + $0x570] sm:$0xff]
  %v1781 = vld [vmem:[%s9 + $0x578] sm:$0xff]
  %v1782 = vld [vmem:[%s9 + $0x580] sm:$0xff]
  %v1783 = vld [vmem:[%s9 + $0x588] sm:$0xff]
  %v1784 = vld [vmem:[%s9 + $0x590] sm:$0xff]
  %v1785 = vld [vmem:[%s9 + $0x598] sm:$0xff]
  %v1786 = vld [vmem:[%s9 + $0x5a0] sm:$0xff]
  %v1787 = vld [vmem:[%s9 + $0x5a8] sm:$0xff]
  %v1788 = vld [vmem:[%s9 + $0x5b0] sm:$0xff]
  %v1789 = vld [vmem:[%s9 + $0x5b8] sm:$0xff]
  %v1790 = vld [vmem:[%s9 + $0x5c0] sm:$0xff]
  %v1791 = vld [vmem:[%s9 + $0x5c8] sm:$0xff]
  %v1792 = vld [vmem:[%s9 + $0x5d0] sm:$0xff]
  %v1793 = vld [vmem:[%s9 + $0x5d8] sm:$0xff]
  %v1794 = vld [vmem:[%s9 + $0x5e0] sm:$0xff]
  %v1795 = vld [vmem:[%s9 + $0x5e8] sm:$0xff]
  %v1796 = vld [vmem:[%s9 + $0x5f0] sm:$0xff]
  %v1797 = vld [vmem:[%s9 + $0x5f8] sm:$0xff]
  %v1798 = vld [vmem:[%s9 + $0x600] sm:$0xff]
  %v1799 = vld [vmem:[%s9 + $0x608] sm:$0xff]
  %v1800 = vld [vmem:[%s9 + $0x610] sm:$0xff]
  %v1801 = vld [vmem:[%s9 + $0x618] sm:$0xff]
  %v1802 = vld [vmem:[%s9 + $0x620] sm:$0xff]
  %v1803 = vld [vmem:[%s9 + $0x628] sm:$0xff]
  %v1804 = vld [vmem:[%s9 + $0x630] sm:$0xff]
  %v1805 = vld [vmem:[%s9 + $0x638] sm:$0xff]
  %v1806 = vld [vmem:[%s9 + $0x640] sm:$0xff]
  %v1807 = vld [vmem:[%s9 + $0x648] sm:$0xff]
  %v1808 = vld [vmem:[%s9 + $0x650] sm:$0xff]
  %v1809 = vld [vmem:[%s9 + $0x658] sm:$0xff]
  %v1810 = vld [vmem:[%s9 + $0x660] sm:$0xff]
  %v1811 = vld [vmem:[%s9 + $0x668] sm:$0xff]
  %v1812 = vld [vmem:[%s9 + $0x670] sm:$0xff]
  %v1813 = vld [vmem:[%s9 + $0x678] sm:$0xff]
  %v1814 = vld [vmem:[%s9 + $0x680] sm:$0xff]
  %v1815 = vld [vmem:[%s9 + $0x688] sm:$0xff]
  %v1816 = vld [vmem:[%s9 + $0x690] sm:$0xff]
  %v1817 = vld [vmem:[%s9 + $0x698] sm:$0xff]
  %v1818 = vld [vmem:[%s9 + $0x6a0] sm:$0xff]
  %v1819 = vld [vmem:[%s9 + $0x6a8] sm:$0xff]
  %v1820 = vld [vmem:[%s9 + $0x6b0] sm:$0xff]
  %v1821 = vld [vmem:[%s9 + $0x6b8] sm:$0xff]
  %v1822 = vld [vmem:[%s9 + $0x6c0] sm:$0xff]
  %v1823 = vld [vmem:[%s9 + $0x6c8] sm:$0xff]
  %v1824 = vld [vmem:[%s9 + $0x6d0] sm:$0xff]
  %v1825 = vld [vmem:[%s9 + $0x6d8] sm:$0xff]
  %v1826 = vld [vmem:[%s9 + $0x6e0] sm:$0xff]
  %v1827 = vld [vmem:[%s9 + $0x6e8] sm:$0xff]
  %v1828 = vld [vmem:[%s9 + $0x6f0] sm:$0xff]
  %v1829 = vld [vmem:[%s9 + $0x6f8] sm:$0xff]
  %v1830 = vld [vmem:[%s9 + $0x700] sm:$0xff]
  %v1831 = vld [vmem:[%s9 + $0x708] sm:$0xff]
  %v1832 = vld [vmem:[%s9 + $0x710] sm:$0xff]
  %v1833 = vld [vmem:[%s9 + $0x718] sm:$0xff]
  %v1834 = vld [vmem:[%s9 + $0x720] sm:$0xff]
  %v1835 = vld [vmem:[%s9 + $0x728] sm:$0xff]
  %v1836 = vld [vmem:[%s9 + $0x730] sm:$0xff]
  %v1837 = vld [vmem:[%s9 + $0x738] sm:$0xff]
  %v1838 = vld [vmem:[%s9 + $0x740] sm:$0xff]
  %v1839 = vld [vmem:[%s9 + $0x748] sm:$0xff]
  %v1840 = vld [vmem:[%s9 + $0x750] sm:$0xff]
  %v1841 = vld [vmem:[%s9 + $0x758] sm:$0xff]
  %v1842 = vld [vmem:[%s9 + $0x760] sm:$0xff]
  %v1843 = vld [vmem:[%s9 + $0x768] sm:$0xff]
  %v1844 = vld [vmem:[%s9 + $0x770] sm:$0xff]
  %v1845 = vld [vmem:[%s9 + $0x778] sm:$0xff]
  %v1846 = vld [vmem:[%s9 + $0x780] sm:$0xff]
  %v1847 = vld [vmem:[%s9 + $0x788] sm:$0xff]
  %v1848 = vld [vmem:[%s9 + $0x790] sm:$0xff]
  %v1849 = vld [vmem:[%s9 + $0x798] sm:$0xff]
  %v1850 = vld [vmem:[%s9 + $0x7a0] sm:$0xff]
  %v1851 = vld [vmem:[%s9 + $0x7a8] sm:$0xff]
  %v1852 = vld [vmem:[%s9 + $0x7b0] sm:$0xff]
  %v1853 = vld [vmem:[%s9 + $0x7b8] sm:$0xff]
  %v1854 = vld [vmem:[%s9 + $0x7c0] sm:$0xff]
  %v1855 = vld [vmem:[%s9 + $0x7c8] sm:$0xff]
  %v1856 = vld [vmem:[%s9 + $0x7d0] sm:$0xff]
  %v1857 = vld [vmem:[%s9 + $0x7d8] sm:$0xff]
  %v1858 = vld [vmem:[%s9 + $0x7e0] sm:$0xff]
  %v1859 = vld [vmem:[%s9 + $0x7e8] sm:$0xff]
  %v1860 = vld [vmem:[%s9 + $0x7f0] sm:$0xff]
  %v1861 = vld [vmem:[%s9 + $0x7f8] sm:$0xff]
  %v1862 = vld [vmem:[%s9 + $0x800] sm:$0xff]
  %v1863 = vld [vmem:[%s9 + $0x808] sm:$0xff]
  %v1864 = vld [vmem:[%s9 + $0x810] sm:$0xff]
  %v1865 = vld [vmem:[%s9 + $0x818] sm:$0xff]
  %v1866 = vld [vmem:[%s9 + $0x820] sm:$0xff]
  %v1867 = vld [vmem:[%s9 + $0x828] sm:$0xff]
  %v1868 = vld [vmem:[%s9 + $0x830] sm:$0xff]
  %v1869 = vld [vmem:[%s9 + $0x838] sm:$0xff]
  %v1870 = vld [vmem:[%s9 + $0x840] sm:$0xff]
  %v1871 = vld [vmem:[%s9 + $0x848] sm:$0xff]
  %v1872 = vld [vmem:[%s9 + $0x850] sm:$0xff]
  %v1873 = vld [vmem:[%s9 + $0x858] sm:$0xff]
  %v1874 = vld [vmem:[%s9 + $0x860] sm:$0xff]
  %v1875 = vld [vmem:[%s9 + $0x868] sm:$0xff]
  %v1876 = vld [vmem:[%s9 + $0x870] sm:$0xff]
  %v1877 = vld [vmem:[%s9 + $0x878] sm:$0xff]
  %v1878 = vld [vmem:[%s9 + $0x880] sm:$0xff]
  %v1879 = vld [vmem:[%s9 + $0x888] sm:$0xff]
  %v1880 = vld [vmem:[%s9 + $0x890] sm:$0xff]
  %v1881 = vld [vmem:[%s9 + $0x898] sm:$0xff]
  %v1882 = vld [vmem:[%s9 + $0x8a0] sm:$0xff]
  %v1883 = vld [vmem:[%s9 + $0x8a8] sm:$0xff]
  %v1884 = vld [vmem:[%s9 + $0x8b0] sm:$0xff]
  %v1885 = vld [vmem:[%s9 + $0x8b8] sm:$0xff]
  %v1886 = vld [vmem:[%s9 + $0x8c0] sm:$0xff]
  %v1887 = vld [vmem:[%s9 + $0x8c8] sm:$0xff]
  %v1888 = vld [vmem:[%s9 + $0x8d0] sm:$0xff]
  %v1889 = vld [vmem:[%s9 + $0x8d8] sm:$0xff]
  %v1890 = vld [vmem:[%s9 + $0x8e0] sm:$0xff]
  %v1891 = vld [vmem:[%s9 + $0x8e8] sm:$0xff]
  %v1892 = vld [vmem:[%s9 + $0x8f0] sm:$0xff]
  %v1893 = vld [vmem:[%s9 + $0x8f8] sm:$0xff]
  %v1894 = vld [vmem:[%s9 + $0x900] sm:$0xff]
  %v1895 = vld [vmem:[%s9 + $0x908] sm:$0xff]
  %v1896 = vld [vmem:[%s9 + $0x910] sm:$0xff]
  %v1897 = vld [vmem:[%s9 + $0x918] sm:$0xff]
  %v1898 = vld [vmem:[%s9 + $0x920] sm:$0xff]
  %v1899 = vld [vmem:[%s9 + $0x928] sm:$0xff]
  %v1900 = vld [vmem:[%s9 + $0x930] sm:$0xff]
  %v1901 = vld [vmem:[%s9 + $0x938] sm:$0xff]
  %v1902 = vld [vmem:[%s9 + $0x940] sm:$0xff]
  %v1903 = vld [vmem:[%s9 + $0x948] sm:$0xff]
  %v1904 = vld [vmem:[%s9 + $0x950] sm:$0xff]
  %v1905 = vld [vmem:[%s9 + $0x958] sm:$0xff]
  %v1906 = vld [vmem:[%s9 + $0x960] sm:$0xff]
  %v1907 = vld [vmem:[%s9 + $0x968] sm:$0xff]
  %v1908 = vld [vmem:[%s9 + $0x970] sm:$0xff]
  %v1909 = vld [vmem:[%s9 + $0x978] sm:$0xff]
  %v1910 = vld [vmem:[%s9 + $0x980] sm:$0xff]
  %v1911 = vld [vmem:[%s9 + $0x988] sm:$0xff]
  %v1912 = vld [vmem:[%s9 + $0x990] sm:$0xff]
  %v1913 = vld [vmem:[%s9 + $0x998] sm:$0xff]
  %v1914 = vld [vmem:[%s9 + $0x9a0] sm:$0xff]
  %v1915 = vld [vmem:[%s9 + $0x9a8] sm:$0xff]
  %v1916 = vld [vmem:[%s9 + $0x9b0] sm:$0xff]
  %v1917 = vld [vmem:[%s9 + $0x9b8] sm:$0xff]
  %v1918 = vld [vmem:[%s9 + $0x9c0] sm:$0xff]
  %v1919 = vld [vmem:[%s9 + $0x9c8] sm:$0xff]
  %v1920 = vld [vmem:[%s9 + $0x9d0] sm:$0xff]
  %v1921 = vld [vmem:[%s9 + $0x9d8] sm:$0xff]
  %v1922 = vld [vmem:[%s9 + $0x9e0] sm:$0xff]
  %v1923 = vld [vmem:[%s9 + $0x9e8] sm:$0xff]
  %v1924 = vld [vmem:[%s9 + $0x9f0] sm:$0xff]
  %v1925 = vld [vmem:[%s9 + $0x9f8] sm:$0xff]
  %v1926 = vld [vmem:[%s9 + $0xa00] sm:$0xff]
  %v1927 = vld [vmem:[%s9 + $0xa08] sm:$0xff]
  %v1928 = vld [vmem:[%s9 + $0xa10] sm:$0xff]
  %v1929 = vld [vmem:[%s9 + $0xa18] sm:$0xff]
  %v1930 = vld [vmem:[%s9 + $0xa20] sm:$0xff]
  %v1931 = vld [vmem:[%s9 + $0xa28] sm:$0xff]
  %v1932 = vld [vmem:[%s9 + $0xa30] sm:$0xff]
  %v1933 = vld [vmem:[%s9 + $0xa38] sm:$0xff]
  %v1934 = vld [vmem:[%s9 + $0xa40] sm:$0xff]
  %v1935 = vld [vmem:[%s9 + $0xa48] sm:$0xff]
  %v1936 = vld [vmem:[%s9 + $0xa50] sm:$0xff]
  %v1937 = vld [vmem:[%s9 + $0xa58] sm:$0xff]
  %v1938 = vld [vmem:[%s9 + $0xa60] sm:$0xff]
  %v1939 = vld [vmem:[%s9 + $0xa68] sm:$0xff]
  %v1940 = vld [vmem:[%s9 + $0xa70] sm:$0xff]
  %v1941 = vld [vmem:[%s9 + $0xa78] sm:$0xff]
  %v1942 = vld [vmem:[%s9 + $0xa80] sm:$0xff]
  %v1943 = vld [vmem:[%s9 + $0xa88] sm:$0xff]
  %v1944 = vld [vmem:[%s9 + $0xa90] sm:$0xff]
  %v1945 = vld [vmem:[%s9 + $0xa98] sm:$0xff]
  %v1946 = vld [vmem:[%s9 + $0xaa0] sm:$0xff]
  %v1947 = vld [vmem:[%s9 + $0xaa8] sm:$0xff]
  %v1948 = vld [vmem:[%s9 + $0xab0] sm:$0xff]
  %v1949 = vld [vmem:[%s9 + $0xab8] sm:$0xff]
  %v1950 = vld [vmem:[%s9 + $0xac0] sm:$0xff]
  %v1951 = vld [vmem:[%s9 + $0xac8] sm:$0xff]
  %v1952 = vld [vmem:[%s9 + $0xad0] sm:$0xff]
  %v1953 = vld [vmem:[%s9 + $0xad8] sm:$0xff]
  %v1954 = vld [vmem:[%s9 + $0xae0] sm:$0xff]
  %v1955 = vld [vmem:[%s9 + $0xae8] sm:$0xff]
  %v1956 = vld [vmem:[%s9 + $0xaf0] sm:$0xff]
  %v1957 = vld [vmem:[%s9 + $0xaf8] sm:$0xff]
  %v1958 = vld [vmem:[%s9 + $0xb00] sm:$0xff]
  %v1959 = vld [vmem:[%s9 + $0xb08] sm:$0xff]
  %v1960 = vld [vmem:[%s9 + $0xb10] sm:$0xff]
  %v1961 = vld [vmem:[%s9 + $0xb18] sm:$0xff]
  %v1962 = vld [vmem:[%s9 + $0xb20] sm:$0xff]
  %v1963 = vld [vmem:[%s9 + $0xb28] sm:$0xff]
  %v1964 = vld [vmem:[%s9 + $0xb30] sm:$0xff]
  %v1965 = vld [vmem:[%s9 + $0xb38] sm:$0xff]
  %v1966 = vld [vmem:[%s9 + $0xb40] sm:$0xff]
  %v1967 = vld [vmem:[%s9 + $0xb48] sm:$0xff]
  %v1968 = vld [vmem:[%s9 + $0xb50] sm:$0xff]
  %v1969 = vld [vmem:[%s9 + $0xb58] sm:$0xff]
  %v1970 = vld [vmem:[%s9 + $0xb60] sm:$0xff]
  %v1971 = vld [vmem:[%s9 + $0xb68] sm:$0xff]
  %v1972 = vld [vmem:[%s9 + $0xb70] sm:$0xff]
  %v1973 = vld [vmem:[%s9 + $0xb78] sm:$0xff]
  %v1974 = vld [vmem:[%s9 + $0xb80] sm:$0xff]
  %v1975 = vld [vmem:[%s9 + $0xb88] sm:$0xff]
  %v1976 = vld [vmem:[%s9 + $0xb90] sm:$0xff]
  %v1977 = vld [vmem:[%s9 + $0xb98] sm:$0xff]
  %v1978 = vld [vmem:[%s9 + $0xba0] sm:$0xff]
  %v1979 = vld [vmem:[%s9 + $0xba8] sm:$0xff]
  %v1980 = vld [vmem:[%s9 + $0xbb0] sm:$0xff]
  %v1981 = vld [vmem:[%s9 + $0xbb8] sm:$0xff]
  %v1982 = vld [vmem:[%s9 + $0xbc0] sm:$0xff]
  %v1983 = vld [vmem:[%s9 + $0xbc8] sm:$0xff]
  %v1984 = vld [vmem:[%s9 + $0xbd0] sm:$0xff]
  %v1985 = vld [vmem:[%s9 + $0xbd8] sm:$0xff]
  %v1986 = vld [vmem:[%s9 + $0xbe0] sm:$0xff]
  %v1987 = vld [vmem:[%s9 + $0xbe8] sm:$0xff]
  %v1988 = vld [vmem:[%s9 + $0xbf0] sm:$0xff]
  %v1989 = vld [vmem:[%s9 + $0xbf8] sm:$0xff]
  %v1990 = vld [vmem:[%s9 + $0xc00] sm:$0xff]
  %v1991 = vld [vmem:[%s9 + $0xc08] sm:$0xff]
  %v1992 = vld [vmem:[%s9 + $0xc10] sm:$0xff]
  %v1993 = vld [vmem:[%s9 + $0xc18] sm:$0xff]
  %v1994 = vld [vmem:[%s9 + $0xc20] sm:$0xff]
  %v1995 = vld [vmem:[%s9 + $0xc28] sm:$0xff]
  %v1996 = vld [vmem:[%s9 + $0xc30] sm:$0xff]
  %v1997 = vld [vmem:[%s9 + $0xc38] sm:$0xff]
  %v1998 = vld [vmem:[%s9 + $0xc40] sm:$0xff]
  %v1999 = vld [vmem:[%s9 + $0xc48] sm:$0xff]
  %v2000 = vld [vmem:[%s9 + $0xc50] sm:$0xff]
  %v2001 = vld [vmem:[%s9 + $0xc58] sm:$0xff]
  %v2002 = vld [vmem:[%s9 + $0xc60] sm:$0xff]
  %v2003 = vld [vmem:[%s9 + $0xc68] sm:$0xff]
  %v2004 = vld [vmem:[%s9 + $0xc70] sm:$0xff]
  %v2005 = vld [vmem:[%s9 + $0xc78] sm:$0xff]
  %v2006 = vld [vmem:[%s9 + $0xc80] sm:$0xff]
  %v2007 = vld [vmem:[%s9 + $0xc88] sm:$0xff]
  %v2008 = vld [vmem:[%s9 + $0xc90] sm:$0xff]
  %v2009 = vld [vmem:[%s9 + $0xc98] sm:$0xff]
  %v2010 = vld [vmem:[%s9 + $0xca0] sm:$0xff]
  %v2011 = vld [vmem:[%s9 + $0xca8] sm:$0xff]
  %v2012 = vld [vmem:[%s9 + $0xcb0] sm:$0xff]
  %v2013 = vld [vmem:[%s9 + $0xcb8] sm:$0xff]
  %v2014 = vld [vmem:[%s9 + $0xcc0] sm:$0xff]
  %v2015 = vld [vmem:[%s9 + $0xcc8] sm:$0xff]
  %v2016 = vld [vmem:[%s9 + $0xcd0] sm:$0xff]
  %v2017 = vld [vmem:[%s9 + $0xcd8] sm:$0xff]
  %v2018 = vld [vmem:[%s9 + $0xce0] sm:$0xff]
  %v2019 = vld [vmem:[%s9 + $0xce8] sm:$0xff]
  %v2020 = vld [vmem:[%s9 + $0xcf0] sm:$0xff]
  %v2021 = vld [vmem:[%s9 + $0xcf8] sm:$0xff]
  %v2022 = vld [vmem:[%s9 + $0xd00] sm:$0xff]
  %v2023 = vld [vmem:[%s9 + $0xd08] sm:$0xff]
  %v2024 = vld [vmem:[%s9 + $0xd10] sm:$0xff]
  %v2025 = vld [vmem:[%s9 + $0xd18] sm:$0xff]
  %v2026 = vld [vmem:[%s9 + $0xd20] sm:$0xff]
  %v2027 = vld [vmem:[%s9 + $0xd28] sm:$0xff]
  %v2028 = vld [vmem:[%s9 + $0xd30] sm:$0xff]
  %v2029 = vld [vmem:[%s9 + $0xd38] sm:$0xff]
  %v2030 = vld [vmem:[%s9 + $0xd40] sm:$0xff]
  %v2031 = vld [vmem:[%s9 + $0xd48] sm:$0xff]
  %v2032 = vld [vmem:[%s9 + $0xd50] sm:$0xff]
  %v2033 = vld [vmem:[%s9 + $0xd58] sm:$0xff]
  %v2034 = vld [vmem:[%s9 + $0xd60] sm:$0xff]
  %v2035 = vld [vmem:[%s9 + $0xd68] sm:$0xff]
  %v2036 = vld [vmem:[%s9 + $0xd70] sm:$0xff]
  %v2037 = vld [vmem:[%s9 + $0xd78] sm:$0xff]
  %v2038 = vld [vmem:[%s9 + $0xd80] sm:$0xff]
  %v2039 = vld [vmem:[%s9 + $0xd88] sm:$0xff]
  %v2040 = vld [vmem:[%s9 + $0xd90] sm:$0xff]
  %v2041 = vld [vmem:[%s9 + $0xd98] sm:$0xff]
  %v2042 = vld [vmem:[%s9 + $0xda0] sm:$0xff]
  %v2043 = vld [vmem:[%s9 + $0xda8] sm:$0xff]
  %v2044 = vld [vmem:[%s9 + $0xdb0] sm:$0xff]
  %v2045 = vld [vmem:[%s9 + $0xdb8] sm:$0xff]
  %v2046 = vld [vmem:[%s9 + $0xdc0] sm:$0xff]
  %v2047 = vld [vmem:[%s9 + $0xdc8] sm:$0xff]
  %v2048 = vld [vmem:[%s9 + $0xdd0] sm:$0xff]
  %v2049 = vld [vmem:[%s9 + $0xdd8] sm:$0xff]
  %v2050 = vld [vmem:[%s9 + $0xde0] sm:$0xff]
  %v2051 = vld [vmem:[%s9 + $0xde8] sm:$0xff]
  %v2052 = vld [vmem:[%s9 + $0xdf0] sm:$0xff]
  %v2053 = vld [vmem:[%s9 + $0xdf8] sm:$0xff]
  %v2054 = vld [vmem:[%s9 + $0xe00] sm:$0xff]
  %v2055 = vld [vmem:[%s9 + $0xe08] sm:$0xff]
  %v2056 = vld [vmem:[%s9 + $0xe10] sm:$0xff]
  %v2057 = vld [vmem:[%s9 + $0xe18] sm:$0xff]
  %v2058 = vld [vmem:[%s9 + $0xe20] sm:$0xff]
  %v2059 = vld [vmem:[%s9 + $0xe28] sm:$0xff]
  %v2060 = vld [vmem:[%s9 + $0xe30] sm:$0xff]
  %v2061 = vld [vmem:[%s9 + $0xe38] sm:$0xff]
  %v2062 = vld [vmem:[%s9 + $0xe40] sm:$0xff]
  %v2063 = vld [vmem:[%s9 + $0xe48] sm:$0xff]
  %v2064 = vld [vmem:[%s9 + $0xe50] sm:$0xff]
  %v2065 = vld [vmem:[%s9 + $0xe58] sm:$0xff]
  %v2066 = vld [vmem:[%s9 + $0xe60] sm:$0xff]
  %v2067 = vld [vmem:[%s9 + $0xe68] sm:$0xff]
  %v2068 = vld [vmem:[%s9 + $0xe70] sm:$0xff]
  %v2069 = vld [vmem:[%s9 + $0xe78] sm:$0xff]
  %v2070 = vld [vmem:[%s9 + $0xe80] sm:$0xff]
  %v2071 = vld [vmem:[%s9 + $0xe88] sm:$0xff]
  %v2072 = vld [vmem:[%s9 + $0xe90] sm:$0xff]
  %v2073 = vld [vmem:[%s9 + $0xe98] sm:$0xff]
  %v2074 = vld [vmem:[%s9 + $0xea0] sm:$0xff]
  %v2075 = vld [vmem:[%s9 + $0xea8] sm:$0xff]
  %v2076 = vld [vmem:[%s9 + $0xeb0] sm:$0xff]
  %v2077 = vld [vmem:[%s9 + $0xeb8] sm:$0xff]
  %v2078 = vld [vmem:[%s9 + $0xec0] sm:$0xff]
  %v2079 = vld [vmem:[%s9 + $0xec8] sm:$0xff]
  %v2080 = vld [vmem:[%s9 + $0xed0] sm:$0xff]
  %v2081 = vld [vmem:[%s9 + $0xed8] sm:$0xff]
  %v2082 = vld [vmem:[%s9 + $0xee0] sm:$0xff]
  %v2083 = vld [vmem:[%s9 + $0xee8] sm:$0xff]
  %v2084 = vld [vmem:[%s9 + $0xef0] sm:$0xff]
  %v2085 = vld [vmem:[%s9 + $0xef8] sm:$0xff]
  %v2086 = vld [vmem:[%s9 + $0xf00] sm:$0xff]
  %v2087 = vld [vmem:[%s9 + $0xf08] sm:$0xff]
  %v2088 = vld [vmem:[%s9 + $0xf10] sm:$0xff]
  %v2089 = vld [vmem:[%s9 + $0xf18] sm:$0xff]
  %v2090 = vld [vmem:[%s9 + $0xf20] sm:$0xff]
  %v2091 = vld [vmem:[%s9 + $0xf28] sm:$0xff]
  %v2092 = vld [vmem:[%s9 + $0xf30] sm:$0xff]
  %v2093 = vld [vmem:[%s9 + $0xf38] sm:$0xff]
  %v2094 = vld [vmem:[%s9 + $0xf40] sm:$0xff]
  %v2095 = vld [vmem:[%s9 + $0xf48] sm:$0xff]
  %v2096 = vld [vmem:[%s9 + $0xf50] sm:$0xff]
  %v2097 = vld [vmem:[%s9 + $0xf58] sm:$0xff]
  %v2098 = vld [vmem:[%s9 + $0xf60] sm:$0xff]
  %v2099 = vld [vmem:[%s9 + $0xf68] sm:$0xff]
  %v2100 = vld [vmem:[%s9 + $0xf70] sm:$0xff]
  %v2101 = vld [vmem:[%s9 + $0xf78] sm:$0xff]
  %v2102 = vld [vmem:[%s9 + $0xf80] sm:$0xff]
  %v2103 = vld [vmem:[%s9 + $0xf88] sm:$0xff]
  %v2104 = vld [vmem:[%s9 + $0xf90] sm:$0xff]
  %v2105 = vld [vmem:[%s9 + $0xf98] sm:$0xff]
  %v2106 = vld [vmem:[%s9 + $0xfa0] sm:$0xff]
  %v2107 = vld [vmem:[%s9 + $0xfa8] sm:$0xff]
  %v2108 = vld [vmem:[%s9 + $0xfb0] sm:$0xff]
  %v2109 = vld [vmem:[%s9 + $0xfb8] sm:$0xff]
  %v2110 = vld [vmem:[%s9 + $0xfc0] sm:$0xff]
  %v2111 = vld [vmem:[%s9 + $0xfc8] sm:$0xff]
  %v2112 = vld [vmem:[%s9 + $0xfd0] sm:$0xff]
  %v2113 = vld [vmem:[%s9 + $0xfd8] sm:$0xff]
  %v2114 = vld [vmem:[%s9 + $0xfe0] sm:$0xff]
  %v2115 = vld [vmem:[%s9 + $0xfe8] sm:$0xff]
  %v2116 = vld [vmem:[%s9 + $0xff0] sm:$0xff]
  %v2117 = vld [vmem:[%s9 + $0xff8] sm:$0xff]
  %v2118 = vld [vmem:[%s9 + $0x1000] sm:$0xff]
  %v2119 = vld [vmem:[%s9 + $0x1008] sm:$0xff]
  %v2120 = vld [vmem:[%s9 + $0x1010] sm:$0xff]
  %v2121 = vld [vmem:[%s9 + $0x1018] sm:$0xff]
  %v2122 = vld [vmem:[%s9 + $0x1020] sm:$0xff]
  %v2123 = vld [vmem:[%s9 + $0x1028] sm:$0xff]
  %v2124 = vld [vmem:[%s9 + $0x1030] sm:$0xff]
  %v2125 = vld [vmem:[%s9 + $0x1038] sm:$0xff]
  %v2126 = vld [vmem:[%s9 + $0x1040] sm:$0xff]
  %v2127 = vld [vmem:[%s9 + $0x1048] sm:$0xff]
  %v2128 = vld [vmem:[%s9 + $0x1050] sm:$0xff]
  %v2129 = vld [vmem:[%s9 + $0x1058] sm:$0xff]
  %v2130 = vld [vmem:[%s9 + $0x1060] sm:$0xff]
  %v2131 = vld [vmem:[%s9 + $0x1068] sm:$0xff]
  %v2132 = vld [vmem:[%s9 + $0x1070] sm:$0xff]
  %v2133 = vld [vmem:[%s9 + $0x1078] sm:$0xff]
  %v2134 = vld [vmem:[%s9 + $0x1080] sm:$0xff]
  %v2135 = vld [vmem:[%s9 + $0x1088] sm:$0xff]
  %v2136 = vld [vmem:[%s9 + $0x1090] sm:$0xff]
  %v2137 = vld [vmem:[%s9 + $0x1098] sm:$0xff]
  %v2138 = vld [vmem:[%s9 + $0x10a0] sm:$0xff]
  %v2139 = vld [vmem:[%s9 + $0x10a8] sm:$0xff]
  %v2140 = vld [vmem:[%s9 + $0x10b0] sm:$0xff]
  %v2141 = vld [vmem:[%s9 + $0x10b8] sm:$0xff]
  %v2142 = vld [vmem:[%s9 + $0x10c0] sm:$0xff]
  %v2143 = vld [vmem:[%s9 + $0x10c8] sm:$0xff]
  %v2144 = vld [vmem:[%s9 + $0x10d0] sm:$0xff]
  %v2145 = vld [vmem:[%s9 + $0x10d8] sm:$0xff]
  %v2146 = vld [vmem:[%s9 + $0x10e0] sm:$0xff]
  %v2147 = vld [vmem:[%s9 + $0x10e8] sm:$0xff]
  %v2148 = vld [vmem:[%s9 + $0x10f0] sm:$0xff]
  %v2149 = vld [vmem:[%s9 + $0x10f8] sm:$0xff]
  %v2150 = vld [vmem:[%s9 + $0x1100] sm:$0xff]
  %v2151 = vld [vmem:[%s9 + $0x1108] sm:$0xff]
  %v2152 = vld [vmem:[%s9 + $0x1110] sm:$0xff]
  %v2153 = vld [vmem:[%s9 + $0x1118] sm:$0xff]
  %v2154 = vld [vmem:[%s9 + $0x1120] sm:$0xff]
  %v2155 = vld [vmem:[%s9 + $0x1128] sm:$0xff]
  %v2156 = vld [vmem:[%s9 + $0x1130] sm:$0xff]
  %v2157 = vld [vmem:[%s9 + $0x1138] sm:$0xff]
  %v2158 = vld [vmem:[%s9 + $0x1140] sm:$0xff]
  %v2159 = vld [vmem:[%s9 + $0x1148] sm:$0xff]
  %v2160 = vld [vmem:[%s9 + $0x1150] sm:$0xff]
  %v2161 = vld [vmem:[%s9 + $0x1158] sm:$0xff]
  %v2162 = vld [vmem:[%s9 + $0x1160] sm:$0xff]
  %v2163 = vld [vmem:[%s9 + $0x1168] sm:$0xff]
  %v2164 = vld [vmem:[%s9 + $0x1170] sm:$0xff]
  %v2165 = vld [vmem:[%s9 + $0x1178] sm:$0xff]
  %v2166 = vld [vmem:[%s9 + $0x1180] sm:$0xff]
  %v2167 = vld [vmem:[%s9 + $0x1188] sm:$0xff]
  %v2168 = vld [vmem:[%s9 + $0x1190] sm:$0xff]
  %v2169 = vld [vmem:[%s9 + $0x1198] sm:$0xff]
  %v2170 = vld [vmem:[%s9 + $0x11a0] sm:$0xff]
  %v2171 = vld [vmem:[%s9 + $0x11a8] sm:$0xff]
  %v2172 = vld [vmem:[%s9 + $0x11b0] sm:$0xff]
  %v2173 = vld [vmem:[%s9 + $0x11b8] sm:$0xff]
  %v2174 = vld [vmem:[%s9 + $0x11c0] sm:$0xff]
  %v2175 = vld [vmem:[%s9 + $0x11c8] sm:$0xff]
  %v2176 = vld [vmem:[%s9 + $0x11d0] sm:$0xff]
  %v2177 = vld [vmem:[%s9 + $0x11d8] sm:$0xff]
  %v2178 = vld [vmem:[%s9 + $0x11e0] sm:$0xff]
  %v2179 = vld [vmem:[%s9 + $0x11e8] sm:$0xff]
  %v2180 = vld [vmem:[%s9 + $0x11f0] sm:$0xff]
  %v2181 = vld [vmem:[%s9 + $0x11f8] sm:$0xff]
  %2182 = vmatprep.subr.mxu0 %v1607
  %2183 = vmatpush1.msra.mxu0 %v1606
  %2184 = vmatprep.subr.mxu0 %v1613
  %2185 = vmatpush1.msra.mxu0 %v1612
  %2186 = vmatprep.subr.mxu0 %v1619
  %2187 = vmatpush1.msra.mxu0 %v1618
  %2188 = vmatprep.subr.mxu0 %v1625
  %2189 = vmatpush1.msra.mxu0 %v1624
  %2190 = vmatprep.subr.mxu0 %v1631
  %2191 = vmatpush1.msra.mxu0 %v1630
  %2192 = vmatprep.subr.mxu0 %v1637
  %2193 = vmatpush1.msra.mxu0 %v1636
  %2194 = vmatprep.subr.mxu0 %v1643
  %2195 = vmatpush1.msra.mxu0 %v1642
  %2196 = vmatprep.subr.mxu0 %v1649
  %2197 = vmatpush1.msra.mxu0 %v1648
  %2198 = vmatprep.subr.mxu0 %v1655
  %2199 = vmatpush1.msra.mxu0 %v1654
  %2200 = vmatprep.subr.mxu0 %v1661
  %2201 = vmatpush1.msra.mxu0 %v1660
  %2202 = vmatprep.subr.mxu0 %v1667
  %2203 = vmatpush1.msra.mxu0 %v1666
  %2204 = vmatprep.subr.mxu0 %v1673
  %2205 = vmatpush1.msra.mxu0 %v1672
  %2206 = vmatprep.subr.mxu0 %v1679
  %2207 = vmatpush1.msra.mxu0 %v1678
  %2208 = vmatprep.subr.mxu0 %v1685
  %2209 = vmatpush1.msra.mxu0 %v1684
  %2210 = vmatprep.subr.mxu0 %v1691
  %2211 = vmatpush1.msra.mxu0 %v1690
  %2212 = vmatprep.subr.mxu0 %v1697
  %2213 = vmatpush1.msra.mxu0 %v1696
  %2214 = vmatprep.subr.mxu0 %v1703
  %2215 = vmatpush1.msra.mxu0 %v1702
  %2216 = vmatprep.subr.mxu0 %v1709
  %2217 = vmatpush1.msra.mxu0 %v1708
  %2218 = vmatprep.subr.mxu0 %v1715
  %2219 = vmatpush1.msra.mxu0 %v1714
  %2220 = vmatprep.subr.mxu0 %v1721
  %2221 = vmatpush1.msra.mxu0 %v1720
  %2222 = vmatprep.subr.mxu0 %v1727
  %2223 = vmatpush1.msra.mxu0 %v1726
  %2224 = vmatprep.subr.mxu0 %v1733
  %2225 = vmatpush1.msra.mxu0 %v1732
  %2226 = vmatprep.subr.mxu0 %v1739
  %2227 = vmatpush1.msra.mxu0 %v1738
  %2228 = vmatprep.subr.mxu0 %v1745
  %2229 = vmatpush1.msra.mxu0 %v1744
  %2230 = vmatprep.subr.mxu0 %v1751
  %2231 = vmatpush1.msra.mxu0 %v1750
  %2232 = vmatprep.subr.mxu0 %v1757
  %2233 = vmatpush1.msra.mxu0 %v1756
  %2234 = vmatprep.subr.mxu0 %v1763
  %2235 = vmatpush1.msra.mxu0 %v1762
  %2236 = vmatprep.subr.mxu0 %v1769
  %2237 = vmatpush1.msra.mxu0 %v1768
  %2238 = vmatprep.subr.mxu0 %v1775
  %2239 = vmatpush1.msra.mxu0 %v1774
  %2240 = vmatprep.subr.mxu0 %v1781
  %2241 = vmatpush1.msra.mxu0 %v1780
  %2242 = vmatprep.subr.mxu0 %v1787
  %2243 = vmatpush1.msra.mxu0 %v1786
  %2244 = vmatprep.subr.mxu0 %v1793
  %2245 = vmatpush1.msra.mxu0 %v1792
  %2246 = vmatprep.mubr.f32.mxu0 %v1601
  %2247 = vmatmul.mubr.f32.gmra.mrb[0].mxu0 %v1600
  %v2248 = vpop.f32.mrb[0].mxu0
  %v2249 = vadd.f32 0.0, %v2248
  %v2250 = vpop.f32.mrb[0].mxu0
  %v2251 = vadd.f32 0.0, %v2250
  %2252 = vdwg.mxu0
  %2253 = vmatprep.subr.mxu0 %v1799
  %2254 = vmatpush1.msra.mxu0 %v1798
  %2255 = vmatprep.subr.mxu0 %v1805
  %2256 = vmatpush1.msra.mxu0 %v1804
  %2257 = vmatprep.subr.mxu0 %v1811
  %2258 = vmatpush1.msra.mxu0 %v1810
  %2259 = vmatprep.subr.mxu0 %v1817
  %2260 = vmatpush1.msra.mxu0 %v1816
  %2261 = vmatprep.subr.mxu0 %v1823
  %2262 = vmatpush1.msra.mxu0 %v1822
  %2263 = vmatprep.subr.mxu0 %v1829
  %2264 = vmatpush1.msra.mxu0 %v1828
  %2265 = vmatprep.subr.mxu0 %v1835
  %2266 = vmatpush1.msra.mxu0 %v1834
  %2267 = vmatprep.subr.mxu0 %v1841
  %2268 = vmatpush1.msra.mxu0 %v1840
  %2269 = vmatprep.subr.mxu0 %v1847
  %2270 = vmatpush1.msra.mxu0 %v1846
  %2271 = vmatprep.subr.mxu0 %v1853
  %2272 = vmatpush1.msra.mxu0 %v1852
  %2273 = vmatprep.subr.mxu0 %v1859
  %2274 = vmatpush1.msra.mxu0 %v1858
  %2275 = vmatprep.subr.mxu0 %v1865
  %2276 = vmatpush1.msra.mxu0 %v1864
  %2277 = vmatprep.subr.mxu0 %v1871
  %2278 = vmatpush1.msra.mxu0 %v1870
  %2279 = vmatprep.subr.mxu0 %v1877
  %2280 = vmatpush1.msra.mxu0 %v1876
  %2281 = vmatprep.subr.mxu0 %v1883
  %2282 = vmatpush1.msra.mxu0 %v1882
  %2283 = vmatprep.subr.mxu0 %v1889
  %2284 = vmatpush1.msra.mxu0 %v1888
  %2285 = vmatprep.subr.mxu0 %v1895
  %2286 = vmatpush1.msra.mxu0 %v1894
  %2287 = vmatprep.subr.mxu0 %v1901
  %2288 = vmatpush1.msra.mxu0 %v1900
  %2289 = vmatprep.subr.mxu0 %v1907
  %2290 = vmatpush1.msra.mxu0 %v1906
  %2291 = vmatprep.subr.mxu0 %v1913
  %2292 = vmatpush1.msra.mxu0 %v1912
  %2293 = vmatprep.subr.mxu0 %v1919
  %2294 = vmatpush1.msra.mxu0 %v1918
  %2295 = vmatprep.subr.mxu0 %v1925
  %2296 = vmatpush1.msra.mxu0 %v1924
  %2297 = vmatprep.subr.mxu0 %v1931
  %2298 = vmatpush1.msra.mxu0 %v1930
  %2299 = vmatprep.subr.mxu0 %v1937
  %2300 = vmatpush1.msra.mxu0 %v1936
  %2301 = vmatprep.subr.mxu0 %v1943
  %2302 = vmatpush1.msra.mxu0 %v1942
  %2303 = vmatprep.subr.mxu0 %v1949
  %2304 = vmatpush1.msra.mxu0 %v1948
  %2305 = vmatprep.subr.mxu0 %v1955
  %2306 = vmatpush1.msra.mxu0 %v1954
  %2307 = vmatprep.subr.mxu0 %v1961
  %2308 = vmatpush1.msra.mxu0 %v1960
  %2309 = vmatprep.subr.mxu0 %v1967
  %2310 = vmatpush1.msra.mxu0 %v1966
  %2311 = vmatprep.subr.mxu0 %v1973
  %2312 = vmatpush1.msra.mxu0 %v1972
  %2313 = vmatprep.subr.mxu0 %v1979
  %2314 = vmatpush1.msra.mxu0 %v1978
  %2315 = vmatprep.subr.mxu0 %v1985
  %2316 = vmatpush1.msra.mxu0 %v1984
  %2317 = vmatprep.mubr.f32.mxu0 %v1603
  %2318 = vmatmul.mubr.f32.gmra.mrb[0].mxu0 %v1602
  %v2319 = vpop.f32.mrb[0].mxu0
  %v2320 = vadd.f32 %v2249, %v2319
  %v2321 = vpop.f32.mrb[0].mxu0
  %v2322 = vadd.f32 %v2251, %v2321
  %2323 = vdwg.mxu0
  %2324 = vmatprep.subr.mxu0 %v1991
  %2325 = vmatpush1.msra.mxu0 %v1990
  %2326 = vmatprep.subr.mxu0 %v1997
  %2327 = vmatpush1.msra.mxu0 %v1996
  %2328 = vmatprep.subr.mxu0 %v2003
  %2329 = vmatpush1.msra.mxu0 %v2002
  %2330 = vmatprep.subr.mxu0 %v2009
  %2331 = vmatpush1.msra.mxu0 %v2008
  %2332 = vmatprep.subr.mxu0 %v2015
  %2333 = vmatpush1.msra.mxu0 %v2014
  %2334 = vmatprep.subr.mxu0 %v2021
  %2335 = vmatpush1.msra.mxu0 %v2020
  %2336 = vmatprep.subr.mxu0 %v2027
  %2337 = vmatpush1.msra.mxu0 %v2026
  %2338 = vmatprep.subr.mxu0 %v2033
  %2339 = vmatpush1.msra.mxu0 %v2032
  %2340 = vmatprep.subr.mxu0 %v2039
  %2341 = vmatpush1.msra.mxu0 %v2038
  %2342 = vmatprep.subr.mxu0 %v2045
  %2343 = vmatpush1.msra.mxu0 %v2044
  %2344 = vmatprep.subr.mxu0 %v2051
  %2345 = vmatpush1.msra.mxu0 %v2050
  %2346 = vmatprep.subr.mxu0 %v2057
  %2347 = vmatpush1.msra.mxu0 %v2056
  %2348 = vmatprep.subr.mxu0 %v2063
  %2349 = vmatpush1.msra.mxu0 %v2062
  %2350 = vmatprep.subr.mxu0 %v2069
  %2351 = vmatpush1.msra.mxu0 %v2068
  %2352 = vmatprep.subr.mxu0 %v2075
  %2353 = vmatpush1.msra.mxu0 %v2074
  %2354 = vmatprep.subr.mxu0 %v2081
  %2355 = vmatpush1.msra.mxu0 %v2080
  %2356 = vmatprep.subr.mxu0 %v2087
  %2357 = vmatpush1.msra.mxu0 %v2086
  %2358 = vmatprep.subr.mxu0 %v2093
  %2359 = vmatpush1.msra.mxu0 %v2092
  %2360 = vmatprep.subr.mxu0 %v2099
  %2361 = vmatpush1.msra.mxu0 %v2098
  %2362 = vmatprep.subr.mxu0 %v2105
  %2363 = vmatpush1.msra.mxu0 %v2104
  %2364 = vmatprep.subr.mxu0 %v2111
  %2365 = vmatpush1.msra.mxu0 %v2110
  %2366 = vmatprep.subr.mxu0 %v2117
  %2367 = vmatpush1.msra.mxu0 %v2116
  %2368 = vmatprep.subr.mxu0 %v2123
  %2369 = vmatpush1.msra.mxu0 %v2122
  %2370 = vmatprep.subr.mxu0 %v2129
  %2371 = vmatpush1.msra.mxu0 %v2128
  %2372 = vmatprep.subr.mxu0 %v2135
  %2373 = vmatpush1.msra.mxu0 %v2134
  %2374 = vmatprep.subr.mxu0 %v2141
  %2375 = vmatpush1.msra.mxu0 %v2140
  %2376 = vmatprep.subr.mxu0 %v2147
  %2377 = vmatpush1.msra.mxu0 %v2146
  %2378 = vmatprep.subr.mxu0 %v2153
  %2379 = vmatpush1.msra.mxu0 %v2152
  %2380 = vmatprep.subr.mxu0 %v2159
  %2381 = vmatpush1.msra.mxu0 %v2158
  %2382 = vmatprep.subr.mxu0 %v2165
  %2383 = vmatpush1.msra.mxu0 %v2164
  %2384 = vmatprep.subr.mxu0 %v2171
  %2385 = vmatpush1.msra.mxu0 %v2170
  %2386 = vmatprep.subr.mxu0 %v2177
  %2387 = vmatpush1.msra.mxu0 %v2176
  %2388 = vmatprep.mubr.f32.mxu0 %v1605
  %2389 = vmatmul.mubr.f32.gmra.mrb[0].mxu0 %v1604
  %v2390 = vpop.f32.mrb[0].mxu0
  %v2391 = vadd.f32 %v2320, %v2390
  %v2392 = vpop.f32.mrb[0].mxu0
  %v2393 = vadd.f32 %v2322, %v2392
  %2394 = vdwg.mxu0
  %2395 = vmatprep.subr.mxu0 %v1609
  %2396 = vmatpush1.msra.mxu0 %v1608
  %2397 = vmatprep.subr.mxu0 %v1615
  %2398 = vmatpush1.msra.mxu0 %v1614
  %2399 = vmatprep.subr.mxu0 %v1621
  %2400 = vmatpush1.msra.mxu0 %v1620
  %2401 = vmatprep.subr.mxu0 %v1627
  %2402 = vmatpush1.msra.mxu0 %v1626
  %2403 = vmatprep.subr.mxu0 %v1633
  %2404 = vmatpush1.msra.mxu0 %v1632
  %2405 = vmatprep.subr.mxu0 %v1639
  %2406 = vmatpush1.msra.mxu0 %v1638
  %2407 = vmatprep.subr.mxu0 %v1645
  %2408 = vmatpush1.msra.mxu0 %v1644
  %2409 = vmatprep.subr.mxu0 %v1651
  %2410 = vmatpush1.msra.mxu0 %v1650
  %2411 = vmatprep.subr.mxu0 %v1657
  %2412 = vmatpush1.msra.mxu0 %v1656
  %2413 = vmatprep.subr.mxu0 %v1663
  %2414 = vmatpush1.msra.mxu0 %v1662
  %2415 = vmatprep.subr.mxu0 %v1669
  %2416 = vmatpush1.msra.mxu0 %v1668
  %2417 = vmatprep.subr.mxu0 %v1675
  %2418 = vmatpush1.msra.mxu0 %v1674
  %2419 = vmatprep.subr.mxu0 %v1681
  %2420 = vmatpush1.msra.mxu0 %v1680
  %2421 = vmatprep.subr.mxu0 %v1687
  %2422 = vmatpush1.msra.mxu0 %v1686
  %2423 = vmatprep.subr.mxu0 %v1693
  %2424 = vmatpush1.msra.mxu0 %v1692
  %2425 = vmatprep.subr.mxu0 %v1699
  %2426 = vmatpush1.msra.mxu0 %v1698
  %2427 = vmatprep.subr.mxu0 %v1705
  %2428 = vmatpush1.msra.mxu0 %v1704
  %2429 = vmatprep.subr.mxu0 %v1711
  %2430 = vmatpush1.msra.mxu0 %v1710
  %2431 = vmatprep.subr.mxu0 %v1717
  %2432 = vmatpush1.msra.mxu0 %v1716
  %2433 = vmatprep.subr.mxu0 %v1723
  %2434 = vmatpush1.msra.mxu0 %v1722
  %2435 = vmatprep.subr.mxu0 %v1729
  %2436 = vmatpush1.msra.mxu0 %v1728
  %2437 = vmatprep.subr.mxu0 %v1735
  %2438 = vmatpush1.msra.mxu0 %v1734
  %2439 = vmatprep.subr.mxu0 %v1741
  %2440 = vmatpush1.msra.mxu0 %v1740
  %2441 = vmatprep.subr.mxu0 %v1747
  %2442 = vmatpush1.msra.mxu0 %v1746
  %2443 = vmatprep.subr.mxu0 %v1753
  %2444 = vmatpush1.msra.mxu0 %v1752
  %2445 = vmatprep.subr.mxu0 %v1759
  %2446 = vmatpush1.msra.mxu0 %v1758
  %2447 = vmatprep.subr.mxu0 %v1765
  %2448 = vmatpush1.msra.mxu0 %v1764
  %2449 = vmatprep.subr.mxu0 %v1771
  %2450 = vmatpush1.msra.mxu0 %v1770
  %2451 = vmatprep.subr.mxu0 %v1777
  %2452 = vmatpush1.msra.mxu0 %v1776
  %2453 = vmatprep.subr.mxu0 %v1783
  %2454 = vmatpush1.msra.mxu0 %v1782
  %2455 = vmatprep.subr.mxu0 %v1789
  %2456 = vmatpush1.msra.mxu0 %v1788
  %2457 = vmatprep.subr.mxu0 %v1795
  %2458 = vmatpush1.msra.mxu0 %v1794
  %2459 = vmatprep.mubr.f32.mxu0 %v1601
  %2460 = vmatmul.mubr.f32.gmra.mrb[0].mxu0 %v1600
  %v2461 = vpop.f32.mrb[0].mxu0
  %v2462 = vadd.f32 0.0, %v2461
  %v2463 = vpop.f32.mrb[0].mxu0
  %v2464 = vadd.f32 0.0, %v2463
  %2465 = vdwg.mxu0
  %2466 = vmatprep.subr.mxu0 %v1801
  %2467 = vmatpush1.msra.mxu0 %v1800
  %2468 = vmatprep.subr.mxu0 %v1807
  %2469 = vmatpush1.msra.mxu0 %v1806
  %2470 = vmatprep.subr.mxu0 %v1813
  %2471 = vmatpush1.msra.mxu0 %v1812
  %2472 = vmatprep.subr.mxu0 %v1819
  %2473 = vmatpush1.msra.mxu0 %v1818
  %2474 = vmatprep.subr.mxu0 %v1825
  %2475 = vmatpush1.msra.mxu0 %v1824
  %2476 = vmatprep.subr.mxu0 %v1831
  %2477 = vmatpush1.msra.mxu0 %v1830
  %2478 = vmatprep.subr.mxu0 %v1837
  %2479 = vmatpush1.msra.mxu0 %v1836
  %2480 = vmatprep.subr.mxu0 %v1843
  %2481 = vmatpush1.msra.mxu0 %v1842
  %2482 = vmatprep.subr.mxu0 %v1849
  %2483 = vmatpush1.msra.mxu0 %v1848
  %2484 = vmatprep.subr.mxu0 %v1855
  %2485 = vmatpush1.msra.mxu0 %v1854
  %2486 = vmatprep.subr.mxu0 %v1861
  %2487 = vmatpush1.msra.mxu0 %v1860
  %2488 = vmatprep.subr.mxu0 %v1867
  %2489 = vmatpush1.msra.mxu0 %v1866
  %2490 = vmatprep.subr.mxu0 %v1873
  %2491 = vmatpush1.msra.mxu0 %v1872
  %2492 = vmatprep.subr.mxu0 %v1879
  %2493 = vmatpush1.msra.mxu0 %v1878
  %2494 = vmatprep.subr.mxu0 %v1885
  %2495 = vmatpush1.msra.mxu0 %v1884
  %2496 = vmatprep.subr.mxu0 %v1891
  %2497 = vmatpush1.msra.mxu0 %v1890
  %2498 = vmatprep.subr.mxu0 %v1897
  %2499 = vmatpush1.msra.mxu0 %v1896
  %2500 = vmatprep.subr.mxu0 %v1903
  %2501 = vmatpush1.msra.mxu0 %v1902
  %2502 = vmatprep.subr.mxu0 %v1909
  %2503 = vmatpush1.msra.mxu0 %v1908
  %2504 = vmatprep.subr.mxu0 %v1915
  %2505 = vmatpush1.msra.mxu0 %v1914
  %2506 = vmatprep.subr.mxu0 %v1921
  %2507 = vmatpush1.msra.mxu0 %v1920
  %2508 = vmatprep.subr.mxu0 %v1927
  %2509 = vmatpush1.msra.mxu0 %v1926
  %2510 = vmatprep.subr.mxu0 %v1933
  %2511 = vmatpush1.msra.mxu0 %v1932
  %2512 = vmatprep.subr.mxu0 %v1939
  %2513 = vmatpush1.msra.mxu0 %v1938
  %2514 = vmatprep.subr.mxu0 %v1945
  %2515 = vmatpush1.msra.mxu0 %v1944
  %2516 = vmatprep.subr.mxu0 %v1951
  %2517 = vmatpush1.msra.mxu0 %v1950
  %2518 = vmatprep.subr.mxu0 %v1957
  %2519 = vmatpush1.msra.mxu0 %v1956
  %2520 = vmatprep.subr.mxu0 %v1963
  %2521 = vmatpush1.msra.mxu0 %v1962
  %2522 = vmatprep.subr.mxu0 %v1969
  %2523 = vmatpush1.msra.mxu0 %v1968
  %2524 = vmatprep.subr.mxu0 %v1975
  %2525 = vmatpush1.msra.mxu0 %v1974
  %2526 = vmatprep.subr.mxu0 %v1981
  %2527 = vmatpush1.msra.mxu0 %v1980
  %2528 = vmatprep.subr.mxu0 %v1987
  %2529 = vmatpush1.msra.mxu0 %v1986
  %2530 = vmatprep.mubr.f32.mxu0 %v1603
  %2531 = vmatmul.mubr.f32.gmra.mrb[0].mxu0 %v1602
  %v2532 = vpop.f32.mrb[0].mxu0
  %v2533 = vadd.f32 %v2462, %v2532
  %v2534 = vpop.f32.mrb[0].mxu0
  %v2535 = vadd.f32 %v2464, %v2534
  %2536 = vdwg.mxu0
  %2537 = vmatprep.subr.mxu0 %v1993
  %2538 = vmatpush1.msra.mxu0 %v1992
  %2539 = vmatprep.subr.mxu0 %v1999
  %2540 = vmatpush1.msra.mxu0 %v1998
  %2541 = vmatprep.subr.mxu0 %v2005
  %2542 = vmatpush1.msra.mxu0 %v2004
  %2543 = vmatprep.subr.mxu0 %v2011
  %2544 = vmatpush1.msra.mxu0 %v2010
  %2545 = vmatprep.subr.mxu0 %v2017
  %2546 = vmatpush1.msra.mxu0 %v2016
  %2547 = vmatprep.subr.mxu0 %v2023
  %2548 = vmatpush1.msra.mxu0 %v2022
  %2549 = vmatprep.subr.mxu0 %v2029
  %2550 = vmatpush1.msra.mxu0 %v2028
  %2551 = vmatprep.subr.mxu0 %v2035
  %2552 = vmatpush1.msra.mxu0 %v2034
  %2553 = vmatprep.subr.mxu0 %v2041
  %2554 = vmatpush1.msra.mxu0 %v2040
  %2555 = vmatprep.subr.mxu0 %v2047
  %2556 = vmatpush1.msra.mxu0 %v2046
  %2557 = vmatprep.subr.mxu0 %v2053
  %2558 = vmatpush1.msra.mxu0 %v2052
  %2559 = vmatprep.subr.mxu0 %v2059
  %2560 = vmatpush1.msra.mxu0 %v2058
  %2561 = vmatprep.subr.mxu0 %v2065
  %2562 = vmatpush1.msra.mxu0 %v2064
  %2563 = vmatprep.subr.mxu0 %v2071
  %2564 = vmatpush1.msra.mxu0 %v2070
  %2565 = vmatprep.subr.mxu0 %v2077
  %2566 = vmatpush1.msra.mxu0 %v2076
  %2567 = vmatprep.subr.mxu0 %v2083
  %2568 = vmatpush1.msra.mxu0 %v2082
  %2569 = vmatprep.subr.mxu0 %v2089
  %2570 = vmatpush1.msra.mxu0 %v2088
  %2571 = vmatprep.subr.mxu0 %v2095
  %2572 = vmatpush1.msra.mxu0 %v2094
  %2573 = vmatprep.subr.mxu0 %v2101
  %2574 = vmatpush1.msra.mxu0 %v2100
  %2575 = vmatprep.subr.mxu0 %v2107
  %2576 = vmatpush1.msra.mxu0 %v2106
  %2577 = vmatprep.subr.mxu0 %v2113
  %2578 = vmatpush1.msra.mxu0 %v2112
  %2579 = vmatprep.subr.mxu0 %v2119
  %2580 = vmatpush1.msra.mxu0 %v2118
  %2581 = vmatprep.subr.mxu0 %v2125
  %2582 = vmatpush1.msra.mxu0 %v2124
  %2583 = vmatprep.subr.mxu0 %v2131
  %2584 = vmatpush1.msra.mxu0 %v2130
  %2585 = vmatprep.subr.mxu0 %v2137
  %2586 = vmatpush1.msra.mxu0 %v2136
  %2587 = vmatprep.subr.mxu0 %v2143
  %2588 = vmatpush1.msra.mxu0 %v2142
  %2589 = vmatprep.subr.mxu0 %v2149
  %2590 = vmatpush1.msra.mxu0 %v2148
  %2591 = vmatprep.subr.mxu0 %v2155
  %2592 = vmatpush1.msra.mxu0 %v2154
  %2593 = vmatprep.subr.mxu0 %v2161
  %2594 = vmatpush1.msra.mxu0 %v2160
  %2595 = vmatprep.subr.mxu0 %v2167
  %2596 = vmatpush1.msra.mxu0 %v2166
  %2597 = vmatprep.subr.mxu0 %v2173
  %2598 = vmatpush1.msra.mxu0 %v2172
  %2599 = vmatprep.subr.mxu0 %v2179
  %2600 = vmatpush1.msra.mxu0 %v2178
  %2601 = vmatprep.mubr.f32.mxu0 %v1605
  %2602 = vmatmul.mubr.f32.gmra.mrb[0].mxu0 %v1604
  %v2603 = vpop.f32.mrb[0].mxu0
  %v2604 = vadd.f32 %v2533, %v2603
  %v2605 = vpop.f32.mrb[0].mxu0
  %v2606 = vadd.f32 %v2535, %v2605
  %2607 = vdwg.mxu0
  %2608 = vmatprep.subr.mxu0 %v1611
  %2609 = vmatpush1.msra.mxu0 %v1610
  %2610 = vmatprep.subr.mxu0 %v1617
  %2611 = vmatpush1.msra.mxu0 %v1616
  %2612 = vmatprep.subr.mxu0 %v1623
  %2613 = vmatpush1.msra.mxu0 %v1622
  %2614 = vmatprep.subr.mxu0 %v1629
  %2615 = vmatpush1.msra.mxu0 %v1628
  %2616 = vmatprep.subr.mxu0 %v1635
  %2617 = vmatpush1.msra.mxu0 %v1634
  %2618 = vmatprep.subr.mxu0 %v1641
  %2619 = vmatpush1.msra.mxu0 %v1640
  %2620 = vmatprep.subr.mxu0 %v1647
  %2621 = vmatpush1.msra.mxu0 %v1646
  %2622 = vmatprep.subr.mxu0 %v1653
  %2623 = vmatpush1.msra.mxu0 %v1652
  %2624 = vmatprep.subr.mxu0 %v1659
  %2625 = vmatpush1.msra.mxu0 %v1658
  %2626 = vmatprep.subr.mxu0 %v1665
  %2627 = vmatpush1.msra.mxu0 %v1664
  %2628 = vmatprep.subr.mxu0 %v1671
  %2629 = vmatpush1.msra.mxu0 %v1670
  %2630 = vmatprep.subr.mxu0 %v1677
  %2631 = vmatpush1.msra.mxu0 %v1676
  %2632 = vmatprep.subr.mxu0 %v1683
  %2633 = vmatpush1.msra.mxu0 %v1682
  %2634 = vmatprep.subr.mxu0 %v1689
  %2635 = vmatpush1.msra.mxu0 %v1688
  %2636 = vmatprep.subr.mxu0 %v1695
  %2637 = vmatpush1.msra.mxu0 %v1694
  %2638 = vmatprep.subr.mxu0 %v1701
  %2639 = vmatpush1.msra.mxu0 %v1700
  %2640 = vmatprep.subr.mxu0 %v1707
  %2641 = vmatpush1.msra.mxu0 %v1706
  %2642 = vmatprep.subr.mxu0 %v1713
  %2643 = vmatpush1.msra.mxu0 %v1712
  %2644 = vmatprep.subr.mxu0 %v1719
  %2645 = vmatpush1.msra.mxu0 %v1718
  %2646 = vmatprep.subr.mxu0 %v1725
  %2647 = vmatpush1.msra.mxu0 %v1724
  %2648 = vmatprep.subr.mxu0 %v1731
  %2649 = vmatpush1.msra.mxu0 %v1730
  %2650 = vmatprep.subr.mxu0 %v1737
  %2651 = vmatpush1.msra.mxu0 %v1736
  %2652 = vmatprep.subr.mxu0 %v1743
  %2653 = vmatpush1.msra.mxu0 %v1742
  %2654 = vmatprep.subr.mxu0 %v1749
  %2655 = vmatpush1.msra.mxu0 %v1748
  %2656 = vmatprep.subr.mxu0 %v1755
  %2657 = vmatpush1.msra.mxu0 %v1754
  %2658 = vmatprep.subr.mxu0 %v1761
  %2659 = vmatpush1.msra.mxu0 %v1760
  %2660 = vmatprep.subr.mxu0 %v1767
  %2661 = vmatpush1.msra.mxu0 %v1766
  %2662 = vmatprep.subr.mxu0 %v1773
  %2663 = vmatpush1.msra.mxu0 %v1772
  %2664 = vmatprep.subr.mxu0 %v1779
  %2665 = vmatpush1.msra.mxu0 %v1778
  %2666 = vmatprep.subr.mxu0 %v1785
  %2667 = vmatpush1.msra.mxu0 %v1784
  %2668 = vmatprep.subr.mxu0 %v1791
  %2669 = vmatpush1.msra.mxu0 %v1790
  %2670 = vmatprep.subr.mxu0 %v1797
  %2671 = vmatpush1.msra.mxu0 %v1796
  %2672 = vmatprep.mubr.f32.mxu0 %v1601
  %2673 = vmatmul.mubr.f32.gmra.mrb[0].mxu0 %v1600
  %v2674 = vpop.f32.mrb[0].mxu0
  %v2675 = vadd.f32 0.0, %v2674
  %v2676 = vpop.f32.mrb[0].mxu0
  %v2677 = vadd.f32 0.0, %v2676
  %2678 = vdwg.mxu0
  %2679 = vmatprep.subr.mxu0 %v1803
  %2680 = vmatpush1.msra.mxu0 %v1802
  %2681 = vmatprep.subr.mxu0 %v1809
  %2682 = vmatpush1.msra.mxu0 %v1808
  %2683 = vmatprep.subr.mxu0 %v1815
  %2684 = vmatpush1.msra.mxu0 %v1814
  %2685 = vmatprep.subr.mxu0 %v1821
  %2686 = vmatpush1.msra.mxu0 %v1820
  %2687 = vmatprep.subr.mxu0 %v1827
  %2688 = vmatpush1.msra.mxu0 %v1826
  %2689 = vmatprep.subr.mxu0 %v1833
  %2690 = vmatpush1.msra.mxu0 %v1832
  %2691 = vmatprep.subr.mxu0 %v1839
  %2692 = vmatpush1.msra.mxu0 %v1838
  %2693 = vmatprep.subr.mxu0 %v1845
  %2694 = vmatpush1.msra.mxu0 %v1844
  %2695 = vmatprep.subr.mxu0 %v1851
  %2696 = vmatpush1.msra.mxu0 %v1850
  %2697 = vmatprep.subr.mxu0 %v1857
  %2698 = vmatpush1.msra.mxu0 %v1856
  %2699 = vmatprep.subr.mxu0 %v1863
  %2700 = vmatpush1.msra.mxu0 %v1862
  %2701 = vmatprep.subr.mxu0 %v1869
  %2702 = vmatpush1.msra.mxu0 %v1868
  %2703 = vmatprep.subr.mxu0 %v1875
  %2704 = vmatpush1.msra.mxu0 %v1874
  %2705 = vmatprep.subr.mxu0 %v1881
  %2706 = vmatpush1.msra.mxu0 %v1880
  %2707 = vmatprep.subr.mxu0 %v1887
  %2708 = vmatpush1.msra.mxu0 %v1886
  %2709 = vmatprep.subr.mxu0 %v1893
  %2710 = vmatpush1.msra.mxu0 %v1892
  %2711 = vmatprep.subr.mxu0 %v1899
  %2712 = vmatpush1.msra.mxu0 %v1898
  %2713 = vmatprep.subr.mxu0 %v1905
  %2714 = vmatpush1.msra.mxu0 %v1904
  %2715 = vmatprep.subr.mxu0 %v1911
  %2716 = vmatpush1.msra.mxu0 %v1910
  %2717 = vmatprep.subr.mxu0 %v1917
  %2718 = vmatpush1.msra.mxu0 %v1916
  %2719 = vmatprep.subr.mxu0 %v1923
  %2720 = vmatpush1.msra.mxu0 %v1922
  %2721 = vmatprep.subr.mxu0 %v1929
  %2722 = vmatpush1.msra.mxu0 %v1928
  %2723 = vmatprep.subr.mxu0 %v1935
  %2724 = vmatpush1.msra.mxu0 %v1934
  %2725 = vmatprep.subr.mxu0 %v1941
  %2726 = vmatpush1.msra.mxu0 %v1940
  %2727 = vmatprep.subr.mxu0 %v1947
  %2728 = vmatpush1.msra.mxu0 %v1946
  %2729 = vmatprep.subr.mxu0 %v1953
  %2730 = vmatpush1.msra.mxu0 %v1952
  %2731 = vmatprep.subr.mxu0 %v1959
  %2732 = vmatpush1.msra.mxu0 %v1958
  %2733 = vmatprep.subr.mxu0 %v1965
  %2734 = vmatpush1.msra.mxu0 %v1964
  %2735 = vmatprep.subr.mxu0 %v1971
  %2736 = vmatpush1.msra.mxu0 %v1970
  %2737 = vmatprep.subr.mxu0 %v1977
  %2738 = vmatpush1.msra.mxu0 %v1976
  %2739 = vmatprep.subr.mxu0 %v1983
  %2740 = vmatpush1.msra.mxu0 %v1982
  %2741 = vmatprep.subr.mxu0 %v1989
  %2742 = vmatpush1.msra.mxu0 %v1988
  %2743 = vmatprep.mubr.f32.mxu0 %v1603
  %2744 = vmatmul.mubr.f32.gmra.mrb[0].mxu0 %v1602
  %v2745 = vpop.f32.mrb[0].mxu0
  %v2746 = vadd.f32 %v2675, %v2745
  %v2747 = vpop.f32.mrb[0].mxu0
  %v2748 = vadd.f32 %v2677, %v2747
  %2749 = vdwg.mxu0
  %2750 = vmatprep.subr.mxu0 %v1995
  %2751 = vmatpush1.msra.mxu0 %v1994
  %2752 = vmatprep.subr.mxu0 %v2001
  %2753 = vmatpush1.msra.mxu0 %v2000
  %2754 = vmatprep.subr.mxu0 %v2007
  %2755 = vmatpush1.msra.mxu0 %v2006
  %2756 = vmatprep.subr.mxu0 %v2013
  %2757 = vmatpush1.msra.mxu0 %v2012
  %2758 = vmatprep.subr.mxu0 %v2019
  %2759 = vmatpush1.msra.mxu0 %v2018
  %2760 = vmatprep.subr.mxu0 %v2025
  %2761 = vmatpush1.msra.mxu0 %v2024
  %2762 = vmatprep.subr.mxu0 %v2031
  %2763 = vmatpush1.msra.mxu0 %v2030
  %2764 = vmatprep.subr.mxu0 %v2037
  %2765 = vmatpush1.msra.mxu0 %v2036
  %2766 = vmatprep.subr.mxu0 %v2043
  %2767 = vmatpush1.msra.mxu0 %v2042
  %2768 = vmatprep.subr.mxu0 %v2049
  %2769 = vmatpush1.msra.mxu0 %v2048
  %2770 = vmatprep.subr.mxu0 %v2055
  %2771 = vmatpush1.msra.mxu0 %v2054
  %2772 = vmatprep.subr.mxu0 %v2061
  %2773 = vmatpush1.msra.mxu0 %v2060
  %2774 = vmatprep.subr.mxu0 %v2067
  %2775 = vmatpush1.msra.mxu0 %v2066
  %2776 = vmatprep.subr.mxu0 %v2073
  %2777 = vmatpush1.msra.mxu0 %v2072
  %2778 = vmatprep.subr.mxu0 %v2079
  %2779 = vmatpush1.msra.mxu0 %v2078
  %2780 = vmatprep.subr.mxu0 %v2085
  %2781 = vmatpush1.msra.mxu0 %v2084
  %2782 = vmatprep.subr.mxu0 %v2091
  %2783 = vmatpush1.msra.mxu0 %v2090
  %2784 = vmatprep.subr.mxu0 %v2097
  %2785 = vmatpush1.msra.mxu0 %v2096
  %2786 = vmatprep.subr.mxu0 %v2103
  %2787 = vmatpush1.msra.mxu0 %v2102
  %2788 = vmatprep.subr.mxu0 %v2109
  %2789 = vmatpush1.msra.mxu0 %v2108
  %2790 = vmatprep.subr.mxu0 %v2115
  %2791 = vmatpush1.msra.mxu0 %v2114
  %2792 = vmatprep.subr.mxu0 %v2121
  %2793 = vmatpush1.msra.mxu0 %v2120
  %2794 = vmatprep.subr.mxu0 %v2127
  %2795 = vmatpush1.msra.mxu0 %v2126
  %2796 = vmatprep.subr.mxu0 %v2133
  %2797 = vmatpush1.msra.mxu0 %v2132
  %2798 = vmatprep.subr.mxu0 %v2139
  %2799 = vmatpush1.msra.mxu0 %v2138
  %2800 = vmatprep.subr.mxu0 %v2145
  %2801 = vmatpush1.msra.mxu0 %v2144
  %2802 = vmatprep.subr.mxu0 %v2151
  %2803 = vmatpush1.msra.mxu0 %v2150
  %2804 = vmatprep.subr.mxu0 %v2157
  %2805 = vmatpush1.msra.mxu0 %v2156
  %2806 = vmatprep.subr.mxu0 %v2163
  %2807 = vmatpush1.msra.mxu0 %v2162
  %2808 = vmatprep.subr.mxu0 %v2169
  %2809 = vmatpush1.msra.mxu0 %v2168
  %2810 = vmatprep.subr.mxu0 %v2175
  %2811 = vmatpush1.msra.mxu0 %v2174
  %2812 = vmatprep.subr.mxu0 %v2181
  %2813 = vmatpush1.msra.mxu0 %v2180
  %2814 = vmatprep.mubr.f32.mxu0 %v1605
  %2815 = vmatmul.mubr.f32.gmra.mrb[0].mxu0 %v1604
  %v2816 = vpop.f32.mrb[0].mxu0
  %v2817 = vadd.f32 %v2746, %v2816
  %v2818 = vpop.f32.mrb[0].mxu0
  %v2819 = vadd.f32 %v2748, %v2818
  %2820 = vdwg.mxu0
  %v2821 = vmax.f32 %v2391, 1e-30
  %v2822 = vmax.f32 %v2393, 1e-30
  %v2823 = vmax.f32 %v2604, 1e-30
  %v2824 = vmax.f32 %v2606, 1e-30
  %v2825 = vmax.f32 %v2817, 1e-30
  %v2826 = vmax.f32 %v2819, 1e-30
  %v2827 = vrcp.pop %v2821
  %v2828 = vrcp.pop %v2822
  %v2829 = vrcp.pop %v2823
  %v2830 = vrcp.pop %v2824
  %v2831 = vrcp.pop %v2825
  %v2832 = vrcp.pop %v2826
  %v2833 = vmul.f32 %v1600, %v2827
  %v2834 = vmul.f32 %v1601, %v2828
  %v2835 = vmul.f32 %v1602, %v2829
  %v2836 = vmul.f32 %v1603, %v2830
  %v2837 = vmul.f32 %v1604, %v2831
  %v2838 = vmul.f32 %v1605, %v2832
  %v2839 = vmax.f32 %v2833, 0.001
  %v2840 = vmax.f32 %v2834, 0.001
  %v2841 = vmax.f32 %v2835, 0.001
  %v2842 = vmax.f32 %v2836, 0.001
  %v2843 = vmax.f32 %v2837, 0.001
  %v2844 = vmax.f32 %v2838, 0.001
  %v2845 = vld [vmem:[%s10] sm:$0xff]
  %v2846 = vld [vmem:[%s10 + $0x8] sm:$0xff]
  %v2847 = vld [vmem:[%s10 + $0x10] sm:$0xff]
  %v2848 = vld [vmem:[%s10 + $0x18] sm:$0xff]
  %v2849 = vld [vmem:[%s10 + $0x20] sm:$0xff]
  %v2850 = vld [vmem:[%s10 + $0x28] sm:$0xff]
  %v2851 = vld [vmem:[%s10 + $0x30] sm:$0xff]
  %v2852 = vld [vmem:[%s10 + $0x38] sm:$0xff]
  %v2853 = vld [vmem:[%s10 + $0x40] sm:$0xff]
  %v2854 = vld [vmem:[%s10 + $0x48] sm:$0xff]
  %v2855 = vld [vmem:[%s10 + $0x50] sm:$0xff]
  %v2856 = vld [vmem:[%s10 + $0x58] sm:$0xff]
  %v2857 = vld [vmem:[%s10 + $0x60] sm:$0xff]
  %v2858 = vld [vmem:[%s10 + $0x68] sm:$0xff]
  %v2859 = vld [vmem:[%s10 + $0x70] sm:$0xff]
  %v2860 = vld [vmem:[%s10 + $0x78] sm:$0xff]
  %v2861 = vld [vmem:[%s10 + $0x80] sm:$0xff]
  %v2862 = vld [vmem:[%s10 + $0x88] sm:$0xff]
  %v2863 = vld [vmem:[%s10 + $0x90] sm:$0xff]
  %v2864 = vld [vmem:[%s10 + $0x98] sm:$0xff]
  %v2865 = vld [vmem:[%s10 + $0xa0] sm:$0xff]
  %v2866 = vld [vmem:[%s10 + $0xa8] sm:$0xff]
  %v2867 = vld [vmem:[%s10 + $0xb0] sm:$0xff]
  %v2868 = vld [vmem:[%s10 + $0xb8] sm:$0xff]
  %v2869 = vld [vmem:[%s10 + $0xc0] sm:$0xff]
  %v2870 = vld [vmem:[%s10 + $0xc8] sm:$0xff]
  %v2871 = vld [vmem:[%s10 + $0xd0] sm:$0xff]
  %v2872 = vld [vmem:[%s10 + $0xd8] sm:$0xff]
  %v2873 = vld [vmem:[%s10 + $0xe0] sm:$0xff]
  %v2874 = vld [vmem:[%s10 + $0xe8] sm:$0xff]
  %v2875 = vld [vmem:[%s10 + $0xf0] sm:$0xff]
  %v2876 = vld [vmem:[%s10 + $0xf8] sm:$0xff]
  %v2877 = vld [vmem:[%s10 + $0x100] sm:$0xff]
  %v2878 = vld [vmem:[%s10 + $0x108] sm:$0xff]
  %v2879 = vld [vmem:[%s10 + $0x110] sm:$0xff]
  %v2880 = vld [vmem:[%s10 + $0x118] sm:$0xff]
  %v2881 = vld [vmem:[%s10 + $0x120] sm:$0xff]
  %v2882 = vld [vmem:[%s10 + $0x128] sm:$0xff]
  %v2883 = vld [vmem:[%s10 + $0x130] sm:$0xff]
  %v2884 = vld [vmem:[%s10 + $0x138] sm:$0xff]
  %v2885 = vld [vmem:[%s10 + $0x140] sm:$0xff]
  %v2886 = vld [vmem:[%s10 + $0x148] sm:$0xff]
  %v2887 = vld [vmem:[%s10 + $0x150] sm:$0xff]
  %v2888 = vld [vmem:[%s10 + $0x158] sm:$0xff]
  %v2889 = vld [vmem:[%s10 + $0x160] sm:$0xff]
  %v2890 = vld [vmem:[%s10 + $0x168] sm:$0xff]
  %v2891 = vld [vmem:[%s10 + $0x170] sm:$0xff]
  %v2892 = vld [vmem:[%s10 + $0x178] sm:$0xff]
  %v2893 = vld [vmem:[%s10 + $0x180] sm:$0xff]
  %v2894 = vld [vmem:[%s10 + $0x188] sm:$0xff]
  %v2895 = vld [vmem:[%s10 + $0x190] sm:$0xff]
  %v2896 = vld [vmem:[%s10 + $0x198] sm:$0xff]
  %v2897 = vld [vmem:[%s10 + $0x1a0] sm:$0xff]
  %v2898 = vld [vmem:[%s10 + $0x1a8] sm:$0xff]
  %v2899 = vld [vmem:[%s10 + $0x1b0] sm:$0xff]
  %v2900 = vld [vmem:[%s10 + $0x1b8] sm:$0xff]
  %v2901 = vld [vmem:[%s10 + $0x1c0] sm:$0xff]
  %v2902 = vld [vmem:[%s10 + $0x1c8] sm:$0xff]
  %v2903 = vld [vmem:[%s10 + $0x1d0] sm:$0xff]
  %v2904 = vld [vmem:[%s10 + $0x1d8] sm:$0xff]
  %v2905 = vld [vmem:[%s10 + $0x1e0] sm:$0xff]
  %v2906 = vld [vmem:[%s10 + $0x1e8] sm:$0xff]
  %v2907 = vld [vmem:[%s10 + $0x1f0] sm:$0xff]
  %v2908 = vld [vmem:[%s10 + $0x1f8] sm:$0xff]
  %v2909 = vld [vmem:[%s10 + $0x200] sm:$0xff]
  %v2910 = vld [vmem:[%s10 + $0x208] sm:$0xff]
  %v2911 = vld [vmem:[%s10 + $0x210] sm:$0xff]
  %v2912 = vld [vmem:[%s10 + $0x218] sm:$0xff]
  %v2913 = vld [vmem:[%s10 + $0x220] sm:$0xff]
  %v2914 = vld [vmem:[%s10 + $0x228] sm:$0xff]
  %v2915 = vld [vmem:[%s10 + $0x230] sm:$0xff]
  %v2916 = vld [vmem:[%s10 + $0x238] sm:$0xff]
  %v2917 = vld [vmem:[%s10 + $0x240] sm:$0xff]
  %v2918 = vld [vmem:[%s10 + $0x248] sm:$0xff]
  %v2919 = vld [vmem:[%s10 + $0x250] sm:$0xff]
  %v2920 = vld [vmem:[%s10 + $0x258] sm:$0xff]
  %v2921 = vld [vmem:[%s10 + $0x260] sm:$0xff]
  %v2922 = vld [vmem:[%s10 + $0x268] sm:$0xff]
  %v2923 = vld [vmem:[%s10 + $0x270] sm:$0xff]
  %v2924 = vld [vmem:[%s10 + $0x278] sm:$0xff]
  %v2925 = vld [vmem:[%s10 + $0x280] sm:$0xff]
  %v2926 = vld [vmem:[%s10 + $0x288] sm:$0xff]
  %v2927 = vld [vmem:[%s10 + $0x290] sm:$0xff]
  %v2928 = vld [vmem:[%s10 + $0x298] sm:$0xff]
  %v2929 = vld [vmem:[%s10 + $0x2a0] sm:$0xff]
  %v2930 = vld [vmem:[%s10 + $0x2a8] sm:$0xff]
  %v2931 = vld [vmem:[%s10 + $0x2b0] sm:$0xff]
  %v2932 = vld [vmem:[%s10 + $0x2b8] sm:$0xff]
  %v2933 = vld [vmem:[%s10 + $0x2c0] sm:$0xff]
  %v2934 = vld [vmem:[%s10 + $0x2c8] sm:$0xff]
  %v2935 = vld [vmem:[%s10 + $0x2d0] sm:$0xff]
  %v2936 = vld [vmem:[%s10 + $0x2d8] sm:$0xff]
  %v2937 = vld [vmem:[%s10 + $0x2e0] sm:$0xff]
  %v2938 = vld [vmem:[%s10 + $0x2e8] sm:$0xff]
  %v2939 = vld [vmem:[%s10 + $0x2f0] sm:$0xff]
  %v2940 = vld [vmem:[%s10 + $0x2f8] sm:$0xff]
  %2941 = vmatprep.subr.mxu0 0.0
  %2942 = vmatpush1.msra.mxu0 %v2845
  %2943 = vmatprep.subr.mxu0 0.0
  %2944 = vmatpush1.msra.mxu0 %v2846
  %2945 = vmatprep.subr.mxu0 0.0
  %2946 = vmatpush1.msra.mxu0 %v2847
  %2947 = vmatprep.subr.mxu0 0.0
  %2948 = vmatpush1.msra.mxu0 %v2848
  %2949 = vmatprep.subr.mxu0 0.0
  %2950 = vmatpush1.msra.mxu0 %v2849
  %2951 = vmatprep.subr.mxu0 0.0
  %2952 = vmatpush1.msra.mxu0 %v2850
  %2953 = vmatprep.subr.mxu0 0.0
  %2954 = vmatpush1.msra.mxu0 %v2851
  %2955 = vmatprep.subr.mxu0 0.0
  %2956 = vmatpush1.msra.mxu0 %v2852
  %2957 = vmatprep.subr.mxu0 0.0
  %2958 = vmatpush1.msra.mxu0 %v2853
  %2959 = vmatprep.subr.mxu0 0.0
  %2960 = vmatpush1.msra.mxu0 %v2854
  %2961 = vmatprep.subr.mxu0 0.0
  %2962 = vmatpush1.msra.mxu0 %v2855
  %2963 = vmatprep.subr.mxu0 0.0
  %2964 = vmatpush1.msra.mxu0 %v2856
  %2965 = vmatprep.subr.mxu0 0.0
  %2966 = vmatpush1.msra.mxu0 %v2857
  %2967 = vmatprep.subr.mxu0 0.0
  %2968 = vmatpush1.msra.mxu0 %v2858
  %2969 = vmatprep.subr.mxu0 0.0
  %2970 = vmatpush1.msra.mxu0 %v2859
  %2971 = vmatprep.subr.mxu0 0.0
  %2972 = vmatpush1.msra.mxu0 %v2860
  %2973 = vmatprep.subr.mxu0 0.0
  %2974 = vmatpush1.msra.mxu0 %v2861
  %2975 = vmatprep.subr.mxu0 0.0
  %2976 = vmatpush1.msra.mxu0 %v2862
  %2977 = vmatprep.subr.mxu0 0.0
  %2978 = vmatpush1.msra.mxu0 %v2863
  %2979 = vmatprep.subr.mxu0 0.0
  %2980 = vmatpush1.msra.mxu0 %v2864
  %2981 = vmatprep.subr.mxu0 0.0
  %2982 = vmatpush1.msra.mxu0 %v2865
  %2983 = vmatprep.subr.mxu0 0.0
  %2984 = vmatpush1.msra.mxu0 %v2866
  %2985 = vmatprep.subr.mxu0 0.0
  %2986 = vmatpush1.msra.mxu0 %v2867
  %2987 = vmatprep.subr.mxu0 0.0
  %2988 = vmatpush1.msra.mxu0 %v2868
  %2989 = vmatprep.subr.mxu0 0.0
  %2990 = vmatpush1.msra.mxu0 %v2869
  %2991 = vmatprep.subr.mxu0 0.0
  %2992 = vmatpush1.msra.mxu0 %v2870
  %2993 = vmatprep.subr.mxu0 0.0
  %2994 = vmatpush1.msra.mxu0 %v2871
  %2995 = vmatprep.subr.mxu0 0.0
  %2996 = vmatpush1.msra.mxu0 %v2872
  %2997 = vmatprep.subr.mxu0 0.0
  %2998 = vmatpush1.msra.mxu0 %v2873
  %2999 = vmatprep.subr.mxu0 0.0
  %3000 = vmatpush1.msra.mxu0 %v2874
  %3001 = vmatprep.subr.mxu0 0.0
  %3002 = vmatpush1.msra.mxu0 %v2875
  %3003 = vmatprep.subr.mxu0 0.0
  %3004 = vmatpush1.msra.mxu0 %v2876
  %3005 = vmatprep.mubr.f32.mxu0 %v2840
  %3006 = vmatmul.mubr.f32.gmra.mrb[0].mxu0 %v2839
  %v3007 = vpop.f32.mrb[0].mxu0
  %v3008 = vadd.f32 0.0, %v3007
  %v3009 = vpop.f32.mrb[0].mxu0
  %3010 = vdwg.mxu0
  %3011 = vmatprep.subr.mxu0 0.0
  %3012 = vmatpush1.msra.mxu0 %v2877
  %3013 = vmatprep.subr.mxu0 0.0
  %3014 = vmatpush1.msra.mxu0 %v2878
  %3015 = vmatprep.subr.mxu0 0.0
  %3016 = vmatpush1.msra.mxu0 %v2879
  %3017 = vmatprep.subr.mxu0 0.0
  %3018 = vmatpush1.msra.mxu0 %v2880
  %3019 = vmatprep.subr.mxu0 0.0
  %3020 = vmatpush1.msra.mxu0 %v2881
  %3021 = vmatprep.subr.mxu0 0.0
  %3022 = vmatpush1.msra.mxu0 %v2882
  %3023 = vmatprep.subr.mxu0 0.0
  %3024 = vmatpush1.msra.mxu0 %v2883
  %3025 = vmatprep.subr.mxu0 0.0
  %3026 = vmatpush1.msra.mxu0 %v2884
  %3027 = vmatprep.subr.mxu0 0.0
  %3028 = vmatpush1.msra.mxu0 %v2885
  %3029 = vmatprep.subr.mxu0 0.0
  %3030 = vmatpush1.msra.mxu0 %v2886
  %3031 = vmatprep.subr.mxu0 0.0
  %3032 = vmatpush1.msra.mxu0 %v2887
  %3033 = vmatprep.subr.mxu0 0.0
  %3034 = vmatpush1.msra.mxu0 %v2888
  %3035 = vmatprep.subr.mxu0 0.0
  %3036 = vmatpush1.msra.mxu0 %v2889
  %3037 = vmatprep.subr.mxu0 0.0
  %3038 = vmatpush1.msra.mxu0 %v2890
  %3039 = vmatprep.subr.mxu0 0.0
  %3040 = vmatpush1.msra.mxu0 %v2891
  %3041 = vmatprep.subr.mxu0 0.0
  %3042 = vmatpush1.msra.mxu0 %v2892
  %3043 = vmatprep.subr.mxu0 0.0
  %3044 = vmatpush1.msra.mxu0 %v2893
  %3045 = vmatprep.subr.mxu0 0.0
  %3046 = vmatpush1.msra.mxu0 %v2894
  %3047 = vmatprep.subr.mxu0 0.0
  %3048 = vmatpush1.msra.mxu0 %v2895
  %3049 = vmatprep.subr.mxu0 0.0
  %3050 = vmatpush1.msra.mxu0 %v2896
  %3051 = vmatprep.subr.mxu0 0.0
  %3052 = vmatpush1.msra.mxu0 %v2897
  %3053 = vmatprep.subr.mxu0 0.0
  %3054 = vmatpush1.msra.mxu0 %v2898
  %3055 = vmatprep.subr.mxu0 0.0
  %3056 = vmatpush1.msra.mxu0 %v2899
  %3057 = vmatprep.subr.mxu0 0.0
  %3058 = vmatpush1.msra.mxu0 %v2900
  %3059 = vmatprep.subr.mxu0 0.0
  %3060 = vmatpush1.msra.mxu0 %v2901
  %3061 = vmatprep.subr.mxu0 0.0
  %3062 = vmatpush1.msra.mxu0 %v2902
  %3063 = vmatprep.subr.mxu0 0.0
  %3064 = vmatpush1.msra.mxu0 %v2903
  %3065 = vmatprep.subr.mxu0 0.0
  %3066 = vmatpush1.msra.mxu0 %v2904
  %3067 = vmatprep.subr.mxu0 0.0
  %3068 = vmatpush1.msra.mxu0 %v2905
  %3069 = vmatprep.subr.mxu0 0.0
  %3070 = vmatpush1.msra.mxu0 %v2906
  %3071 = vmatprep.subr.mxu0 0.0
  %3072 = vmatpush1.msra.mxu0 %v2907
  %3073 = vmatprep.subr.mxu0 0.0
  %3074 = vmatpush1.msra.mxu0 %v2908
  %3075 = vmatprep.mubr.f32.mxu0 %v2842
  %3076 = vmatmul.mubr.f32.gmra.mrb[0].mxu0 %v2841
  %v3077 = vpop.f32.mrb[0].mxu0
  %v3078 = vadd.f32 %v3008, %v3077
  %v3079 = vpop.f32.mrb[0].mxu0
  %3080 = vdwg.mxu0
  %3081 = vmatprep.subr.mxu0 0.0
  %3082 = vmatpush1.msra.mxu0 %v2909
  %3083 = vmatprep.subr.mxu0 0.0
  %3084 = vmatpush1.msra.mxu0 %v2910
  %3085 = vmatprep.subr.mxu0 0.0
  %3086 = vmatpush1.msra.mxu0 %v2911
  %3087 = vmatprep.subr.mxu0 0.0
  %3088 = vmatpush1.msra.mxu0 %v2912
  %3089 = vmatprep.subr.mxu0 0.0
  %3090 = vmatpush1.msra.mxu0 %v2913
  %3091 = vmatprep.subr.mxu0 0.0
  %3092 = vmatpush1.msra.mxu0 %v2914
  %3093 = vmatprep.subr.mxu0 0.0
  %3094 = vmatpush1.msra.mxu0 %v2915
  %3095 = vmatprep.subr.mxu0 0.0
  %3096 = vmatpush1.msra.mxu0 %v2916
  %3097 = vmatprep.subr.mxu0 0.0
  %3098 = vmatpush1.msra.mxu0 %v2917
  %3099 = vmatprep.subr.mxu0 0.0
  %3100 = vmatpush1.msra.mxu0 %v2918
  %3101 = vmatprep.subr.mxu0 0.0
  %3102 = vmatpush1.msra.mxu0 %v2919
  %3103 = vmatprep.subr.mxu0 0.0
  %3104 = vmatpush1.msra.mxu0 %v2920
  %3105 = vmatprep.subr.mxu0 0.0
  %3106 = vmatpush1.msra.mxu0 %v2921
  %3107 = vmatprep.subr.mxu0 0.0
  %3108 = vmatpush1.msra.mxu0 %v2922
  %3109 = vmatprep.subr.mxu0 0.0
  %3110 = vmatpush1.msra.mxu0 %v2923
  %3111 = vmatprep.subr.mxu0 0.0
  %3112 = vmatpush1.msra.mxu0 %v2924
  %3113 = vmatprep.subr.mxu0 0.0
  %3114 = vmatpush1.msra.mxu0 %v2925
  %3115 = vmatprep.subr.mxu0 0.0
  %3116 = vmatpush1.msra.mxu0 %v2926
  %3117 = vmatprep.subr.mxu0 0.0
  %3118 = vmatpush1.msra.mxu0 %v2927
  %3119 = vmatprep.subr.mxu0 0.0
  %3120 = vmatpush1.msra.mxu0 %v2928
  %3121 = vmatprep.subr.mxu0 0.0
  %3122 = vmatpush1.msra.mxu0 %v2929
  %3123 = vmatprep.subr.mxu0 0.0
  %3124 = vmatpush1.msra.mxu0 %v2930
  %3125 = vmatprep.subr.mxu0 0.0
  %3126 = vmatpush1.msra.mxu0 %v2931
  %3127 = vmatprep.subr.mxu0 0.0
  %3128 = vmatpush1.msra.mxu0 %v2932
  %3129 = vmatprep.subr.mxu0 0.0
  %3130 = vmatpush1.msra.mxu0 %v2933
  %3131 = vmatprep.subr.mxu0 0.0
  %3132 = vmatpush1.msra.mxu0 %v2934
  %3133 = vmatprep.subr.mxu0 0.0
  %3134 = vmatpush1.msra.mxu0 %v2935
  %3135 = vmatprep.subr.mxu0 0.0
  %3136 = vmatpush1.msra.mxu0 %v2936
  %3137 = vmatprep.subr.mxu0 0.0
  %3138 = vmatpush1.msra.mxu0 %v2937
  %3139 = vmatprep.subr.mxu0 0.0
  %3140 = vmatpush1.msra.mxu0 %v2938
  %3141 = vmatprep.subr.mxu0 0.0
  %3142 = vmatpush1.msra.mxu0 %v2939
  %3143 = vmatprep.subr.mxu0 0.0
  %3144 = vmatpush1.msra.mxu0 %v2940
  %3145 = vmatprep.mubr.f32.mxu0 %v2844
  %3146 = vmatmul.mubr.f32.gmra.mrb[0].mxu0 %v2843
  %v3147 = vpop.f32.mrb[0].mxu0
  %v3148 = vadd.f32 %v3078, %v3147
  %v3149 = vpop.f32.mrb[0].mxu0
  %3150 = vdwg.mxu0
  %vm3151 = vcmask 48128
  %3152 = vst.msk [vmem:[%s11] sm:$0xff] %vm3151, %v3148
  // Predicated region
  $region46: #{forward.5} parent=0 // pred_check
    _
  $region47: #{forward.5} parent=0 // pred_check_branch
    %3154 = sbr.rel (0) target = $region49
  $region48: #{forward.5} parent=0 // pred_region
    _
  $region49: #{forward.5} parent=0 // pred_fallthru
    _
  // Predicated region
  $region50: #{forward.5} parent=0 // pred_check
    _
  $region51: #{forward.5} parent=0 // pred_check_branch
    %3156 = sbr.rel (0) target = $region53
  $region52: #{forward.5} parent=0 // pred_region
    _
  $region53: #{forward.5} parent=0 // pred_fallthru
    _

</llo_original>
